<compile_context>
chip_gen: v7x
topology: tpu7x:2x2x1
jax: 0.10.0
libtpu: 0.0.40
codegen_flags: <defaults>
</compile_context>

<pallas_src>
import functools
import math

import jax
import jax.numpy as jnp
from jax import lax
from jax.experimental import pallas as pl
from jax.experimental.pallas import tpu as pltpu


def _vmem_limit_bytes(raw_bytes):
    """Scoped-VMEM limit: working set * 1.5 + headroom, clamped to [32, 100] MiB."""
    return int(min(max(int(raw_bytes * 1.5) + (8 << 20), 32 << 20), 100 << 20))


# ----------------------------------------------------------------------------
# Kernel 1: fused stacked GRU (BiGRUForSRL), time-major (T, B, F) internally.
#
# Canonical-order formulation of the reference module:
#   canon_0(t)   = ForwardGRU_0(x)(t)
#   canon_l(t)   = canon_{l-1}(t) + GRU_l(canon_{l-1})(t)   (l >= 1),
#                  GRU_l runs BACKWARD over time if l is odd, FORWARD if even.
#   final output = canon_{depth-1}, time-reversed iff depth is odd
#                  (the reverse is realized by flipping the store index of the
#                   last layer inside the kernel).
# ----------------------------------------------------------------------------
def fused_gru_kernel(depth, T, H, x_ref, *refs):
    nw = 3 * depth
    w = refs[:nw]
    out_ref = refs[nw]
    buf_ref, gx_ref = refs[nw + 1:]
    B = out_ref.shape[1]

    for l in range(depth):
        wih, whh, bias = w[3 * l: 3 * l + 3]
        src_ref = x_ref if l == 0 else buf_ref
        last = (l == depth - 1)
        dst_ref = out_ref if last else buf_ref
        forward = (l % 2 == 0)
        residual = (l > 0)
        flip_store = last and (depth % 2 == 1)

        # ---- hoisted, gate-fused input projection over ALL timesteps -------
        # one (T,B,D)x(D,3H) matmul, bf16 operands, f32 accumulation.
        # TODO(synk): chunk this over T for long sequences to bound vreg pressure.
        gx_ref[...] = (
            jnp.einsum('tbd,dh->tbh', src_ref[...].astype(jnp.bfloat16), wih[...],
                       preferred_element_type=jnp.float32)
            + bias[0:1])                                       # x-side bias (1, 3H)

        # hidden-side weights/bias kept in vregs for the whole recurrence
        whh_v = whh[...]                                       # (H, 3H) f32
        bhh_v = bias[1:2]                                      # (1, 3H) f32

        # ---- sequential recurrence: h carried in vregs, 1 fused dot / step --
        def step(i, h):
            t = i if forward else T - 1 - i
            gh = jnp.dot(h, whh_v, preferred_element_type=jnp.float32) + bhh_v
            gx = gx_ref[t]                                     # (B, 3H)
            r = jax.nn.sigmoid(gx[:, 0:H] + gh[:, 0:H])
            z = jax.nn.sigmoid(gx[:, H:2 * H] + gh[:, H:2 * H])
            n = jnp.tanh(gx[:, 2 * H:3 * H] + r * gh[:, 2 * H:3 * H])
            h_new = (1.0 - z) * n + z * h
            # residual read of src[t] happens before the (possibly aliased)
            # write of dst[t]; later steps only touch not-yet-written indices.
            val = src_ref[t] + h_new if residual else h_new
            store_t = T - 1 - t if flip_store else t
            dst_ref[store_t] = val
            return h_new

        lax.fori_loop(0, T, step, jnp.zeros((B, H), jnp.float32),
                      unroll=min(8, T))


def bigru_forward(x, gru_params):
    """BiGRUForSRL.forward.  x: (B, T, dim_in) -> (B, T, dim_u)."""
    B, T, _ = x.shape
    depth = len(gru_params)
    H = gru_params[0][1].shape[1]                              # whh: (3H, H)
    x_tm = jnp.transpose(x, (1, 0, 2)).astype(jnp.float32)     # (T, B, D), once

    # 3 slabs per layer: wih_T (D,3H) bf16, whh_T (H,3H) f32, biases (2,3H) f32.
    # Gate order stays PyTorch's (r | z | n) along the 3H axis.
    flat_w = []
    for (wih, whh, bih, bhh) in gru_params:
        flat_w += [
            jnp.asarray(wih.T, jnp.bfloat16),                  # MXU operand
            jnp.asarray(whh.T, jnp.float32),                   # recurrent path: f32
            jnp.stack([bih, bhh]).astype(jnp.float32),         # row0=bih, row1=bhh
        ]

    raw = 4 * (x_tm.size + 2 * T * B * H + 3 * T * B * H) + sum(
        int(a.size) * a.dtype.itemsize for a in flat_w)

    vmem = pl.BlockSpec(memory_space=pltpu.MemorySpace.VMEM)
    out_tm = pl.pallas_call(
        functools.partial(fused_gru_kernel, depth, T, H),
        out_shape=jax.ShapeDtypeStruct((T, B, H), jnp.float32),
        in_specs=[vmem] * (1 + len(flat_w)),
        out_specs=vmem,
        scratch_shapes=[pltpu.VMEM((T, B, H), jnp.float32),        # layer buffer
                        pltpu.VMEM((T, B, 3 * H), jnp.float32)],   # fused gate preacts
        compiler_params=pltpu.CompilerParams(
            vmem_limit_bytes=_vmem_limit_bytes(raw)),
    )(x_tm, *flat_w)

    # time flip for odd depth already done in-kernel; only one transpose here.
    return jnp.transpose(out_tm, (1, 0, 2))                    # (B, T, H)


# ----------------------------------------------------------------------------
# Kernel 2: fused pairwise-pool + self-attention + output head (grid-less).
# ----------------------------------------------------------------------------
def fused_head_kernel(P, g_ref, w1_ref, wa_ref, w2_ref, wo_ref, b_ref, bo_ref,
                      out_ref):
    g = g_ref[...]                                             # (B, T, H) f32

    # -- pairwise linear + ReLU + max-pool over batch (exact identity) -------
    # pooled[i,t,:] = max_j relu(g_i W_a + g_j W_b + b1) = relu(g_i W_a + b1 + max_j g_j W_b)
    # single fused matmul with w1cat = [W_a | W_b] : (H, 2P)
    proj = jnp.einsum('bth,hq->btq', g.astype(jnp.bfloat16), w1_ref[...],
                      preferred_element_type=jnp.float32)      # (B, T, 2P)
    proj_i = proj[..., 0:P]
    proj_j = proj[..., P:2 * P]
    pool_max = jnp.max(proj_j, axis=0, keepdims=True)          # (1, T, P)
    pooled = jnp.maximum(proj_i + pool_max + b_ref[0:1], 0.0)  # (B, T, P)
    pooled_bf = pooled.astype(jnp.bfloat16)

    # -- per-predicate self attention (assumed BatchAttentionLayer) ----------
    q = jnp.einsum('btp,pq->btq', pooled_bf, wa_ref[...],
                   preferred_element_type=jnp.float32) + b_ref[1:2]
    scores = jnp.einsum('btq,bsq->bts', q.astype(jnp.bfloat16), pooled_bf,
                        preferred_element_type=jnp.float32)    # (B, T, T)
    scores = scores - jnp.max(scores, axis=2, keepdims=True)
    e = jnp.exp(scores)
    attw = e / jnp.sum(e, axis=2, keepdims=True)               # exact softmax
    attend = jnp.einsum('bts,bsp->btp', attw.astype(jnp.bfloat16), pooled_bf,
                        preferred_element_type=jnp.float32)    # (B, T, P)

    # -- linear2([pooled || attend]) + ReLU + output layer + log_softmax -----
    comb = jnp.concatenate([pooled, attend], axis=-1)          # (B, T, 2P)
    h = jnp.einsum('btc,cp->btp', comb.astype(jnp.bfloat16), w2_ref[...],
                   preferred_element_type=jnp.float32) + b_ref[2:3]
    h = jnp.maximum(h, 0.0)
    logits = jnp.einsum('btp,po->bto', h.astype(jnp.bfloat16), wo_ref[...],
                        preferred_element_type=jnp.float32) + bo_ref[...]
    mx = jnp.max(logits, axis=2, keepdims=True)
    lse = mx + jnp.log(jnp.sum(jnp.exp(logits - mx), axis=2, keepdims=True))
    out_ref[...] = logits - lse


def fused_head(g, w1, b1, wa, ba, w2, b2, wo, bo):
    B, T, H = g.shape
    P = w1.shape[0]
    O = wo.shape[0]

    # Fused / reduced operand set (7 inputs): weights transposed + bf16,
    # the three (P,) biases stacked into one (3, P) f32 slab.
    w1cat = jnp.concatenate([w1[:, :H].T, w1[:, H:].T], axis=1).astype(jnp.bfloat16)
    wa_t = jnp.asarray(wa.T, jnp.bfloat16)                     # (P, P)
    w2_t = jnp.asarray(w2.T, jnp.bfloat16)                     # (2P, P)
    wo_t = jnp.asarray(wo.T, jnp.bfloat16)                     # (P, O)
    bias = jnp.stack([b1, ba, b2]).astype(jnp.float32)         # (3, P)
    bo_r = bo.reshape(1, O).astype(jnp.float32)

    raw = 4 * (g.size + B * T * (6 * P + T + O)) + sum(
        int(a.size) * a.dtype.itemsize
        for a in (w1cat, wa_t, w2_t, wo_t, bias, bo_r))

    vmem = pl.BlockSpec(memory_space=pltpu.MemorySpace.VMEM)
    return pl.pallas_call(
        functools.partial(fused_head_kernel, P),
        out_shape=jax.ShapeDtypeStruct((B, T, O), jnp.float32),
        in_specs=[vmem] * 7,
        out_specs=vmem,
        compiler_params=pltpu.CompilerParams(
            vmem_limit_bytes=_vmem_limit_bytes(raw)),
    )(g, w1cat, wa_t, w2_t, wo_t, bias, bo_r)


# ----------------------------------------------------------------------------
# Full model forward (two fused Pallas kernels, trivial glue in the wrapper).
# ----------------------------------------------------------------------------
def forward(embeds, is_pred, is_target, params):
    x = jnp.concatenate([embeds, is_pred, is_target], axis=2)   # (B, T, dim_in)
    gru_out = bigru_forward(x, params["gru"])                   # (B, T, dim_u)
    # PyTorch module returns a list of per-predicate (T, dim_out) log-probs;
    # here they are returned stacked as (B, T, dim_out).
    return fused_head(gru_out, params["w1"], params["b1"],
                      params["wa"], params["ba"],
                      params["w2"], params["b2"],
                      params["wo"], params["bo"])


# ----------------------------------------------------------------------------
# Deterministic parameter init (PyTorch-style uniform(-1/sqrt(fan), 1/sqrt(fan))).
# ----------------------------------------------------------------------------
def init_params(key, dim_in, dim_u, dim_pool, dim_out, depth):
    keys = list(jax.random.split(key, 4 * depth + 8))

    def uni(shape, fan):
        k = keys.pop(0)
        b = 1.0 / math.sqrt(fan)
        return jax.random.uniform(k, shape, jnp.float32, -b, b)

    gru = []
    d = dim_in
    for _ in range(depth):
        gru.append((uni((3 * dim_u, d), dim_u),       # weight_ih (3H, D)
                    uni((3 * dim_u, dim_u), dim_u),   # weight_hh (3H, H)
                    uni((3 * dim_u,), dim_u),         # bias_ih
                    uni((3 * dim_u,), dim_u)))        # bias_hh
        d = dim_u

    return {
        "gru": gru,
        "w1": uni((dim_pool, 2 * dim_u), 2 * dim_u),
        "b1": uni((dim_pool,), 2 * dim_u),
        "wa": uni((dim_pool, dim_pool), dim_pool),
        "ba": uni((dim_pool,), dim_pool),
        "w2": uni((dim_pool, 2 * dim_pool), 2 * dim_pool),
        "b2": uni((dim_pool,), 2 * dim_pool),
        "wo": uni((dim_out, dim_pool), dim_pool),
        "bo": uni((dim_out,), dim_pool),
    }


if __name__ == "__main__":
    B, T = 4, 8                       # batch of predicates, sequence length
    dim_emb = 30
    dim_in = dim_emb + 1 + 1          # embeds ++ is_pred ++ is_target
    dim_u, dim_pool, depth, dim_out = 32, 32, 2, 16

    key = jax.random.PRNGKey(0)
    k1, k2, k3, kp = jax.random.split(key, 4)
    embeds = jax.random.normal(k1, (B, T, dim_emb), jnp.float32)
    is_pred = (jax.random.uniform(k2, (B, T, 1)) > 0.5).astype(jnp.float32)
    is_target = (jax.random.uniform(k3, (B, T, 1)) > 0.5).astype(jnp.float32)
    params = init_params(kp, dim_in, dim_u, dim_pool, dim_out, depth)

    out = jax.jit(forward)(embeds, is_pred, is_target, params)
    jax.block_until_ready(out)
    assert out.shape == (B, T, dim_out)
    assert bool(jnp.all(jnp.isfinite(out)))
    print("KERNEL_OK")
</pallas_src>

<mosaic_0001>
module attributes {stable_mosaic.version = 11 : i64} {
  func.func @fused_gru_kernel(%arg0: memref<8x4x32xf32, #tpu.memory_space<vmem>>, %arg1: memref<32x96xbf16, #tpu.memory_space<vmem>>, %arg2: memref<32x96xf32, #tpu.memory_space<vmem>>, %arg3: memref<2x96xf32, #tpu.memory_space<vmem>>, %arg4: memref<32x96xbf16, #tpu.memory_space<vmem>>, %arg5: memref<32x96xf32, #tpu.memory_space<vmem>>, %arg6: memref<2x96xf32, #tpu.memory_space<vmem>>, %arg7: memref<8x4x32xf32, #tpu.memory_space<vmem>>, %arg8: memref<8x4x32xf32, #tpu.memory_space<vmem>>, %arg9: memref<8x4x96xf32, #tpu.memory_space<vmem>>) attributes {dimension_semantics = [], scalar_prefetch = 0 : i64, scratch_operands = 2 : i64, tpu.core_type = #tpu.core_type<tc>} {
    %c0 = arith.constant 0 : index
    %c0_0 = arith.constant 0 : index
    %c0_1 = arith.constant 0 : index
    %0 = vector.load %arg0[%c0, %c0_0, %c0_1] : memref<8x4x32xf32, #tpu.memory_space<vmem>>, vector<8x4x32xf32>
    %1 = arith.truncf %0 : vector<8x4x32xf32> to vector<8x4x32xbf16>
    %c0_2 = arith.constant 0 : index
    %c0_3 = arith.constant 0 : index
    %2 = vector.load %arg1[%c0_2, %c0_3] : memref<32x96xbf16, #tpu.memory_space<vmem>>, vector<32x96xbf16>
    "tpu.trace_start"() <{level = 10 : i32, message = "tbd,dh->tbh"}> : () -> ()
    %cst = arith.constant dense<0.000000e+00> : vector<8x4x96xf32>
    %3 = tpu.matmul %1, %2, %cst {dimension_numbers = #tpu.dot_dimension_numbers<[2], [0], [0, 1], [1], [0, 0, 0, 1, 1, 1], [], []>} : vector<8x4x32xbf16>, vector<32x96xbf16>, vector<8x4x96xf32> -> vector<8x4x96xf32>
    "tpu.trace_stop"() : () -> ()
    %c0_4 = arith.constant 0 : index
    %c0_5 = arith.constant 0 : index
    %4 = vector.load %arg3[%c0_4, %c0_5] : memref<2x96xf32, #tpu.memory_space<vmem>>, vector<1x96xf32>
    %5 = vector.shape_cast %4 : vector<1x96xf32> to vector<1x1x96xf32>
    %6 = vector.broadcast %5 : vector<1x1x96xf32> to vector<8x4x96xf32>
    %7 = arith.addf %3, %6 : vector<8x4x96xf32>
    %c0_6 = arith.constant 0 : index
    %c0_7 = arith.constant 0 : index
    %c0_8 = arith.constant 0 : index
    %8 = vector.load %arg9[%c0_6, %c0_7, %c0_8] : memref<8x4x96xf32, #tpu.memory_space<vmem>>, vector<8x4x96xf32>
    tpu.vector_store %arg9[%c0_6, %c0_7, %c0_8], %7 {strides = array<i32>} : memref<8x4x96xf32, #tpu.memory_space<vmem>>, vector<8x4x96xf32>,
    %c0_9 = arith.constant 0 : index
    %c0_10 = arith.constant 0 : index
    %9 = vector.load %arg2[%c0_9, %c0_10] : memref<32x96xf32, #tpu.memory_space<vmem>>, vector<32x96xf32>
    %c1 = arith.constant 1 : index
    %c0_11 = arith.constant 0 : index
    %10 = vector.load %arg3[%c1, %c0_11] : memref<2x96xf32, #tpu.memory_space<vmem>>, vector<1x96xf32>
    %cst_12 = arith.constant 0.000000e+00 : f32
    %11 = vector.broadcast %cst_12 : f32 to vector<4x32xf32>
    %c0_i32 = arith.constant 0 : i32
    %cst_13 = arith.constant dense<0.000000e+00> : vector<4x96xf32>
    %12 = tpu.matmul %11, %9, %cst_13 {dimension_numbers = #tpu.dot_dimension_numbers<[1], [0], [0], [1], [0, 0, 1, 1], [], []>} : vector<4x32xf32>, vector<32x96xf32>, vector<4x96xf32> -> vector<4x96xf32>
    %13 = vector.broadcast %10 : vector<1x96xf32> to vector<4x96xf32>
    %14 = arith.addf %12, %13 : vector<4x96xf32>
    %15 = arith.index_cast %c0_i32 : i32 to index
    %c0_14 = arith.constant 0 : index
    %c0_15 = arith.constant 0 : index
    %16 = vector.load %arg9[%15, %c0_14, %c0_15] : memref<8x4x96xf32, #tpu.memory_space<vmem>>, vector<1x4x96xf32>
    %17 = vector.shape_cast %16 : vector<1x4x96xf32> to vector<4x96xf32>
    %18 = vector.extract_strided_slice %17 {offsets = [0, 0], sizes = [4, 32], strides = [1, 1]} : vector<4x96xf32> to vector<4x32xf32>
    %19 = vector.extract_strided_slice %14 {offsets = [0, 0], sizes = [4, 32], strides = [1, 1]} : vector<4x96xf32> to vector<4x32xf32>
    %20 = arith.addf %18, %19 : vector<4x32xf32>
    %21 = arith.negf %20 : vector<4x32xf32>
    %22 = math.exp %21 : vector<4x32xf32>
    %cst_16 = arith.constant 1.000000e+00 : f32
    %23 = vector.broadcast %cst_16 : f32 to vector<4x32xf32>
    %24 = arith.addf %23, %22 : vector<4x32xf32>
    %25 = arith.divf %23, %24 : vector<4x32xf32>
    %26 = vector.extract_strided_slice %17 {offsets = [0, 32], sizes = [4, 32], strides = [1, 1]} : vector<4x96xf32> to vector<4x32xf32>
    %27 = vector.extract_strided_slice %14 {offsets = [0, 32], sizes = [4, 32], strides = [1, 1]} : vector<4x96xf32> to vector<4x32xf32>
    %28 = arith.addf %26, %27 : vector<4x32xf32>
    %29 = arith.negf %28 : vector<4x32xf32>
    %30 = math.exp %29 : vector<4x32xf32>
    %cst_17 = arith.constant 1.000000e+00 : f32
    %31 = vector.broadcast %cst_17 : f32 to vector<4x32xf32>
    %32 = arith.addf %31, %30 : vector<4x32xf32>
    %33 = arith.divf %31, %32 : vector<4x32xf32>
    %34 = vector.extract_strided_slice %17 {offsets = [0, 64], sizes = [4, 32], strides = [1, 1]} : vector<4x96xf32> to vector<4x32xf32>
    %35 = vector.extract_strided_slice %14 {offsets = [0, 64], sizes = [4, 32], strides = [1, 1]} : vector<4x96xf32> to vector<4x32xf32>
    %36 = arith.mulf %25, %35 : vector<4x32xf32>
    %37 = arith.addf %34, %36 : vector<4x32xf32>
    %38 = math.tanh %37 : vector<4x32xf32>
    %cst_18 = arith.constant 1.000000e+00 : f32
    %39 = vector.broadcast %cst_18 : f32 to vector<4x32xf32>
    %40 = arith.subf %39, %33 : vector<4x32xf32>
    %41 = arith.mulf %40, %38 : vector<4x32xf32>
    %42 = arith.mulf %33, %11 : vector<4x32xf32>
    %43 = arith.addf %41, %42 : vector<4x32xf32>
    %44 = arith.index_cast %c0_i32 : i32 to index
    %c0_19 = arith.constant 0 : index
    %c0_20 = arith.constant 0 : index
    %45 = vector.load %arg8[%44, %c0_19, %c0_20] : memref<8x4x32xf32, #tpu.memory_space<vmem>>, vector<1x4x32xf32>
    %46 = vector.shape_cast %45 : vector<1x4x32xf32> to vector<4x32xf32>
    %47 = vector.shape_cast %43 : vector<4x32xf32> to vector<1x4x32xf32>
    tpu.vector_store %arg8[%44, %c0_19, %c0_20], %47 {strides = array<i32>} : memref<8x4x32xf32, #tpu.memory_space<vmem>>, vector<1x4x32xf32>,
    %c1_i32 = arith.constant 1 : i32
    %cst_21 = arith.constant dense<0.000000e+00> : vector<4x96xf32>
    %48 = tpu.matmul %43, %9, %cst_21 {dimension_numbers = #tpu.dot_dimension_numbers<[1], [0], [0], [1], [0, 0, 1, 1], [], []>} : vector<4x32xf32>, vector<32x96xf32>, vector<4x96xf32> -> vector<4x96xf32>
    %49 = vector.broadcast %10 : vector<1x96xf32> to vector<4x96xf32>
    %50 = arith.addf %48, %49 : vector<4x96xf32>
    %51 = arith.index_cast %c1_i32 : i32 to index
    %c0_22 = arith.constant 0 : index
    %c0_23 = arith.constant 0 : index
    %52 = vector.load %arg9[%51, %c0_22, %c0_23] : memref<8x4x96xf32, #tpu.memory_space<vmem>>, vector<1x4x96xf32>
    %53 = vector.shape_cast %52 : vector<1x4x96xf32> to vector<4x96xf32>
    %54 = vector.extract_strided_slice %53 {offsets = [0, 0], sizes = [4, 32], strides = [1, 1]} : vector<4x96xf32> to vector<4x32xf32>
    %55 = vector.extract_strided_slice %50 {offsets = [0, 0], sizes = [4, 32], strides = [1, 1]} : vector<4x96xf32> to vector<4x32xf32>
    %56 = arith.addf %54, %55 : vector<4x32xf32>
    %57 = arith.negf %56 : vector<4x32xf32>
    %58 = math.exp %57 : vector<4x32xf32>
    %cst_24 = arith.constant 1.000000e+00 : f32
    %59 = vector.broadcast %cst_24 : f32 to vector<4x32xf32>
    %60 = arith.addf %59, %58 : vector<4x32xf32>
    %61 = arith.divf %59, %60 : vector<4x32xf32>
    %62 = vector.extract_strided_slice %53 {offsets = [0, 32], sizes = [4, 32], strides = [1, 1]} : vector<4x96xf32> to vector<4x32xf32>
    %63 = vector.extract_strided_slice %50 {offsets = [0, 32], sizes = [4, 32], strides = [1, 1]} : vector<4x96xf32> to vector<4x32xf32>
    %64 = arith.addf %62, %63 : vector<4x32xf32>
    %65 = arith.negf %64 : vector<4x32xf32>
    %66 = math.exp %65 : vector<4x32xf32>
    %cst_25 = arith.constant 1.000000e+00 : f32
    %67 = vector.broadcast %cst_25 : f32 to vector<4x32xf32>
    %68 = arith.addf %67, %66 : vector<4x32xf32>
    %69 = arith.divf %67, %68 : vector<4x32xf32>
    %70 = vector.extract_strided_slice %53 {offsets = [0, 64], sizes = [4, 32], strides = [1, 1]} : vector<4x96xf32> to vector<4x32xf32>
    %71 = vector.extract_strided_slice %50 {offsets = [0, 64], sizes = [4, 32], strides = [1, 1]} : vector<4x96xf32> to vector<4x32xf32>
    %72 = arith.mulf %61, %71 : vector<4x32xf32>
    %73 = arith.addf %70, %72 : vector<4x32xf32>
    %74 = math.tanh %73 : vector<4x32xf32>
    %cst_26 = arith.constant 1.000000e+00 : f32
    %75 = vector.broadcast %cst_26 : f32 to vector<4x32xf32>
    %76 = arith.subf %75, %69 : vector<4x32xf32>
    %77 = arith.mulf %76, %74 : vector<4x32xf32>
    %78 = arith.mulf %69, %43 : vector<4x32xf32>
    %79 = arith.addf %77, %78 : vector<4x32xf32>
    %80 = arith.index_cast %c1_i32 : i32 to index
    %c0_27 = arith.constant 0 : index
    %c0_28 = arith.constant 0 : index
    %81 = vector.load %arg8[%80, %c0_27, %c0_28] : memref<8x4x32xf32, #tpu.memory_space<vmem>>, vector<1x4x32xf32>
    %82 = vector.shape_cast %81 : vector<1x4x32xf32> to vector<4x32xf32>
    %83 = vector.shape_cast %79 : vector<4x32xf32> to vector<1x4x32xf32>
    tpu.vector_store %arg8[%80, %c0_27, %c0_28], %83 {strides = array<i32>} : memref<8x4x32xf32, #tpu.memory_space<vmem>>, vector<1x4x32xf32>,
    %c2_i32 = arith.constant 2 : i32
    %cst_29 = arith.constant dense<0.000000e+00> : vector<4x96xf32>
    %84 = tpu.matmul %79, %9, %cst_29 {dimension_numbers = #tpu.dot_dimension_numbers<[1], [0], [0], [1], [0, 0, 1, 1], [], []>} : vector<4x32xf32>, vector<32x96xf32>, vector<4x96xf32> -> vector<4x96xf32>
    %85 = vector.broadcast %10 : vector<1x96xf32> to vector<4x96xf32>
    %86 = arith.addf %84, %85 : vector<4x96xf32>
    %87 = arith.index_cast %c2_i32 : i32 to index
    %c0_30 = arith.constant 0 : index
    %c0_31 = arith.constant 0 : index
    %88 = vector.load %arg9[%87, %c0_30, %c0_31] : memref<8x4x96xf32, #tpu.memory_space<vmem>>, vector<1x4x96xf32>
    %89 = vector.shape_cast %88 : vector<1x4x96xf32> to vector<4x96xf32>
    %90 = vector.extract_strided_slice %89 {offsets = [0, 0], sizes = [4, 32], strides = [1, 1]} : vector<4x96xf32> to vector<4x32xf32>
    %91 = vector.extract_strided_slice %86 {offsets = [0, 0], sizes = [4, 32], strides = [1, 1]} : vector<4x96xf32> to vector<4x32xf32>
    %92 = arith.addf %90, %91 : vector<4x32xf32>
    %93 = arith.negf %92 : vector<4x32xf32>
    %94 = math.exp %93 : vector<4x32xf32>
    %cst_32 = arith.constant 1.000000e+00 : f32
    %95 = vector.broadcast %cst_32 : f32 to vector<4x32xf32>
    %96 = arith.addf %95, %94 : vector<4x32xf32>
    %97 = arith.divf %95, %96 : vector<4x32xf32>
    %98 = vector.extract_strided_slice %89 {offsets = [0, 32], sizes = [4, 32], strides = [1, 1]} : vector<4x96xf32> to vector<4x32xf32>
    %99 = vector.extract_strided_slice %86 {offsets = [0, 32], sizes = [4, 32], strides = [1, 1]} : vector<4x96xf32> to vector<4x32xf32>
    %100 = arith.addf %98, %99 : vector<4x32xf32>
    %101 = arith.negf %100 : vector<4x32xf32>
    %102 = math.exp %101 : vector<4x32xf32>
    %cst_33 = arith.constant 1.000000e+00 : f32
    %103 = vector.broadcast %cst_33 : f32 to vector<4x32xf32>
    %104 = arith.addf %103, %102 : vector<4x32xf32>
    %105 = arith.divf %103, %104 : vector<4x32xf32>
    %106 = vector.extract_strided_slice %89 {offsets = [0, 64], sizes = [4, 32], strides = [1, 1]} : vector<4x96xf32> to vector<4x32xf32>
    %107 = vector.extract_strided_slice %86 {offsets = [0, 64], sizes = [4, 32], strides = [1, 1]} : vector<4x96xf32> to vector<4x32xf32>
    %108 = arith.mulf %97, %107 : vector<4x32xf32>
    %109 = arith.addf %106, %108 : vector<4x32xf32>
    %110 = math.tanh %109 : vector<4x32xf32>
    %cst_34 = arith.constant 1.000000e+00 : f32
    %111 = vector.broadcast %cst_34 : f32 to vector<4x32xf32>
    %112 = arith.subf %111, %105 : vector<4x32xf32>
    %113 = arith.mulf %112, %110 : vector<4x32xf32>
    %114 = arith.mulf %105, %79 : vector<4x32xf32>
    %115 = arith.addf %113, %114 : vector<4x32xf32>
    %116 = arith.index_cast %c2_i32 : i32 to index
    %c0_35 = arith.constant 0 : index
    %c0_36 = arith.constant 0 : index
    %117 = vector.load %arg8[%116, %c0_35, %c0_36] : memref<8x4x32xf32, #tpu.memory_space<vmem>>, vector<1x4x32xf32>
    %118 = vector.shape_cast %117 : vector<1x4x32xf32> to vector<4x32xf32>
    %119 = vector.shape_cast %115 : vector<4x32xf32> to vector<1x4x32xf32>
    tpu.vector_store %arg8[%116, %c0_35, %c0_36], %119 {strides = array<i32>} : memref<8x4x32xf32, #tpu.memory_space<vmem>>, vector<1x4x32xf32>,
    %c3_i32 = arith.constant 3 : i32
    %cst_37 = arith.constant dense<0.000000e+00> : vector<4x96xf32>
    %120 = tpu.matmul %115, %9, %cst_37 {dimension_numbers = #tpu.dot_dimension_numbers<[1], [0], [0], [1], [0, 0, 1, 1], [], []>} : vector<4x32xf32>, vector<32x96xf32>, vector<4x96xf32> -> vector<4x96xf32>
    %121 = vector.broadcast %10 : vector<1x96xf32> to vector<4x96xf32>
    %122 = arith.addf %120, %121 : vector<4x96xf32>
    %123 = arith.index_cast %c3_i32 : i32 to index
    %c0_38 = arith.constant 0 : index
    %c0_39 = arith.constant 0 : index
    %124 = vector.load %arg9[%123, %c0_38, %c0_39] : memref<8x4x96xf32, #tpu.memory_space<vmem>>, vector<1x4x96xf32>
    %125 = vector.shape_cast %124 : vector<1x4x96xf32> to vector<4x96xf32>
    %126 = vector.extract_strided_slice %125 {offsets = [0, 0], sizes = [4, 32], strides = [1, 1]} : vector<4x96xf32> to vector<4x32xf32>
    %127 = vector.extract_strided_slice %122 {offsets = [0, 0], sizes = [4, 32], strides = [1, 1]} : vector<4x96xf32> to vector<4x32xf32>
    %128 = arith.addf %126, %127 : vector<4x32xf32>
    %129 = arith.negf %128 : vector<4x32xf32>
    %130 = math.exp %129 : vector<4x32xf32>
    %cst_40 = arith.constant 1.000000e+00 : f32
    %131 = vector.broadcast %cst_40 : f32 to vector<4x32xf32>
    %132 = arith.addf %131, %130 : vector<4x32xf32>
    %133 = arith.divf %131, %132 : vector<4x32xf32>
    %134 = vector.extract_strided_slice %125 {offsets = [0, 32], sizes = [4, 32], strides = [1, 1]} : vector<4x96xf32> to vector<4x32xf32>
    %135 = vector.extract_strided_slice %122 {offsets = [0, 32], sizes = [4, 32], strides = [1, 1]} : vector<4x96xf32> to vector<4x32xf32>
    %136 = arith.addf %134, %135 : vector<4x32xf32>
    %137 = arith.negf %136 : vector<4x32xf32>
    %138 = math.exp %137 : vector<4x32xf32>
    %cst_41 = arith.constant 1.000000e+00 : f32
    %139 = vector.broadcast %cst_41 : f32 to vector<4x32xf32>
    %140 = arith.addf %139, %138 : vector<4x32xf32>
    %141 = arith.divf %139, %140 : vector<4x32xf32>
    %142 = vector.extract_strided_slice %125 {offsets = [0, 64], sizes = [4, 32], strides = [1, 1]} : vector<4x96xf32> to vector<4x32xf32>
    %143 = vector.extract_strided_slice %122 {offsets = [0, 64], sizes = [4, 32], strides = [1, 1]} : vector<4x96xf32> to vector<4x32xf32>
    %144 = arith.mulf %133, %143 : vector<4x32xf32>
    %145 = arith.addf %142, %144 : vector<4x32xf32>
    %146 = math.tanh %145 : vector<4x32xf32>
    %cst_42 = arith.constant 1.000000e+00 : f32
    %147 = vector.broadcast %cst_42 : f32 to vector<4x32xf32>
    %148 = arith.subf %147, %141 : vector<4x32xf32>
    %149 = arith.mulf %148, %146 : vector<4x32xf32>
    %150 = arith.mulf %141, %115 : vector<4x32xf32>
    %151 = arith.addf %149, %150 : vector<4x32xf32>
    %152 = arith.index_cast %c3_i32 : i32 to index
    %c0_43 = arith.constant 0 : index
    %c0_44 = arith.constant 0 : index
    %153 = vector.load %arg8[%152, %c0_43, %c0_44] : memref<8x4x32xf32, #tpu.memory_space<vmem>>, vector<1x4x32xf32>
    %154 = vector.shape_cast %153 : vector<1x4x32xf32> to vector<4x32xf32>
    %155 = vector.shape_cast %151 : vector<4x32xf32> to vector<1x4x32xf32>
    tpu.vector_store %arg8[%152, %c0_43, %c0_44], %155 {strides = array<i32>} : memref<8x4x32xf32, #tpu.memory_space<vmem>>, vector<1x4x32xf32>,
    %c4_i32 = arith.constant 4 : i32
    %cst_45 = arith.constant dense<0.000000e+00> : vector<4x96xf32>
    %156 = tpu.matmul %151, %9, %cst_45 {dimension_numbers = #tpu.dot_dimension_numbers<[1], [0], [0], [1], [0, 0, 1, 1], [], []>} : vector<4x32xf32>, vector<32x96xf32>, vector<4x96xf32> -> vector<4x96xf32>
    %157 = vector.broadcast %10 : vector<1x96xf32> to vector<4x96xf32>
    %158 = arith.addf %156, %157 : vector<4x96xf32>
    %159 = arith.index_cast %c4_i32 : i32 to index
    %c0_46 = arith.constant 0 : index
    %c0_47 = arith.constant 0 : index
    %160 = vector.load %arg9[%159, %c0_46, %c0_47] : memref<8x4x96xf32, #tpu.memory_space<vmem>>, vector<1x4x96xf32>
    %161 = vector.shape_cast %160 : vector<1x4x96xf32> to vector<4x96xf32>
    %162 = vector.extract_strided_slice %161 {offsets = [0, 0], sizes = [4, 32], strides = [1, 1]} : vector<4x96xf32> to vector<4x32xf32>
    %163 = vector.extract_strided_slice %158 {offsets = [0, 0], sizes = [4, 32], strides = [1, 1]} : vector<4x96xf32> to vector<4x32xf32>
    %164 = arith.addf %162, %163 : vector<4x32xf32>
    %165 = arith.negf %164 : vector<4x32xf32>
    %166 = math.exp %165 : vector<4x32xf32>
    %cst_48 = arith.constant 1.000000e+00 : f32
    %167 = vector.broadcast %cst_48 : f32 to vector<4x32xf32>
    %168 = arith.addf %167, %166 : vector<4x32xf32>
    %169 = arith.divf %167, %168 : vector<4x32xf32>
    %170 = vector.extract_strided_slice %161 {offsets = [0, 32], sizes = [4, 32], strides = [1, 1]} : vector<4x96xf32> to vector<4x32xf32>
    %171 = vector.extract_strided_slice %158 {offsets = [0, 32], sizes = [4, 32], strides = [1, 1]} : vector<4x96xf32> to vector<4x32xf32>
    %172 = arith.addf %170, %171 : vector<4x32xf32>
    %173 = arith.negf %172 : vector<4x32xf32>
    %174 = math.exp %173 : vector<4x32xf32>
    %cst_49 = arith.constant 1.000000e+00 : f32
    %175 = vector.broadcast %cst_49 : f32 to vector<4x32xf32>
    %176 = arith.addf %175, %174 : vector<4x32xf32>
    %177 = arith.divf %175, %176 : vector<4x32xf32>
    %178 = vector.extract_strided_slice %161 {offsets = [0, 64], sizes = [4, 32], strides = [1, 1]} : vector<4x96xf32> to vector<4x32xf32>
    %179 = vector.extract_strided_slice %158 {offsets = [0, 64], sizes = [4, 32], strides = [1, 1]} : vector<4x96xf32> to vector<4x32xf32>
    %180 = arith.mulf %169, %179 : vector<4x32xf32>
    %181 = arith.addf %178, %180 : vector<4x32xf32>
    %182 = math.tanh %181 : vector<4x32xf32>
    %cst_50 = arith.constant 1.000000e+00 : f32
    %183 = vector.broadcast %cst_50 : f32 to vector<4x32xf32>
    %184 = arith.subf %183, %177 : vector<4x32xf32>
    %185 = arith.mulf %184, %182 : vector<4x32xf32>
    %186 = arith.mulf %177, %151 : vector<4x32xf32>
    %187 = arith.addf %185, %186 : vector<4x32xf32>
    %188 = arith.index_cast %c4_i32 : i32 to index
    %c0_51 = arith.constant 0 : index
    %c0_52 = arith.constant 0 : index
    %189 = vector.load %arg8[%188, %c0_51, %c0_52] : memref<8x4x32xf32, #tpu.memory_space<vmem>>, vector<1x4x32xf32>
    %190 = vector.shape_cast %189 : vector<1x4x32xf32> to vector<4x32xf32>
    %191 = vector.shape_cast %187 : vector<4x32xf32> to vector<1x4x32xf32>
    tpu.vector_store %arg8[%188, %c0_51, %c0_52], %191 {strides = array<i32>} : memref<8x4x32xf32, #tpu.memory_space<vmem>>, vector<1x4x32xf32>,
    %c5_i32 = arith.constant 5 : i32
    %cst_53 = arith.constant dense<0.000000e+00> : vector<4x96xf32>
    %192 = tpu.matmul %187, %9, %cst_53 {dimension_numbers = #tpu.dot_dimension_numbers<[1], [0], [0], [1], [0, 0, 1, 1], [], []>} : vector<4x32xf32>, vector<32x96xf32>, vector<4x96xf32> -> vector<4x96xf32>
    %193 = vector.broadcast %10 : vector<1x96xf32> to vector<4x96xf32>
    %194 = arith.addf %192, %193 : vector<4x96xf32>
    %195 = arith.index_cast %c5_i32 : i32 to index
    %c0_54 = arith.constant 0 : index
    %c0_55 = arith.constant 0 : index
    %196 = vector.load %arg9[%195, %c0_54, %c0_55] : memref<8x4x96xf32, #tpu.memory_space<vmem>>, vector<1x4x96xf32>
    %197 = vector.shape_cast %196 : vector<1x4x96xf32> to vector<4x96xf32>
    %198 = vector.extract_strided_slice %197 {offsets = [0, 0], sizes = [4, 32], strides = [1, 1]} : vector<4x96xf32> to vector<4x32xf32>
    %199 = vector.extract_strided_slice %194 {offsets = [0, 0], sizes = [4, 32], strides = [1, 1]} : vector<4x96xf32> to vector<4x32xf32>
    %200 = arith.addf %198, %199 : vector<4x32xf32>
    %201 = arith.negf %200 : vector<4x32xf32>
    %202 = math.exp %201 : vector<4x32xf32>
    %cst_56 = arith.constant 1.000000e+00 : f32
    %203 = vector.broadcast %cst_56 : f32 to vector<4x32xf32>
    %204 = arith.addf %203, %202 : vector<4x32xf32>
    %205 = arith.divf %203, %204 : vector<4x32xf32>
    %206 = vector.extract_strided_slice %197 {offsets = [0, 32], sizes = [4, 32], strides = [1, 1]} : vector<4x96xf32> to vector<4x32xf32>
    %207 = vector.extract_strided_slice %194 {offsets = [0, 32], sizes = [4, 32], strides = [1, 1]} : vector<4x96xf32> to vector<4x32xf32>
    %208 = arith.addf %206, %207 : vector<4x32xf32>
    %209 = arith.negf %208 : vector<4x32xf32>
    %210 = math.exp %209 : vector<4x32xf32>
    %cst_57 = arith.constant 1.000000e+00 : f32
    %211 = vector.broadcast %cst_57 : f32 to vector<4x32xf32>
    %212 = arith.addf %211, %210 : vector<4x32xf32>
    %213 = arith.divf %211, %212 : vector<4x32xf32>
    %214 = vector.extract_strided_slice %197 {offsets = [0, 64], sizes = [4, 32], strides = [1, 1]} : vector<4x96xf32> to vector<4x32xf32>
    %215 = vector.extract_strided_slice %194 {offsets = [0, 64], sizes = [4, 32], strides = [1, 1]} : vector<4x96xf32> to vector<4x32xf32>
    %216 = arith.mulf %205, %215 : vector<4x32xf32>
    %217 = arith.addf %214, %216 : vector<4x32xf32>
    %218 = math.tanh %217 : vector<4x32xf32>
    %cst_58 = arith.constant 1.000000e+00 : f32
    %219 = vector.broadcast %cst_58 : f32 to vector<4x32xf32>
    %220 = arith.subf %219, %213 : vector<4x32xf32>
    %221 = arith.mulf %220, %218 : vector<4x32xf32>
    %222 = arith.mulf %213, %187 : vector<4x32xf32>
    %223 = arith.addf %221, %222 : vector<4x32xf32>
    %224 = arith.index_cast %c5_i32 : i32 to index
    %c0_59 = arith.constant 0 : index
    %c0_60 = arith.constant 0 : index
    %225 = vector.load %arg8[%224, %c0_59, %c0_60] : memref<8x4x32xf32, #tpu.memory_space<vmem>>, vector<1x4x32xf32>
    %226 = vector.shape_cast %225 : vector<1x4x32xf32> to vector<4x32xf32>
    %227 = vector.shape_cast %223 : vector<4x32xf32> to vector<1x4x32xf32>
    tpu.vector_store %arg8[%224, %c0_59, %c0_60], %227 {strides = array<i32>} : memref<8x4x32xf32, #tpu.memory_space<vmem>>, vector<1x4x32xf32>,
    %c6_i32 = arith.constant 6 : i32
    %cst_61 = arith.constant dense<0.000000e+00> : vector<4x96xf32>
    %228 = tpu.matmul %223, %9, %cst_61 {dimension_numbers = #tpu.dot_dimension_numbers<[1], [0], [0], [1], [0, 0, 1, 1], [], []>} : vector<4x32xf32>, vector<32x96xf32>, vector<4x96xf32> -> vector<4x96xf32>
    %229 = vector.broadcast %10 : vector<1x96xf32> to vector<4x96xf32>
    %230 = arith.addf %228, %229 : vector<4x96xf32>
    %231 = arith.index_cast %c6_i32 : i32 to index
    %c0_62 = arith.constant 0 : index
    %c0_63 = arith.constant 0 : index
    %232 = vector.load %arg9[%231, %c0_62, %c0_63] : memref<8x4x96xf32, #tpu.memory_space<vmem>>, vector<1x4x96xf32>
    %233 = vector.shape_cast %232 : vector<1x4x96xf32> to vector<4x96xf32>
    %234 = vector.extract_strided_slice %233 {offsets = [0, 0], sizes = [4, 32], strides = [1, 1]} : vector<4x96xf32> to vector<4x32xf32>
    %235 = vector.extract_strided_slice %230 {offsets = [0, 0], sizes = [4, 32], strides = [1, 1]} : vector<4x96xf32> to vector<4x32xf32>
    %236 = arith.addf %234, %235 : vector<4x32xf32>
    %237 = arith.negf %236 : vector<4x32xf32>
    %238 = math.exp %237 : vector<4x32xf32>
    %cst_64 = arith.constant 1.000000e+00 : f32
    %239 = vector.broadcast %cst_64 : f32 to vector<4x32xf32>
    %240 = arith.addf %239, %238 : vector<4x32xf32>
    %241 = arith.divf %239, %240 : vector<4x32xf32>
    %242 = vector.extract_strided_slice %233 {offsets = [0, 32], sizes = [4, 32], strides = [1, 1]} : vector<4x96xf32> to vector<4x32xf32>
    %243 = vector.extract_strided_slice %230 {offsets = [0, 32], sizes = [4, 32], strides = [1, 1]} : vector<4x96xf32> to vector<4x32xf32>
    %244 = arith.addf %242, %243 : vector<4x32xf32>
    %245 = arith.negf %244 : vector<4x32xf32>
    %246 = math.exp %245 : vector<4x32xf32>
    %cst_65 = arith.constant 1.000000e+00 : f32
    %247 = vector.broadcast %cst_65 : f32 to vector<4x32xf32>
    %248 = arith.addf %247, %246 : vector<4x32xf32>
    %249 = arith.divf %247, %248 : vector<4x32xf32>
    %250 = vector.extract_strided_slice %233 {offsets = [0, 64], sizes = [4, 32], strides = [1, 1]} : vector<4x96xf32> to vector<4x32xf32>
    %251 = vector.extract_strided_slice %230 {offsets = [0, 64], sizes = [4, 32], strides = [1, 1]} : vector<4x96xf32> to vector<4x32xf32>
    %252 = arith.mulf %241, %251 : vector<4x32xf32>
    %253 = arith.addf %250, %252 : vector<4x32xf32>
    %254 = math.tanh %253 : vector<4x32xf32>
    %cst_66 = arith.constant 1.000000e+00 : f32
    %255 = vector.broadcast %cst_66 : f32 to vector<4x32xf32>
    %256 = arith.subf %255, %249 : vector<4x32xf32>
    %257 = arith.mulf %256, %254 : vector<4x32xf32>
    %258 = arith.mulf %249, %223 : vector<4x32xf32>
    %259 = arith.addf %257, %258 : vector<4x32xf32>
    %260 = arith.index_cast %c6_i32 : i32 to index
    %c0_67 = arith.constant 0 : index
    %c0_68 = arith.constant 0 : index
    %261 = vector.load %arg8[%260, %c0_67, %c0_68] : memref<8x4x32xf32, #tpu.memory_space<vmem>>, vector<1x4x32xf32>
    %262 = vector.shape_cast %261 : vector<1x4x32xf32> to vector<4x32xf32>
    %263 = vector.shape_cast %259 : vector<4x32xf32> to vector<1x4x32xf32>
    tpu.vector_store %arg8[%260, %c0_67, %c0_68], %263 {strides = array<i32>} : memref<8x4x32xf32, #tpu.memory_space<vmem>>, vector<1x4x32xf32>,
    %c7_i32 = arith.constant 7 : i32
    %cst_69 = arith.constant dense<0.000000e+00> : vector<4x96xf32>
    %264 = tpu.matmul %259, %9, %cst_69 {dimension_numbers = #tpu.dot_dimension_numbers<[1], [0], [0], [1], [0, 0, 1, 1], [], []>} : vector<4x32xf32>, vector<32x96xf32>, vector<4x96xf32> -> vector<4x96xf32>
    %265 = vector.broadcast %10 : vector<1x96xf32> to vector<4x96xf32>
    %266 = arith.addf %264, %265 : vector<4x96xf32>
    %267 = arith.index_cast %c7_i32 : i32 to index
    %c0_70 = arith.constant 0 : index
    %c0_71 = arith.constant 0 : index
    %268 = vector.load %arg9[%267, %c0_70, %c0_71] : memref<8x4x96xf32, #tpu.memory_space<vmem>>, vector<1x4x96xf32>
    %269 = vector.shape_cast %268 : vector<1x4x96xf32> to vector<4x96xf32>
    %270 = vector.extract_strided_slice %269 {offsets = [0, 0], sizes = [4, 32], strides = [1, 1]} : vector<4x96xf32> to vector<4x32xf32>
    %271 = vector.extract_strided_slice %266 {offsets = [0, 0], sizes = [4, 32], strides = [1, 1]} : vector<4x96xf32> to vector<4x32xf32>
    %272 = arith.addf %270, %271 : vector<4x32xf32>
    %273 = arith.negf %272 : vector<4x32xf32>
    %274 = math.exp %273 : vector<4x32xf32>
    %cst_72 = arith.constant 1.000000e+00 : f32
    %275 = vector.broadcast %cst_72 : f32 to vector<4x32xf32>
    %276 = arith.addf %275, %274 : vector<4x32xf32>
    %277 = arith.divf %275, %276 : vector<4x32xf32>
    %278 = vector.extract_strided_slice %269 {offsets = [0, 32], sizes = [4, 32], strides = [1, 1]} : vector<4x96xf32> to vector<4x32xf32>
    %279 = vector.extract_strided_slice %266 {offsets = [0, 32], sizes = [4, 32], strides = [1, 1]} : vector<4x96xf32> to vector<4x32xf32>
    %280 = arith.addf %278, %279 : vector<4x32xf32>
    %281 = arith.negf %280 : vector<4x32xf32>
    %282 = math.exp %281 : vector<4x32xf32>
    %cst_73 = arith.constant 1.000000e+00 : f32
    %283 = vector.broadcast %cst_73 : f32 to vector<4x32xf32>
    %284 = arith.addf %283, %282 : vector<4x32xf32>
    %285 = arith.divf %283, %284 : vector<4x32xf32>
    %286 = vector.extract_strided_slice %269 {offsets = [0, 64], sizes = [4, 32], strides = [1, 1]} : vector<4x96xf32> to vector<4x32xf32>
    %287 = vector.extract_strided_slice %266 {offsets = [0, 64], sizes = [4, 32], strides = [1, 1]} : vector<4x96xf32> to vector<4x32xf32>
    %288 = arith.mulf %277, %287 : vector<4x32xf32>
    %289 = arith.addf %286, %288 : vector<4x32xf32>
    %290 = math.tanh %289 : vector<4x32xf32>
    %cst_74 = arith.constant 1.000000e+00 : f32
    %291 = vector.broadcast %cst_74 : f32 to vector<4x32xf32>
    %292 = arith.subf %291, %285 : vector<4x32xf32>
    %293 = arith.mulf %292, %290 : vector<4x32xf32>
    %294 = arith.mulf %285, %259 : vector<4x32xf32>
    %295 = arith.addf %293, %294 : vector<4x32xf32>
    %296 = arith.index_cast %c7_i32 : i32 to index
    %c0_75 = arith.constant 0 : index
    %c0_76 = arith.constant 0 : index
    %297 = vector.load %arg8[%296, %c0_75, %c0_76] : memref<8x4x32xf32, #tpu.memory_space<vmem>>, vector<1x4x32xf32>
    %298 = vector.shape_cast %297 : vector<1x4x32xf32> to vector<4x32xf32>
    %299 = vector.shape_cast %295 : vector<4x32xf32> to vector<1x4x32xf32>
    tpu.vector_store %arg8[%296, %c0_75, %c0_76], %299 {strides = array<i32>} : memref<8x4x32xf32, #tpu.memory_space<vmem>>, vector<1x4x32xf32>,
    %c8_i32 = arith.constant 8 : i32
    %c0_77 = arith.constant 0 : index
    %c0_78 = arith.constant 0 : index
    %c0_79 = arith.constant 0 : index
    %300 = vector.load %arg8[%c0_77, %c0_78, %c0_79] : memref<8x4x32xf32, #tpu.memory_space<vmem>>, vector<8x4x32xf32>
    %301 = arith.truncf %300 : vector<8x4x32xf32> to vector<8x4x32xbf16>
    %c0_80 = arith.constant 0 : index
    %c0_81 = arith.constant 0 : index
    %302 = vector.load %arg4[%c0_80, %c0_81] : memref<32x96xbf16, #tpu.memory_space<vmem>>, vector<32x96xbf16>
    "tpu.trace_start"() <{level = 10 : i32, message = "tbd,dh->tbh"}> : () -> ()
    %cst_82 = arith.constant dense<0.000000e+00> : vector<8x4x96xf32>
    %303 = tpu.matmul %301, %302, %cst_82 {dimension_numbers = #tpu.dot_dimension_numbers<[2], [0], [0, 1], [1], [0, 0, 0, 1, 1, 1], [], []>} : vector<8x4x32xbf16>, vector<32x96xbf16>, vector<8x4x96xf32> -> vector<8x4x96xf32>
    "tpu.trace_stop"() : () -> ()
    %c0_83 = arith.constant 0 : index
    %c0_84 = arith.constant 0 : index
    %304 = vector.load %arg6[%c0_83, %c0_84] : memref<2x96xf32, #tpu.memory_space<vmem>>, vector<1x96xf32>
    %305 = vector.shape_cast %304 : vector<1x96xf32> to vector<1x1x96xf32>
    %306 = vector.broadcast %305 : vector<1x1x96xf32> to vector<8x4x96xf32>
    %307 = arith.addf %303, %306 : vector<8x4x96xf32>
    %c0_85 = arith.constant 0 : index
    %c0_86 = arith.constant 0 : index
    %c0_87 = arith.constant 0 : index
    %308 = vector.load %arg9[%c0_85, %c0_86, %c0_87] : memref<8x4x96xf32, #tpu.memory_space<vmem>>, vector<8x4x96xf32>
    tpu.vector_store %arg9[%c0_85, %c0_86, %c0_87], %307 {strides = array<i32>} : memref<8x4x96xf32, #tpu.memory_space<vmem>>, vector<8x4x96xf32>,
    %c0_88 = arith.constant 0 : index
    %c0_89 = arith.constant 0 : index
    %309 = vector.load %arg5[%c0_88, %c0_89] : memref<32x96xf32, #tpu.memory_space<vmem>>, vector<32x96xf32>
    %c1_90 = arith.constant 1 : index
    %c0_91 = arith.constant 0 : index
    %310 = vector.load %arg6[%c1_90, %c0_91] : memref<2x96xf32, #tpu.memory_space<vmem>>, vector<1x96xf32>
    %cst_92 = arith.constant 0.000000e+00 : f32
    %311 = vector.broadcast %cst_92 : f32 to vector<4x32xf32>
    %c0_i32_93 = arith.constant 0 : i32
    %c7_i32_94 = arith.constant 7 : i32
    %312 = arith.subi %c7_i32_94, %c0_i32_93 : i32
    %cst_95 = arith.constant dense<0.000000e+00> : vector<4x96xf32>
    %313 = tpu.matmul %311, %309, %cst_95 {dimension_numbers = #tpu.dot_dimension_numbers<[1], [0], [0], [1], [0, 0, 1, 1], [], []>} : vector<4x32xf32>, vector<32x96xf32>, vector<4x96xf32> -> vector<4x96xf32>
    %314 = vector.broadcast %310 : vector<1x96xf32> to vector<4x96xf32>
    %315 = arith.addf %313, %314 : vector<4x96xf32>
    %316 = arith.index_cast %312 : i32 to index
    %c0_96 = arith.constant 0 : index
    %c0_97 = arith.constant 0 : index
    %317 = vector.load %arg9[%316, %c0_96, %c0_97] : memref<8x4x96xf32, #tpu.memory_space<vmem>>, vector<1x4x96xf32>
    %318 = vector.shape_cast %317 : vector<1x4x96xf32> to vector<4x96xf32>
    %319 = vector.extract_strided_slice %318 {offsets = [0, 0], sizes = [4, 32], strides = [1, 1]} : vector<4x96xf32> to vector<4x32xf32>
    %320 = vector.extract_strided_slice %315 {offsets = [0, 0], sizes = [4, 32], strides = [1, 1]} : vector<4x96xf32> to vector<4x32xf32>
    %321 = arith.addf %319, %320 : vector<4x32xf32>
    %322 = arith.negf %321 : vector<4x32xf32>
    %323 = math.exp %322 : vector<4x32xf32>
    %cst_98 = arith.constant 1.000000e+00 : f32
    %324 = vector.broadcast %cst_98 : f32 to vector<4x32xf32>
    %325 = arith.addf %324, %323 : vector<4x32xf32>
    %326 = arith.divf %324, %325 : vector<4x32xf32>
    %327 = vector.extract_strided_slice %318 {offsets = [0, 32], sizes = [4, 32], strides = [1, 1]} : vector<4x96xf32> to vector<4x32xf32>
    %328 = vector.extract_strided_slice %315 {offsets = [0, 32], sizes = [4, 32], strides = [1, 1]} : vector<4x96xf32> to vector<4x32xf32>
    %329 = arith.addf %327, %328 : vector<4x32xf32>
    %330 = arith.negf %329 : vector<4x32xf32>
    %331 = math.exp %330 : vector<4x32xf32>
    %cst_99 = arith.constant 1.000000e+00 : f32
    %332 = vector.broadcast %cst_99 : f32 to vector<4x32xf32>
    %333 = arith.addf %332, %331 : vector<4x32xf32>
    %334 = arith.divf %332, %333 : vector<4x32xf32>
    %335 = vector.extract_strided_slice %318 {offsets = [0, 64], sizes = [4, 32], strides = [1, 1]} : vector<4x96xf32> to vector<4x32xf32>
    %336 = vector.extract_strided_slice %315 {offsets = [0, 64], sizes = [4, 32], strides = [1, 1]} : vector<4x96xf32> to vector<4x32xf32>
    %337 = arith.mulf %326, %336 : vector<4x32xf32>
    %338 = arith.addf %335, %337 : vector<4x32xf32>
    %339 = math.tanh %338 : vector<4x32xf32>
    %cst_100 = arith.constant 1.000000e+00 : f32
    %340 = vector.broadcast %cst_100 : f32 to vector<4x32xf32>
    %341 = arith.subf %340, %334 : vector<4x32xf32>
    %342 = arith.mulf %341, %339 : vector<4x32xf32>
    %343 = arith.mulf %334, %311 : vector<4x32xf32>
    %344 = arith.addf %342, %343 : vector<4x32xf32>
    %345 = arith.index_cast %312 : i32 to index
    %c0_101 = arith.constant 0 : index
    %c0_102 = arith.constant 0 : index
    %346 = vector.load %arg8[%345, %c0_101, %c0_102] : memref<8x4x32xf32, #tpu.memory_space<vmem>>, vector<1x4x32xf32>
    %347 = vector.shape_cast %346 : vector<1x4x32xf32> to vector<4x32xf32>
    %348 = arith.addf %347, %344 : vector<4x32xf32>
    %349 = arith.index_cast %312 : i32 to index
    %c0_103 = arith.constant 0 : index
    %c0_104 = arith.constant 0 : index
    %350 = vector.load %arg7[%349, %c0_103, %c0_104] : memref<8x4x32xf32, #tpu.memory_space<vmem>>, vector<1x4x32xf32>
    %351 = vector.shape_cast %350 : vector<1x4x32xf32> to vector<4x32xf32>
    %352 = vector.shape_cast %348 : vector<4x32xf32> to vector<1x4x32xf32>
    tpu.vector_store %arg7[%349, %c0_103, %c0_104], %352 {strides = array<i32>} : memref<8x4x32xf32, #tpu.memory_space<vmem>>, vector<1x4x32xf32>,
    %c1_i32_105 = arith.constant 1 : i32
    %c7_i32_106 = arith.constant 7 : i32
    %353 = arith.subi %c7_i32_106, %c1_i32_105 : i32
    %cst_107 = arith.constant dense<0.000000e+00> : vector<4x96xf32>
    %354 = tpu.matmul %344, %309, %cst_107 {dimension_numbers = #tpu.dot_dimension_numbers<[1], [0], [0], [1], [0, 0, 1, 1], [], []>} : vector<4x32xf32>, vector<32x96xf32>, vector<4x96xf32> -> vector<4x96xf32>
    %355 = vector.broadcast %310 : vector<1x96xf32> to vector<4x96xf32>
    %356 = arith.addf %354, %355 : vector<4x96xf32>
    %357 = arith.index_cast %353 : i32 to index
    %c0_108 = arith.constant 0 : index
    %c0_109 = arith.constant 0 : index
    %358 = vector.load %arg9[%357, %c0_108, %c0_109] : memref<8x4x96xf32, #tpu.memory_space<vmem>>, vector<1x4x96xf32>
    %359 = vector.shape_cast %358 : vector<1x4x96xf32> to vector<4x96xf32>
    %360 = vector.extract_strided_slice %359 {offsets = [0, 0], sizes = [4, 32], strides = [1, 1]} : vector<4x96xf32> to vector<4x32xf32>
    %361 = vector.extract_strided_slice %356 {offsets = [0, 0], sizes = [4, 32], strides = [1, 1]} : vector<4x96xf32> to vector<4x32xf32>
    %362 = arith.addf %360, %361 : vector<4x32xf32>
    %363 = arith.negf %362 : vector<4x32xf32>
    %364 = math.exp %363 : vector<4x32xf32>
    %cst_110 = arith.constant 1.000000e+00 : f32
    %365 = vector.broadcast %cst_110 : f32 to vector<4x32xf32>
    %366 = arith.addf %365, %364 : vector<4x32xf32>
    %367 = arith.divf %365, %366 : vector<4x32xf32>
    %368 = vector.extract_strided_slice %359 {offsets = [0, 32], sizes = [4, 32], strides = [1, 1]} : vector<4x96xf32> to vector<4x32xf32>
    %369 = vector.extract_strided_slice %356 {offsets = [0, 32], sizes = [4, 32], strides = [1, 1]} : vector<4x96xf32> to vector<4x32xf32>
    %370 = arith.addf %368, %369 : vector<4x32xf32>
    %371 = arith.negf %370 : vector<4x32xf32>
    %372 = math.exp %371 : vector<4x32xf32>
    %cst_111 = arith.constant 1.000000e+00 : f32
    %373 = vector.broadcast %cst_111 : f32 to vector<4x32xf32>
    %374 = arith.addf %373, %372 : vector<4x32xf32>
    %375 = arith.divf %373, %374 : vector<4x32xf32>
    %376 = vector.extract_strided_slice %359 {offsets = [0, 64], sizes = [4, 32], strides = [1, 1]} : vector<4x96xf32> to vector<4x32xf32>
    %377 = vector.extract_strided_slice %356 {offsets = [0, 64], sizes = [4, 32], strides = [1, 1]} : vector<4x96xf32> to vector<4x32xf32>
    %378 = arith.mulf %367, %377 : vector<4x32xf32>
    %379 = arith.addf %376, %378 : vector<4x32xf32>
    %380 = math.tanh %379 : vector<4x32xf32>
    %cst_112 = arith.constant 1.000000e+00 : f32
    %381 = vector.broadcast %cst_112 : f32 to vector<4x32xf32>
    %382 = arith.subf %381, %375 : vector<4x32xf32>
    %383 = arith.mulf %382, %380 : vector<4x32xf32>
    %384 = arith.mulf %375, %344 : vector<4x32xf32>
    %385 = arith.addf %383, %384 : vector<4x32xf32>
    %386 = arith.index_cast %353 : i32 to index
    %c0_113 = arith.constant 0 : index
    %c0_114 = arith.constant 0 : index
    %387 = vector.load %arg8[%386, %c0_113, %c0_114] : memref<8x4x32xf32, #tpu.memory_space<vmem>>, vector<1x4x32xf32>
    %388 = vector.shape_cast %387 : vector<1x4x32xf32> to vector<4x32xf32>
    %389 = arith.addf %388, %385 : vector<4x32xf32>
    %390 = arith.index_cast %353 : i32 to index
    %c0_115 = arith.constant 0 : index
    %c0_116 = arith.constant 0 : index
    %391 = vector.load %arg7[%390, %c0_115, %c0_116] : memref<8x4x32xf32, #tpu.memory_space<vmem>>, vector<1x4x32xf32>
    %392 = vector.shape_cast %391 : vector<1x4x32xf32> to vector<4x32xf32>
    %393 = vector.shape_cast %389 : vector<4x32xf32> to vector<1x4x32xf32>
    tpu.vector_store %arg7[%390, %c0_115, %c0_116], %393 {strides = array<i32>} : memref<8x4x32xf32, #tpu.memory_space<vmem>>, vector<1x4x32xf32>,
    %c2_i32_117 = arith.constant 2 : i32
    %c7_i32_118 = arith.constant 7 : i32
    %394 = arith.subi %c7_i32_118, %c2_i32_117 : i32
    %cst_119 = arith.constant dense<0.000000e+00> : vector<4x96xf32>
    %395 = tpu.matmul %385, %309, %cst_119 {dimension_numbers = #tpu.dot_dimension_numbers<[1], [0], [0], [1], [0, 0, 1, 1], [], []>} : vector<4x32xf32>, vector<32x96xf32>, vector<4x96xf32> -> vector<4x96xf32>
    %396 = vector.broadcast %310 : vector<1x96xf32> to vector<4x96xf32>
    %397 = arith.addf %395, %396 : vector<4x96xf32>
    %398 = arith.index_cast %394 : i32 to index
    %c0_120 = arith.constant 0 : index
    %c0_121 = arith.constant 0 : index
    %399 = vector.load %arg9[%398, %c0_120, %c0_121] : memref<8x4x96xf32, #tpu.memory_space<vmem>>, vector<1x4x96xf32>
    %400 = vector.shape_cast %399 : vector<1x4x96xf32> to vector<4x96xf32>
    %401 = vector.extract_strided_slice %400 {offsets = [0, 0], sizes = [4, 32], strides = [1, 1]} : vector<4x96xf32> to vector<4x32xf32>
    %402 = vector.extract_strided_slice %397 {offsets = [0, 0], sizes = [4, 32], strides = [1, 1]} : vector<4x96xf32> to vector<4x32xf32>
    %403 = arith.addf %401, %402 : vector<4x32xf32>
    %404 = arith.negf %403 : vector<4x32xf32>
    %405 = math.exp %404 : vector<4x32xf32>
    %cst_122 = arith.constant 1.000000e+00 : f32
    %406 = vector.broadcast %cst_122 : f32 to vector<4x32xf32>
    %407 = arith.addf %406, %405 : vector<4x32xf32>
    %408 = arith.divf %406, %407 : vector<4x32xf32>
    %409 = vector.extract_strided_slice %400 {offsets = [0, 32], sizes = [4, 32], strides = [1, 1]} : vector<4x96xf32> to vector<4x32xf32>
    %410 = vector.extract_strided_slice %397 {offsets = [0, 32], sizes = [4, 32], strides = [1, 1]} : vector<4x96xf32> to vector<4x32xf32>
    %411 = arith.addf %409, %410 : vector<4x32xf32>
    %412 = arith.negf %411 : vector<4x32xf32>
    %413 = math.exp %412 : vector<4x32xf32>
    %cst_123 = arith.constant 1.000000e+00 : f32
    %414 = vector.broadcast %cst_123 : f32 to vector<4x32xf32>
    %415 = arith.addf %414, %413 : vector<4x32xf32>
    %416 = arith.divf %414, %415 : vector<4x32xf32>
    %417 = vector.extract_strided_slice %400 {offsets = [0, 64], sizes = [4, 32], strides = [1, 1]} : vector<4x96xf32> to vector<4x32xf32>
    %418 = vector.extract_strided_slice %397 {offsets = [0, 64], sizes = [4, 32], strides = [1, 1]} : vector<4x96xf32> to vector<4x32xf32>
    %419 = arith.mulf %408, %418 : vector<4x32xf32>
    %420 = arith.addf %417, %419 : vector<4x32xf32>
    %421 = math.tanh %420 : vector<4x32xf32>
    %cst_124 = arith.constant 1.000000e+00 : f32
    %422 = vector.broadcast %cst_124 : f32 to vector<4x32xf32>
    %423 = arith.subf %422, %416 : vector<4x32xf32>
    %424 = arith.mulf %423, %421 : vector<4x32xf32>
    %425 = arith.mulf %416, %385 : vector<4x32xf32>
    %426 = arith.addf %424, %425 : vector<4x32xf32>
    %427 = arith.index_cast %394 : i32 to index
    %c0_125 = arith.constant 0 : index
    %c0_126 = arith.constant 0 : index
    %428 = vector.load %arg8[%427, %c0_125, %c0_126] : memref<8x4x32xf32, #tpu.memory_space<vmem>>, vector<1x4x32xf32>
    %429 = vector.shape_cast %428 : vector<1x4x32xf32> to vector<4x32xf32>
    %430 = arith.addf %429, %426 : vector<4x32xf32>
    %431 = arith.index_cast %394 : i32 to index
    %c0_127 = arith.constant 0 : index
    %c0_128 = arith.constant 0 : index
    %432 = vector.load %arg7[%431, %c0_127, %c0_128] : memref<8x4x32xf32, #tpu.memory_space<vmem>>, vector<1x4x32xf32>
    %433 = vector.shape_cast %432 : vector<1x4x32xf32> to vector<4x32xf32>
    %434 = vector.shape_cast %430 : vector<4x32xf32> to vector<1x4x32xf32>
    tpu.vector_store %arg7[%431, %c0_127, %c0_128], %434 {strides = array<i32>} : memref<8x4x32xf32, #tpu.memory_space<vmem>>, vector<1x4x32xf32>,
    %c3_i32_129 = arith.constant 3 : i32
    %c7_i32_130 = arith.constant 7 : i32
    %435 = arith.subi %c7_i32_130, %c3_i32_129 : i32
    %cst_131 = arith.constant dense<0.000000e+00> : vector<4x96xf32>
    %436 = tpu.matmul %426, %309, %cst_131 {dimension_numbers = #tpu.dot_dimension_numbers<[1], [0], [0], [1], [0, 0, 1, 1], [], []>} : vector<4x32xf32>, vector<32x96xf32>, vector<4x96xf32> -> vector<4x96xf32>
    %437 = vector.broadcast %310 : vector<1x96xf32> to vector<4x96xf32>
    %438 = arith.addf %436, %437 : vector<4x96xf32>
    %439 = arith.index_cast %435 : i32 to index
    %c0_132 = arith.constant 0 : index
    %c0_133 = arith.constant 0 : index
    %440 = vector.load %arg9[%439, %c0_132, %c0_133] : memref<8x4x96xf32, #tpu.memory_space<vmem>>, vector<1x4x96xf32>
    %441 = vector.shape_cast %440 : vector<1x4x96xf32> to vector<4x96xf32>
    %442 = vector.extract_strided_slice %441 {offsets = [0, 0], sizes = [4, 32], strides = [1, 1]} : vector<4x96xf32> to vector<4x32xf32>
    %443 = vector.extract_strided_slice %438 {offsets = [0, 0], sizes = [4, 32], strides = [1, 1]} : vector<4x96xf32> to vector<4x32xf32>
    %444 = arith.addf %442, %443 : vector<4x32xf32>
    %445 = arith.negf %444 : vector<4x32xf32>
    %446 = math.exp %445 : vector<4x32xf32>
    %cst_134 = arith.constant 1.000000e+00 : f32
    %447 = vector.broadcast %cst_134 : f32 to vector<4x32xf32>
    %448 = arith.addf %447, %446 : vector<4x32xf32>
    %449 = arith.divf %447, %448 : vector<4x32xf32>
    %450 = vector.extract_strided_slice %441 {offsets = [0, 32], sizes = [4, 32], strides = [1, 1]} : vector<4x96xf32> to vector<4x32xf32>
    %451 = vector.extract_strided_slice %438 {offsets = [0, 32], sizes = [4, 32], strides = [1, 1]} : vector<4x96xf32> to vector<4x32xf32>
    %452 = arith.addf %450, %451 : vector<4x32xf32>
    %453 = arith.negf %452 : vector<4x32xf32>
    %454 = math.exp %453 : vector<4x32xf32>
    %cst_135 = arith.constant 1.000000e+00 : f32
    %455 = vector.broadcast %cst_135 : f32 to vector<4x32xf32>
    %456 = arith.addf %455, %454 : vector<4x32xf32>
    %457 = arith.divf %455, %456 : vector<4x32xf32>
    %458 = vector.extract_strided_slice %441 {offsets = [0, 64], sizes = [4, 32], strides = [1, 1]} : vector<4x96xf32> to vector<4x32xf32>
    %459 = vector.extract_strided_slice %438 {offsets = [0, 64], sizes = [4, 32], strides = [1, 1]} : vector<4x96xf32> to vector<4x32xf32>
    %460 = arith.mulf %449, %459 : vector<4x32xf32>
    %461 = arith.addf %458, %460 : vector<4x32xf32>
    %462 = math.tanh %461 : vector<4x32xf32>
    %cst_136 = arith.constant 1.000000e+00 : f32
    %463 = vector.broadcast %cst_136 : f32 to vector<4x32xf32>
    %464 = arith.subf %463, %457 : vector<4x32xf32>
    %465 = arith.mulf %464, %462 : vector<4x32xf32>
    %466 = arith.mulf %457, %426 : vector<4x32xf32>
    %467 = arith.addf %465, %466 : vector<4x32xf32>
    %468 = arith.index_cast %435 : i32 to index
    %c0_137 = arith.constant 0 : index
    %c0_138 = arith.constant 0 : index
    %469 = vector.load %arg8[%468, %c0_137, %c0_138] : memref<8x4x32xf32, #tpu.memory_space<vmem>>, vector<1x4x32xf32>
    %470 = vector.shape_cast %469 : vector<1x4x32xf32> to vector<4x32xf32>
    %471 = arith.addf %470, %467 : vector<4x32xf32>
    %472 = arith.index_cast %435 : i32 to index
    %c0_139 = arith.constant 0 : index
    %c0_140 = arith.constant 0 : index
    %473 = vector.load %arg7[%472, %c0_139, %c0_140] : memref<8x4x32xf32, #tpu.memory_space<vmem>>, vector<1x4x32xf32>
    %474 = vector.shape_cast %473 : vector<1x4x32xf32> to vector<4x32xf32>
    %475 = vector.shape_cast %471 : vector<4x32xf32> to vector<1x4x32xf32>
    tpu.vector_store %arg7[%472, %c0_139, %c0_140], %475 {strides = array<i32>} : memref<8x4x32xf32, #tpu.memory_space<vmem>>, vector<1x4x32xf32>,
    %c4_i32_141 = arith.constant 4 : i32
    %c7_i32_142 = arith.constant 7 : i32
    %476 = arith.subi %c7_i32_142, %c4_i32_141 : i32
    %cst_143 = arith.constant dense<0.000000e+00> : vector<4x96xf32>
    %477 = tpu.matmul %467, %309, %cst_143 {dimension_numbers = #tpu.dot_dimension_numbers<[1], [0], [0], [1], [0, 0, 1, 1], [], []>} : vector<4x32xf32>, vector<32x96xf32>, vector<4x96xf32> -> vector<4x96xf32>
    %478 = vector.broadcast %310 : vector<1x96xf32> to vector<4x96xf32>
    %479 = arith.addf %477, %478 : vector<4x96xf32>
    %480 = arith.index_cast %476 : i32 to index
    %c0_144 = arith.constant 0 : index
    %c0_145 = arith.constant 0 : index
    %481 = vector.load %arg9[%480, %c0_144, %c0_145] : memref<8x4x96xf32, #tpu.memory_space<vmem>>, vector<1x4x96xf32>
    %482 = vector.shape_cast %481 : vector<1x4x96xf32> to vector<4x96xf32>
    %483 = vector.extract_strided_slice %482 {offsets = [0, 0], sizes = [4, 32], strides = [1, 1]} : vector<4x96xf32> to vector<4x32xf32>
    %484 = vector.extract_strided_slice %479 {offsets = [0, 0], sizes = [4, 32], strides = [1, 1]} : vector<4x96xf32> to vector<4x32xf32>
    %485 = arith.addf %483, %484 : vector<4x32xf32>
    %486 = arith.negf %485 : vector<4x32xf32>
    %487 = math.exp %486 : vector<4x32xf32>
    %cst_146 = arith.constant 1.000000e+00 : f32
    %488 = vector.broadcast %cst_146 : f32 to vector<4x32xf32>
    %489 = arith.addf %488, %487 : vector<4x32xf32>
    %490 = arith.divf %488, %489 : vector<4x32xf32>
    %491 = vector.extract_strided_slice %482 {offsets = [0, 32], sizes = [4, 32], strides = [1, 1]} : vector<4x96xf32> to vector<4x32xf32>
    %492 = vector.extract_strided_slice %479 {offsets = [0, 32], sizes = [4, 32], strides = [1, 1]} : vector<4x96xf32> to vector<4x32xf32>
    %493 = arith.addf %491, %492 : vector<4x32xf32>
    %494 = arith.negf %493 : vector<4x32xf32>
    %495 = math.exp %494 : vector<4x32xf32>
    %cst_147 = arith.constant 1.000000e+00 : f32
    %496 = vector.broadcast %cst_147 : f32 to vector<4x32xf32>
    %497 = arith.addf %496, %495 : vector<4x32xf32>
    %498 = arith.divf %496, %497 : vector<4x32xf32>
    %499 = vector.extract_strided_slice %482 {offsets = [0, 64], sizes = [4, 32], strides = [1, 1]} : vector<4x96xf32> to vector<4x32xf32>
    %500 = vector.extract_strided_slice %479 {offsets = [0, 64], sizes = [4, 32], strides = [1, 1]} : vector<4x96xf32> to vector<4x32xf32>
    %501 = arith.mulf %490, %500 : vector<4x32xf32>
    %502 = arith.addf %499, %501 : vector<4x32xf32>
    %503 = math.tanh %502 : vector<4x32xf32>
    %cst_148 = arith.constant 1.000000e+00 : f32
    %504 = vector.broadcast %cst_148 : f32 to vector<4x32xf32>
    %505 = arith.subf %504, %498 : vector<4x32xf32>
    %506 = arith.mulf %505, %503 : vector<4x32xf32>
    %507 = arith.mulf %498, %467 : vector<4x32xf32>
    %508 = arith.addf %506, %507 : vector<4x32xf32>
    %509 = arith.index_cast %476 : i32 to index
    %c0_149 = arith.constant 0 : index
    %c0_150 = arith.constant 0 : index
    %510 = vector.load %arg8[%509, %c0_149, %c0_150] : memref<8x4x32xf32, #tpu.memory_space<vmem>>, vector<1x4x32xf32>
    %511 = vector.shape_cast %510 : vector<1x4x32xf32> to vector<4x32xf32>
    %512 = arith.addf %511, %508 : vector<4x32xf32>
    %513 = arith.index_cast %476 : i32 to index
    %c0_151 = arith.constant 0 : index
    %c0_152 = arith.constant 0 : index
    %514 = vector.load %arg7[%513, %c0_151, %c0_152] : memref<8x4x32xf32, #tpu.memory_space<vmem>>, vector<1x4x32xf32>
    %515 = vector.shape_cast %514 : vector<1x4x32xf32> to vector<4x32xf32>
    %516 = vector.shape_cast %512 : vector<4x32xf32> to vector<1x4x32xf32>
    tpu.vector_store %arg7[%513, %c0_151, %c0_152], %516 {strides = array<i32>} : memref<8x4x32xf32, #tpu.memory_space<vmem>>, vector<1x4x32xf32>,
    %c5_i32_153 = arith.constant 5 : i32
    %c7_i32_154 = arith.constant 7 : i32
    %517 = arith.subi %c7_i32_154, %c5_i32_153 : i32
    %cst_155 = arith.constant dense<0.000000e+00> : vector<4x96xf32>
    %518 = tpu.matmul %508, %309, %cst_155 {dimension_numbers = #tpu.dot_dimension_numbers<[1], [0], [0], [1], [0, 0, 1, 1], [], []>} : vector<4x32xf32>, vector<32x96xf32>, vector<4x96xf32> -> vector<4x96xf32>
    %519 = vector.broadcast %310 : vector<1x96xf32> to vector<4x96xf32>
    %520 = arith.addf %518, %519 : vector<4x96xf32>
    %521 = arith.index_cast %517 : i32 to index
    %c0_156 = arith.constant 0 : index
    %c0_157 = arith.constant 0 : index
    %522 = vector.load %arg9[%521, %c0_156, %c0_157] : memref<8x4x96xf32, #tpu.memory_space<vmem>>, vector<1x4x96xf32>
    %523 = vector.shape_cast %522 : vector<1x4x96xf32> to vector<4x96xf32>
    %524 = vector.extract_strided_slice %523 {offsets = [0, 0], sizes = [4, 32], strides = [1, 1]} : vector<4x96xf32> to vector<4x32xf32>
    %525 = vector.extract_strided_slice %520 {offsets = [0, 0], sizes = [4, 32], strides = [1, 1]} : vector<4x96xf32> to vector<4x32xf32>
    %526 = arith.addf %524, %525 : vector<4x32xf32>
    %527 = arith.negf %526 : vector<4x32xf32>
    %528 = math.exp %527 : vector<4x32xf32>
    %cst_158 = arith.constant 1.000000e+00 : f32
    %529 = vector.broadcast %cst_158 : f32 to vector<4x32xf32>
    %530 = arith.addf %529, %528 : vector<4x32xf32>
    %531 = arith.divf %529, %530 : vector<4x32xf32>
    %532 = vector.extract_strided_slice %523 {offsets = [0, 32], sizes = [4, 32], strides = [1, 1]} : vector<4x96xf32> to vector<4x32xf32>
    %533 = vector.extract_strided_slice %520 {offsets = [0, 32], sizes = [4, 32], strides = [1, 1]} : vector<4x96xf32> to vector<4x32xf32>
    %534 = arith.addf %532, %533 : vector<4x32xf32>
    %535 = arith.negf %534 : vector<4x32xf32>
    %536 = math.exp %535 : vector<4x32xf32>
    %cst_159 = arith.constant 1.000000e+00 : f32
    %537 = vector.broadcast %cst_159 : f32 to vector<4x32xf32>
    %538 = arith.addf %537, %536 : vector<4x32xf32>
    %539 = arith.divf %537, %538 : vector<4x32xf32>
    %540 = vector.extract_strided_slice %523 {offsets = [0, 64], sizes = [4, 32], strides = [1, 1]} : vector<4x96xf32> to vector<4x32xf32>
    %541 = vector.extract_strided_slice %520 {offsets = [0, 64], sizes = [4, 32], strides = [1, 1]} : vector<4x96xf32> to vector<4x32xf32>
    %542 = arith.mulf %531, %541 : vector<4x32xf32>
    %543 = arith.addf %540, %542 : vector<4x32xf32>
    %544 = math.tanh %543 : vector<4x32xf32>
    %cst_160 = arith.constant 1.000000e+00 : f32
    %545 = vector.broadcast %cst_160 : f32 to vector<4x32xf32>
    %546 = arith.subf %545, %539 : vector<4x32xf32>
    %547 = arith.mulf %546, %544 : vector<4x32xf32>
    %548 = arith.mulf %539, %508 : vector<4x32xf32>
    %549 = arith.addf %547, %548 : vector<4x32xf32>
    %550 = arith.index_cast %517 : i32 to index
    %c0_161 = arith.constant 0 : index
    %c0_162 = arith.constant 0 : index
    %551 = vector.load %arg8[%550, %c0_161, %c0_162] : memref<8x4x32xf32, #tpu.memory_space<vmem>>, vector<1x4x32xf32>
    %552 = vector.shape_cast %551 : vector<1x4x32xf32> to vector<4x32xf32>
    %553 = arith.addf %552, %549 : vector<4x32xf32>
    %554 = arith.index_cast %517 : i32 to index
    %c0_163 = arith.constant 0 : index
    %c0_164 = arith.constant 0 : index
    %555 = vector.load %arg7[%554, %c0_163, %c0_164] : memref<8x4x32xf32, #tpu.memory_space<vmem>>, vector<1x4x32xf32>
    %556 = vector.shape_cast %555 : vector<1x4x32xf32> to vector<4x32xf32>
    %557 = vector.shape_cast %553 : vector<4x32xf32> to vector<1x4x32xf32>
    tpu.vector_store %arg7[%554, %c0_163, %c0_164], %557 {strides = array<i32>} : memref<8x4x32xf32, #tpu.memory_space<vmem>>, vector<1x4x32xf32>,
    %c6_i32_165 = arith.constant 6 : i32
    %c7_i32_166 = arith.constant 7 : i32
    %558 = arith.subi %c7_i32_166, %c6_i32_165 : i32
    %cst_167 = arith.constant dense<0.000000e+00> : vector<4x96xf32>
    %559 = tpu.matmul %549, %309, %cst_167 {dimension_numbers = #tpu.dot_dimension_numbers<[1], [0], [0], [1], [0, 0, 1, 1], [], []>} : vector<4x32xf32>, vector<32x96xf32>, vector<4x96xf32> -> vector<4x96xf32>
    %560 = vector.broadcast %310 : vector<1x96xf32> to vector<4x96xf32>
    %561 = arith.addf %559, %560 : vector<4x96xf32>
    %562 = arith.index_cast %558 : i32 to index
    %c0_168 = arith.constant 0 : index
    %c0_169 = arith.constant 0 : index
    %563 = vector.load %arg9[%562, %c0_168, %c0_169] : memref<8x4x96xf32, #tpu.memory_space<vmem>>, vector<1x4x96xf32>
    %564 = vector.shape_cast %563 : vector<1x4x96xf32> to vector<4x96xf32>
    %565 = vector.extract_strided_slice %564 {offsets = [0, 0], sizes = [4, 32], strides = [1, 1]} : vector<4x96xf32> to vector<4x32xf32>
    %566 = vector.extract_strided_slice %561 {offsets = [0, 0], sizes = [4, 32], strides = [1, 1]} : vector<4x96xf32> to vector<4x32xf32>
    %567 = arith.addf %565, %566 : vector<4x32xf32>
    %568 = arith.negf %567 : vector<4x32xf32>
    %569 = math.exp %568 : vector<4x32xf32>
    %cst_170 = arith.constant 1.000000e+00 : f32
    %570 = vector.broadcast %cst_170 : f32 to vector<4x32xf32>
    %571 = arith.addf %570, %569 : vector<4x32xf32>
    %572 = arith.divf %570, %571 : vector<4x32xf32>
    %573 = vector.extract_strided_slice %564 {offsets = [0, 32], sizes = [4, 32], strides = [1, 1]} : vector<4x96xf32> to vector<4x32xf32>
    %574 = vector.extract_strided_slice %561 {offsets = [0, 32], sizes = [4, 32], strides = [1, 1]} : vector<4x96xf32> to vector<4x32xf32>
    %575 = arith.addf %573, %574 : vector<4x32xf32>
    %576 = arith.negf %575 : vector<4x32xf32>
    %577 = math.exp %576 : vector<4x32xf32>
    %cst_171 = arith.constant 1.000000e+00 : f32
    %578 = vector.broadcast %cst_171 : f32 to vector<4x32xf32>
    %579 = arith.addf %578, %577 : vector<4x32xf32>
    %580 = arith.divf %578, %579 : vector<4x32xf32>
    %581 = vector.extract_strided_slice %564 {offsets = [0, 64], sizes = [4, 32], strides = [1, 1]} : vector<4x96xf32> to vector<4x32xf32>
    %582 = vector.extract_strided_slice %561 {offsets = [0, 64], sizes = [4, 32], strides = [1, 1]} : vector<4x96xf32> to vector<4x32xf32>
    %583 = arith.mulf %572, %582 : vector<4x32xf32>
    %584 = arith.addf %581, %583 : vector<4x32xf32>
    %585 = math.tanh %584 : vector<4x32xf32>
    %cst_172 = arith.constant 1.000000e+00 : f32
    %586 = vector.broadcast %cst_172 : f32 to vector<4x32xf32>
    %587 = arith.subf %586, %580 : vector<4x32xf32>
    %588 = arith.mulf %587, %585 : vector<4x32xf32>
    %589 = arith.mulf %580, %549 : vector<4x32xf32>
    %590 = arith.addf %588, %589 : vector<4x32xf32>
    %591 = arith.index_cast %558 : i32 to index
    %c0_173 = arith.constant 0 : index
    %c0_174 = arith.constant 0 : index
    %592 = vector.load %arg8[%591, %c0_173, %c0_174] : memref<8x4x32xf32, #tpu.memory_space<vmem>>, vector<1x4x32xf32>
    %593 = vector.shape_cast %592 : vector<1x4x32xf32> to vector<4x32xf32>
    %594 = arith.addf %593, %590 : vector<4x32xf32>
    %595 = arith.index_cast %558 : i32 to index
    %c0_175 = arith.constant 0 : index
    %c0_176 = arith.constant 0 : index
    %596 = vector.load %arg7[%595, %c0_175, %c0_176] : memref<8x4x32xf32, #tpu.memory_space<vmem>>, vector<1x4x32xf32>
    %597 = vector.shape_cast %596 : vector<1x4x32xf32> to vector<4x32xf32>
    %598 = vector.shape_cast %594 : vector<4x32xf32> to vector<1x4x32xf32>
    tpu.vector_store %arg7[%595, %c0_175, %c0_176], %598 {strides = array<i32>} : memref<8x4x32xf32, #tpu.memory_space<vmem>>, vector<1x4x32xf32>,
    %c7_i32_177 = arith.constant 7 : i32
    %c7_i32_178 = arith.constant 7 : i32
    %599 = arith.subi %c7_i32_178, %c7_i32_177 : i32
    %cst_179 = arith.constant dense<0.000000e+00> : vector<4x96xf32>
    %600 = tpu.matmul %590, %309, %cst_179 {dimension_numbers = #tpu.dot_dimension_numbers<[1], [0], [0], [1], [0, 0, 1, 1], [], []>} : vector<4x32xf32>, vector<32x96xf32>, vector<4x96xf32> -> vector<4x96xf32>
    %601 = vector.broadcast %310 : vector<1x96xf32> to vector<4x96xf32>
    %602 = arith.addf %600, %601 : vector<4x96xf32>
    %603 = arith.index_cast %599 : i32 to index
    %c0_180 = arith.constant 0 : index
    %c0_181 = arith.constant 0 : index
    %604 = vector.load %arg9[%603, %c0_180, %c0_181] : memref<8x4x96xf32, #tpu.memory_space<vmem>>, vector<1x4x96xf32>
    %605 = vector.shape_cast %604 : vector<1x4x96xf32> to vector<4x96xf32>
    %606 = vector.extract_strided_slice %605 {offsets = [0, 0], sizes = [4, 32], strides = [1, 1]} : vector<4x96xf32> to vector<4x32xf32>
    %607 = vector.extract_strided_slice %602 {offsets = [0, 0], sizes = [4, 32], strides = [1, 1]} : vector<4x96xf32> to vector<4x32xf32>
    %608 = arith.addf %606, %607 : vector<4x32xf32>
    %609 = arith.negf %608 : vector<4x32xf32>
    %610 = math.exp %609 : vector<4x32xf32>
    %cst_182 = arith.constant 1.000000e+00 : f32
    %611 = vector.broadcast %cst_182 : f32 to vector<4x32xf32>
    %612 = arith.addf %611, %610 : vector<4x32xf32>
    %613 = arith.divf %611, %612 : vector<4x32xf32>
    %614 = vector.extract_strided_slice %605 {offsets = [0, 32], sizes = [4, 32], strides = [1, 1]} : vector<4x96xf32> to vector<4x32xf32>
    %615 = vector.extract_strided_slice %602 {offsets = [0, 32], sizes = [4, 32], strides = [1, 1]} : vector<4x96xf32> to vector<4x32xf32>
    %616 = arith.addf %614, %615 : vector<4x32xf32>
    %617 = arith.negf %616 : vector<4x32xf32>
    %618 = math.exp %617 : vector<4x32xf32>
    %cst_183 = arith.constant 1.000000e+00 : f32
    %619 = vector.broadcast %cst_183 : f32 to vector<4x32xf32>
    %620 = arith.addf %619, %618 : vector<4x32xf32>
    %621 = arith.divf %619, %620 : vector<4x32xf32>
    %622 = vector.extract_strided_slice %605 {offsets = [0, 64], sizes = [4, 32], strides = [1, 1]} : vector<4x96xf32> to vector<4x32xf32>
    %623 = vector.extract_strided_slice %602 {offsets = [0, 64], sizes = [4, 32], strides = [1, 1]} : vector<4x96xf32> to vector<4x32xf32>
    %624 = arith.mulf %613, %623 : vector<4x32xf32>
    %625 = arith.addf %622, %624 : vector<4x32xf32>
    %626 = math.tanh %625 : vector<4x32xf32>
    %cst_184 = arith.constant 1.000000e+00 : f32
    %627 = vector.broadcast %cst_184 : f32 to vector<4x32xf32>
    %628 = arith.subf %627, %621 : vector<4x32xf32>
    %629 = arith.mulf %628, %626 : vector<4x32xf32>
    %630 = arith.mulf %621, %590 : vector<4x32xf32>
    %631 = arith.addf %629, %630 : vector<4x32xf32>
    %632 = arith.index_cast %599 : i32 to index
    %c0_185 = arith.constant 0 : index
    %c0_186 = arith.constant 0 : index
    %633 = vector.load %arg8[%632, %c0_185, %c0_186] : memref<8x4x32xf32, #tpu.memory_space<vmem>>, vector<1x4x32xf32>
    %634 = vector.shape_cast %633 : vector<1x4x32xf32> to vector<4x32xf32>
    %635 = arith.addf %634, %631 : vector<4x32xf32>
    %636 = arith.index_cast %599 : i32 to index
    %c0_187 = arith.constant 0 : index
    %c0_188 = arith.constant 0 : index
    %637 = vector.load %arg7[%636, %c0_187, %c0_188] : memref<8x4x32xf32, #tpu.memory_space<vmem>>, vector<1x4x32xf32>
    %638 = vector.shape_cast %637 : vector<1x4x32xf32> to vector<4x32xf32>
    %639 = vector.shape_cast %635 : vector<4x32xf32> to vector<1x4x32xf32>
    tpu.vector_store %arg7[%636, %c0_187, %c0_188], %639 {strides = array<i32>} : memref<8x4x32xf32, #tpu.memory_space<vmem>>, vector<1x4x32xf32>,
    %c8_i32_189 = arith.constant 8 : i32
    return
  }
}

module attributes {stable_mosaic.version = 11 : i64} {
  func.func @fused_head_kernel(%arg0: memref<4x8x32xf32, #tpu.memory_space<vmem>>, %arg1: memref<32x64xbf16, #tpu.memory_space<vmem>>, %arg2: memref<32x32xbf16, #tpu.memory_space<vmem>>, %arg3: memref<64x32xbf16, #tpu.memory_space<vmem>>, %arg4: memref<32x16xbf16, #tpu.memory_space<vmem>>, %arg5: memref<3x32xf32, #tpu.memory_space<vmem>>, %arg6: memref<1x16xf32, #tpu.memory_space<vmem>>, %arg7: memref<4x8x16xf32, #tpu.memory_space<vmem>>) attributes {dimension_semantics = [], scalar_prefetch = 0 : i64, scratch_operands = 0 : i64, tpu.core_type = #tpu.core_type<tc>} {
    %c0 = arith.constant 0 : index
    %c0_0 = arith.constant 0 : index
    %c0_1 = arith.constant 0 : index
    %0 = vector.load %arg0[%c0, %c0_0, %c0_1] : memref<4x8x32xf32, #tpu.memory_space<vmem>>, vector<4x8x32xf32>
    %1 = arith.truncf %0 : vector<4x8x32xf32> to vector<4x8x32xbf16>
    %c0_2 = arith.constant 0 : index
    %c0_3 = arith.constant 0 : index
    %2 = vector.load %arg1[%c0_2, %c0_3] : memref<32x64xbf16, #tpu.memory_space<vmem>>, vector<32x64xbf16>
    "tpu.trace_start"() <{level = 10 : i32, message = "bth,hq->btq"}> : () -> ()
    %cst = arith.constant dense<0.000000e+00> : vector<4x8x64xf32>
    %3 = tpu.matmul %1, %2, %cst {dimension_numbers = #tpu.dot_dimension_numbers<[2], [0], [0, 1], [1], [0, 0, 0, 1, 1, 1], [], []>} : vector<4x8x32xbf16>, vector<32x64xbf16>, vector<4x8x64xf32> -> vector<4x8x64xf32>
    "tpu.trace_stop"() : () -> ()
    %4 = vector.extract_strided_slice %3 {offsets = [0, 0, 0], sizes = [4, 8, 32], strides = [1, 1, 1]} : vector<4x8x64xf32> to vector<4x8x32xf32>
    %5 = vector.extract_strided_slice %3 {offsets = [0, 0, 32], sizes = [4, 8, 32], strides = [1, 1, 1]} : vector<4x8x64xf32> to vector<4x8x32xf32>
    %cst_4 = arith.constant dense<0xFF800000> : vector<8x32xf32>
    %6 = vector.multi_reduction <maximumf>, %5, %cst_4 [0] : vector<4x8x32xf32> to vector<8x32xf32>
    %7 = vector.shape_cast %6 : vector<8x32xf32> to vector<1x8x32xf32>
    %8 = vector.broadcast %7 : vector<1x8x32xf32> to vector<4x8x32xf32>
    %9 = arith.addf %4, %8 : vector<4x8x32xf32>
    %c0_5 = arith.constant 0 : index
    %c0_6 = arith.constant 0 : index
    %10 = vector.load %arg5[%c0_5, %c0_6] : memref<3x32xf32, #tpu.memory_space<vmem>>, vector<1x32xf32>
    %11 = vector.shape_cast %10 : vector<1x32xf32> to vector<1x1x32xf32>
    %12 = vector.broadcast %11 : vector<1x1x32xf32> to vector<4x8x32xf32>
    %13 = arith.addf %9, %12 : vector<4x8x32xf32>
    %cst_7 = arith.constant 0.000000e+00 : f32
    %14 = vector.broadcast %cst_7 : f32 to vector<4x8x32xf32>
    %15 = arith.maximumf %13, %14 : vector<4x8x32xf32>
    %16 = arith.truncf %15 : vector<4x8x32xf32> to vector<4x8x32xbf16>
    %c0_8 = arith.constant 0 : index
    %c0_9 = arith.constant 0 : index
    %17 = vector.load %arg2[%c0_8, %c0_9] : memref<32x32xbf16, #tpu.memory_space<vmem>>, vector<32x32xbf16>
    "tpu.trace_start"() <{level = 10 : i32, message = "btp,pq->btq"}> : () -> ()
    %cst_10 = arith.constant dense<0.000000e+00> : vector<4x8x32xf32>
    %18 = tpu.matmul %16, %17, %cst_10 {dimension_numbers = #tpu.dot_dimension_numbers<[2], [0], [0, 1], [1], [0, 0, 0, 1, 1, 1], [], []>} : vector<4x8x32xbf16>, vector<32x32xbf16>, vector<4x8x32xf32> -> vector<4x8x32xf32>
    "tpu.trace_stop"() : () -> ()
    %c1 = arith.constant 1 : index
    %c0_11 = arith.constant 0 : index
    %19 = vector.load %arg5[%c1, %c0_11] : memref<3x32xf32, #tpu.memory_space<vmem>>, vector<1x32xf32>
    %20 = vector.shape_cast %19 : vector<1x32xf32> to vector<1x1x32xf32>
    %21 = vector.broadcast %20 : vector<1x1x32xf32> to vector<4x8x32xf32>
    %22 = arith.addf %18, %21 : vector<4x8x32xf32>
    %23 = arith.truncf %22 : vector<4x8x32xf32> to vector<4x8x32xbf16>
    "tpu.trace_start"() <{level = 10 : i32, message = "btq,bsq->bts"}> : () -> ()
    %cst_12 = arith.constant dense<0.000000e+00> : vector<4x8x8xf32>
    %24 = tpu.matmul %23, %16, %cst_12 {dimension_numbers = #tpu.dot_dimension_numbers<[2], [2], [1], [1], [0, 0, 0, 1, 1, 1], [0], [0]>} : vector<4x8x32xbf16>, vector<4x8x32xbf16>, vector<4x8x8xf32> -> vector<4x8x8xf32>
    "tpu.trace_stop"() : () -> ()
    %cst_13 = arith.constant dense<0xFF800000> : vector<4x8xf32>
    %25 = vector.multi_reduction <maximumf>, %24, %cst_13 [2] : vector<4x8x8xf32> to vector<4x8xf32>
    %26 = vector.shape_cast %25 : vector<4x8xf32> to vector<4x8x1xf32>
    %27 = vector.broadcast %26 : vector<4x8x1xf32> to vector<4x8x8xf32>
    %28 = arith.subf %24, %27 : vector<4x8x8xf32>
    %29 = math.exp %28 : vector<4x8x8xf32>
    %cst_14 = arith.constant dense<0.000000e+00> : vector<4x8xf32>
    %30 = vector.multi_reduction <add>, %29, %cst_14 [2] : vector<4x8x8xf32> to vector<4x8xf32>
    %31 = vector.shape_cast %30 : vector<4x8xf32> to vector<4x8x1xf32>
    %32 = vector.broadcast %31 : vector<4x8x1xf32> to vector<4x8x8xf32>
    %33 = arith.divf %29, %32 : vector<4x8x8xf32>
    %34 = arith.truncf %33 : vector<4x8x8xf32> to vector<4x8x8xbf16>
    "tpu.trace_start"() <{level = 10 : i32, message = "bts,bsp->btp"}> : () -> ()
    %cst_15 = arith.constant dense<0.000000e+00> : vector<4x8x32xf32>
    %35 = tpu.matmul %34, %16, %cst_15 {dimension_numbers = #tpu.dot_dimension_numbers<[2], [1], [1], [2], [0, 0, 0, 1, 1, 2], [0], [0]>} : vector<4x8x8xbf16>, vector<4x8x32xbf16>, vector<4x8x32xf32> -> vector<4x8x32xf32>
    "tpu.trace_stop"() : () -> ()
    %36 = tpu.concatenate %15, %35 in 2 : vector<4x8x32xf32>, vector<4x8x32xf32> -> vector<4x8x64xf32>
    %37 = arith.truncf %36 : vector<4x8x64xf32> to vector<4x8x64xbf16>
    %c0_16 = arith.constant 0 : index
    %c0_17 = arith.constant 0 : index
    %38 = vector.load %arg3[%c0_16, %c0_17] : memref<64x32xbf16, #tpu.memory_space<vmem>>, vector<64x32xbf16>
    "tpu.trace_start"() <{level = 10 : i32, message = "btc,cp->btp"}> : () -> ()
    %cst_18 = arith.constant dense<0.000000e+00> : vector<4x8x32xf32>
    %39 = tpu.matmul %37, %38, %cst_18 {dimension_numbers = #tpu.dot_dimension_numbers<[2], [0], [0, 1], [1], [0, 0, 0, 1, 1, 1], [], []>} : vector<4x8x64xbf16>, vector<64x32xbf16>, vector<4x8x32xf32> -> vector<4x8x32xf32>
    "tpu.trace_stop"() : () -> ()
    %c2 = arith.constant 2 : index
    %c0_19 = arith.constant 0 : index
    %40 = vector.load %arg5[%c2, %c0_19] : memref<3x32xf32, #tpu.memory_space<vmem>>, vector<1x32xf32>
    %41 = vector.shape_cast %40 : vector<1x32xf32> to vector<1x1x32xf32>
    %42 = vector.broadcast %41 : vector<1x1x32xf32> to vector<4x8x32xf32>
    %43 = arith.addf %39, %42 : vector<4x8x32xf32>
    %cst_20 = arith.constant 0.000000e+00 : f32
    %44 = vector.broadcast %cst_20 : f32 to vector<4x8x32xf32>
    %45 = arith.maximumf %43, %44 : vector<4x8x32xf32>
    %46 = arith.truncf %45 : vector<4x8x32xf32> to vector<4x8x32xbf16>
    %c0_21 = arith.constant 0 : index
    %c0_22 = arith.constant 0 : index
    %47 = vector.load %arg4[%c0_21, %c0_22] : memref<32x16xbf16, #tpu.memory_space<vmem>>, vector<32x16xbf16>
    "tpu.trace_start"() <{level = 10 : i32, message = "btp,po->bto"}> : () -> ()
    %cst_23 = arith.constant dense<0.000000e+00> : vector<4x8x16xf32>
    %48 = tpu.matmul %46, %47, %cst_23 {dimension_numbers = #tpu.dot_dimension_numbers<[2], [0], [0, 1], [1], [0, 0, 0, 1, 1, 1], [], []>} : vector<4x8x32xbf16>, vector<32x16xbf16>, vector<4x8x16xf32> -> vector<4x8x16xf32>
    "tpu.trace_stop"() : () -> ()
    %c0_24 = arith.constant 0 : index
    %c0_25 = arith.constant 0 : index
    %49 = vector.load %arg6[%c0_24, %c0_25] : memref<1x16xf32, #tpu.memory_space<vmem>>, vector<1x16xf32>
    %50 = vector.shape_cast %49 : vector<1x16xf32> to vector<1x1x16xf32>
    %51 = vector.broadcast %50 : vector<1x1x16xf32> to vector<4x8x16xf32>
    %52 = arith.addf %48, %51 : vector<4x8x16xf32>
    %cst_26 = arith.constant dense<0xFF800000> : vector<4x8xf32>
    %53 = vector.multi_reduction <maximumf>, %52, %cst_26 [2] : vector<4x8x16xf32> to vector<4x8xf32>
    %54 = vector.shape_cast %53 : vector<4x8xf32> to vector<4x8x1xf32>
    %55 = vector.broadcast %54 : vector<4x8x1xf32> to vector<4x8x16xf32>
    %56 = arith.subf %52, %55 : vector<4x8x16xf32>
    %57 = math.exp %56 : vector<4x8x16xf32>
    %cst_27 = arith.constant dense<0.000000e+00> : vector<4x8xf32>
    %58 = vector.multi_reduction <add>, %57, %cst_27 [2] : vector<4x8x16xf32> to vector<4x8xf32>
    %59 = vector.shape_cast %58 : vector<4x8xf32> to vector<4x8x1xf32>
    %60 = math.log %59 : vector<4x8x1xf32>
    %61 = arith.addf %54, %60 : vector<4x8x1xf32>
    %62 = vector.broadcast %61 : vector<4x8x1xf32> to vector<4x8x16xf32>
    %63 = arith.subf %52, %62 : vector<4x8x16xf32>
    %c0_28 = arith.constant 0 : index
    %c0_29 = arith.constant 0 : index
    %c0_30 = arith.constant 0 : index
    %64 = vector.load %arg7[%c0_28, %c0_29, %c0_30] : memref<4x8x16xf32, #tpu.memory_space<vmem>>, vector<4x8x16xf32>
    tpu.vector_store %arg7[%c0_28, %c0_29, %c0_30], %63 {strides = array<i32>} : memref<4x8x16xf32, #tpu.memory_space<vmem>>, vector<4x8x16xf32>,
    return
  }
}

</mosaic_0001>

<llo_original>
// kernel: forward.3
$region0: #{forward.3}
  #allocation0 [shape = 'u32[]', space=smem, size = 0x4, offset = 0x4, fixed_abs, tag = 'smem constant byte address 0x4 - core index']
  #allocation1 [shape = 'u32[144,128]{1,0:T(1,128)}', space=vmem, size = 0x12000, scoped, tag = 'internal scratch']
  %s0 = inlined_call_operand.vmem [shape: f32[4,8,32], index: 0, kind: input, shape index: {}]
  %s1 = inlined_call_operand.vmem [shape: bf16[32,64], index: 1, kind: input, shape index: {}]
  %s2 = inlined_call_operand.vmem [shape: bf16[32,32], index: 2, kind: input, shape index: {}]
  %s3 = inlined_call_operand.vmem [shape: bf16[64,32], index: 3, kind: input, shape index: {}]
  %s4 = inlined_call_operand.vmem [shape: bf16[32,16], index: 4, kind: input, shape index: {}]
  %s5 = inlined_call_operand.vmem [shape: f32[3,32], index: 5, kind: input, shape index: {}]
  %s6 = inlined_call_operand.vmem [shape: f32[1,16], index: 6, kind: input, shape index: {}]
  %s7 = inlined_call_operand.hbm [shape: f32[4,8,16], index: 7, kind: output, shape index: {}]
  %s8 = sld [smem:[#allocation0]]
  $region38: #{forward.3} parent=0
    _
  %s10 = ssub.s32 1, %s8
  %s11 = scalar_select 0, %s10, %s8
  $region1: #{forward.3} parent=0
    #allocation2 [shape = 'u8[16384]{0}', space=vmem, size = 0x4000, scoped, tag = 'output window, operand 0, single buffered']
    #allocation3 [shape = 's32[1]{0}', space=sflag, size = 0x4, scoped, tag = 'scoped memory for forward.3']
    %12 = vsyncpa [#allocation3], 0
    // Predicated region
    $region2: #{forward.3} parent=1 // pred_check
      _
    $region3: #{forward.3} parent=1 // pred_check_branch
      %14 = sbr.rel (0) target = $region5
    $region4: #{forward.3} parent=1 // pred_region
      _
    $region5: #{forward.3} parent=1 // pred_fallthru
      _
    // Predicated region
    $region6: #{forward.3} parent=1 // pred_check
      _
    $region7: #{forward.3} parent=1 // pred_check_branch
      %16 = sbr.rel (0) target = $region9
    $region8: #{forward.3} parent=1 // pred_region
      _
    $region9: #{forward.3} parent=1 // pred_fallthru
      _
    // Predicated region
    $region10: #{forward.3} parent=1 // pred_check
      _
    $region11: #{forward.3} parent=1 // pred_check_branch
      %18 = sbr.rel (0) target = $region13
    $region12: #{forward.3} parent=1 // pred_region
      _
    $region13: #{forward.3} parent=1 // pred_fallthru
      _
    // Predicated region
    $region14: #{forward.3} parent=1 // pred_check
      _
    $region15: #{forward.3} parent=1 // pred_check_branch
      %20 = sbr.rel (0) target = $region17
    $region16: #{forward.3} parent=1 // pred_region
      _
    $region17: #{forward.3} parent=1 // pred_fallthru
      _
    // Predicated region
    $region18: #{forward.3} parent=1 // pred_check
      _
    $region19: #{forward.3} parent=1 // pred_check_branch
      %22 = sbr.rel (0) target = $region21
    $region20: #{forward.3} parent=1 // pred_region
      _
    $region21: #{forward.3} parent=1 // pred_fallthru
      _
    // Predicated region
    $region22: #{forward.3} parent=1 // pred_check
      _
    $region23: #{forward.3} parent=1 // pred_check_branch
      %24 = sbr.rel (0) target = $region25
    $region24: #{forward.3} parent=1 // pred_region
      _
    $region25: #{forward.3} parent=1 // pred_fallthru
      _
    // Predicated region
    $region26: #{forward.3} parent=1 // pred_check
      _
    $region27: #{forward.3} parent=1 // pred_check_branch
      %26 = sbr.rel (0) target = $region29
    $region28: #{forward.3} parent=1 // pred_region
      _
    $region29: #{forward.3} parent=1 // pred_fallthru
      _
    %v28 = vld [vmem:[%s0] sm:$0xff]
    %v29 = vld [vmem:[%s0 + $0x8] sm:$0xff]
    %v30 = vld [vmem:[%s0 + $0x10] sm:$0xff]
    %v31 = vld [vmem:[%s0 + $0x18] sm:$0xff]
    %v32 = vpack.c.bf16 %v28, %v28
    %v33 = vpack.c.bf16 %v29, %v29
    %v34 = vpack.c.bf16 %v30, %v30
    %v35 = vpack.c.bf16 %v31, %v31
    %v36 = vld [vmem:[%s1] sm:$0xf]
    %v37 = vld [vmem:[%s1 + $0x4] sm:$0xf]
    %v38 = vld [vmem:[%s1 + $0x8] sm:$0xf]
    %v39 = vld [vmem:[%s1 + $0xc] sm:$0xf]
    %v44 = vunpack.c.l.b16 %v32
    %v45 = vunpack.c.l.b16 %v33
    %v46 = vunpack.c.l.b16 %v34
    %v47 = vunpack.c.l.b16 %v35
    %v48 = vpack.c.b16 %v45, %v44
    %v49 = vpack.c.b16 %v47, %v46
    %v54 = vunpack.c.l.b16 %v36
    %v55 = vunpack.c.l.b16 %v37
    %v56 = vunpack.c.l.b16 %v38
    %v57 = vunpack.c.l.b16 %v39
    %v58 = vpack.c.b16 %v55, %v54
    %v59 = vpack.c.b16 %v57, %v56
    %vm62 = vcmask 261120
    %v64 = vsel %vm62, %v48, 0
    %v67 = vsel %vm62, %v49, 0
    %69 = vmatprep.subr.bf16.mxu0 0
    %70 = vmatpush1.bf16.msra.mxu0 %v58
    %71 = vmatprep.subr.bf16.mxu0 0
    %72 = vmatpush1.bf16.msra.mxu0 %v59
    %73 = vmatprep.subr.bf16.mxu0 0
    %74 = vmatpush1.bf16.msra.mxu0 0
    %75 = vmatprep.subr.bf16.mxu0 0
    %76 = vmatpush1.bf16.msra.mxu0 0
    %77 = vmatprep.subr.bf16.mxu0 0
    %78 = vmatpush1.bf16.msra.mxu0 0
    %79 = vmatprep.subr.bf16.mxu0 0
    %80 = vmatpush1.bf16.msra.mxu0 0
    %81 = vmatprep.subr.bf16.mxu0 0
    %82 = vmatpush1.bf16.msra.mxu0 0
    %83 = vmatprep.subr.bf16.mxu0 0
    %84 = vmatpush1.bf16.msra.mxu0 0
    %85 = vmatprep.subr.bf16.mxu0 0
    %86 = vmatpush1.bf16.msra.mxu0 0
    %87 = vmatprep.subr.bf16.mxu0 0
    %88 = vmatpush1.bf16.msra.mxu0 0
    %89 = vmatprep.subr.bf16.mxu0 0
    %90 = vmatpush1.bf16.msra.mxu0 0
    %91 = vmatprep.subr.bf16.mxu0 0
    %92 = vmatpush1.bf16.msra.mxu0 0
    %93 = vmatprep.subr.bf16.mxu0 0
    %94 = vmatpush1.bf16.msra.mxu0 0
    %95 = vmatprep.subr.bf16.mxu0 0
    %96 = vmatpush1.bf16.msra.mxu0 0
    %97 = vmatprep.subr.bf16.mxu0 0
    %98 = vmatpush1.bf16.msra.mxu0 0
    %99 = vmatprep.subr.bf16.mxu0 0
    %100 = vmatpush1.bf16.msra.mxu0 0
    %101 = vmatprep.mubr.bf16.mxu0 0
    %102 = vmatmul.mubr.bf16.gmra.mrb[0].mxu0 %v64
    %v103 = vpop.f32.mrb[0].mxu0
    %v104 = vadd.f32 0.0, %v103
    %v105 = vpop.f32.mrb[0].mxu0
    %v106 = vpop.f32.mrb[0].mxu0
    %v107 = vadd.f32 0.0, %v106
    %v108 = vpop.f32.mrb[0].mxu0
    %109 = vmatprep.mubr.bf16.mxu0 0
    %110 = vmatmul.mubr.bf16.gmra.mrb[0].mxu0 %v67
    %v111 = vpop.f32.mrb[0].mxu0
    %v112 = vadd.f32 0.0, %v111
    %v113 = vpop.f32.mrb[0].mxu0
    %v114 = vpop.f32.mrb[0].mxu0
    %v115 = vadd.f32 0.0, %v114
    %v116 = vpop.f32.mrb[0].mxu0
    %117 = vdwg.mxu0
    %vm118 = vcmask 523520
    %v119 = vsel %vm118, %v104, -inf
    %v120 = vsel %vm118, %v107, -inf
    %v121 = vsel %vm118, %v112, -inf
    %v122 = vsel %vm118, %v115, -inf
    %v123 = vmax.f32 %v119, %v120
    %v124 = vmax.f32 %v121, %v122
    %v125 = vmax.f32 %v123, %v124
    %127 = vrot.lane.b32.xlu0 %v125, 96
    %v128 = vpop.permute.xlu0 %127
    %v130 = vadd.f32 %v104, %v128
    %v131 = vadd.f32 %v107, %v128
    %v132 = vadd.f32 %v112, %v128
    %v133 = vadd.f32 %v115, %v128
    %v134 = vld [vmem:[%s5] sm:$0x1]
    %v135 = vlaneseq
    %v136 = vshrl.u32 %v135, 7
    %v137 = vsub.s32 0, %v136
    %v138 = vrot.slane %v134, %v137
    %v139 = vadd.f32 %v130, %v138
    %v140 = vadd.f32 %v131, %v138
    %v141 = vadd.f32 %v132, %v138
    %v142 = vadd.f32 %v133, %v138
    %v143 = vmax.f32 %v139, 0.0
    %v144 = vmax.f32 %v140, 0.0
    %v145 = vmax.f32 %v141, 0.0
    %v146 = vmax.f32 %v142, 0.0
    %v147 = vpack.c.bf16 %v143, %v143
    %v148 = vpack.c.bf16 %v144, %v144
    %v149 = vpack.c.bf16 %v145, %v145
    %v150 = vpack.c.bf16 %v146, %v146
    %v151 = vld [vmem:[%s2] sm:$0xf]
    %v152 = vld [vmem:[%s2 + $0x4] sm:$0xf]
    %v153 = vld [vmem:[%s2 + $0x8] sm:$0xf]
    %v154 = vld [vmem:[%s2 + $0xc] sm:$0xf]
    %v155 = vld [vmem:[%s5 + $0x1] sm:$0x1]
    %v156 = vlaneseq
    %v157 = vshrl.u32 %v156, 7
    %v158 = vsub.s32 0, %v157
    %v159 = vrot.slane %v155, %v158
    %v164 = vunpack.c.l.b16 %v147
    %v165 = vunpack.c.l.b16 %v148
    %v166 = vunpack.c.l.b16 %v149
    %v167 = vunpack.c.l.b16 %v150
    %v168 = vpack.c.b16 %v165, %v164
    %v169 = vpack.c.b16 %v167, %v166
    %v174 = vunpack.c.l.b16 %v151
    %v175 = vunpack.c.l.b16 %v152
    %v176 = vunpack.c.l.b16 %v153
    %v177 = vunpack.c.l.b16 %v154
    %v178 = vpack.c.b16 %v175, %v174
    %v179 = vpack.c.b16 %v177, %v176
    %v183 = vsel %vm62, %v168, 0
    %v186 = vsel %vm62, %v169, 0
    %188 = vmatprep.subr.bf16.mxu0 0
    %189 = vmatpush1.bf16.msra.mxu0 %v178
    %190 = vmatprep.subr.bf16.mxu0 0
    %191 = vmatpush1.bf16.msra.mxu0 %v179
    %192 = vmatprep.subr.bf16.mxu0 0
    %193 = vmatpush1.bf16.msra.mxu0 0
    %194 = vmatprep.subr.bf16.mxu0 0
    %195 = vmatpush1.bf16.msra.mxu0 0
    %196 = vmatprep.subr.bf16.mxu0 0
    %197 = vmatpush1.bf16.msra.mxu0 0
    %198 = vmatprep.subr.bf16.mxu0 0
    %199 = vmatpush1.bf16.msra.mxu0 0
    %200 = vmatprep.subr.bf16.mxu0 0
    %201 = vmatpush1.bf16.msra.mxu0 0
    %202 = vmatprep.subr.bf16.mxu0 0
    %203 = vmatpush1.bf16.msra.mxu0 0
    %204 = vmatprep.subr.bf16.mxu0 0
    %205 = vmatpush1.bf16.msra.mxu0 0
    %206 = vmatprep.subr.bf16.mxu0 0
    %207 = vmatpush1.bf16.msra.mxu0 0
    %208 = vmatprep.subr.bf16.mxu0 0
    %209 = vmatpush1.bf16.msra.mxu0 0
    %210 = vmatprep.subr.bf16.mxu0 0
    %211 = vmatpush1.bf16.msra.mxu0 0
    %212 = vmatprep.subr.bf16.mxu0 0
    %213 = vmatpush1.bf16.msra.mxu0 0
    %214 = vmatprep.subr.bf16.mxu0 0
    %215 = vmatpush1.bf16.msra.mxu0 0
    %216 = vmatprep.subr.bf16.mxu0 0
    %217 = vmatpush1.bf16.msra.mxu0 0
    %218 = vmatprep.subr.bf16.mxu0 0
    %219 = vmatpush1.bf16.msra.mxu0 0
    %220 = vmatprep.mubr.bf16.mxu0 0
    %221 = vmatmul.mubr.bf16.gmra.mrb[0].mxu0 %v183
    %v222 = vpop.f32.mrb[0].mxu0
    %v223 = vadd.f32 %v159, %v222
    %v224 = vpop.f32.mrb[0].mxu0
    %v225 = vpop.f32.mrb[0].mxu0
    %v226 = vadd.f32 %v159, %v225
    %v227 = vpop.f32.mrb[0].mxu0
    %228 = vmatprep.mubr.bf16.mxu0 0
    %229 = vmatmul.mubr.bf16.gmra.mrb[0].mxu0 %v186
    %v230 = vpop.f32.mrb[0].mxu0
    %v231 = vadd.f32 %v159, %v230
    %v232 = vpop.f32.mrb[0].mxu0
    %v233 = vpop.f32.mrb[0].mxu0
    %v234 = vadd.f32 %v159, %v233
    %v235 = vpop.f32.mrb[0].mxu0
    %236 = vdwg.mxu0
    %v237 = vpack.c.bf16 %v223, %v223
    %v238 = vpack.c.bf16 %v226, %v226
    %v239 = vpack.c.bf16 %v231, %v231
    %v240 = vpack.c.bf16 %v234, %v234
    %v242 = vsel %vm62, %v237, 0
    %v245 = vsel %vm62, %v147, 0
    %247 = vmatprep.subr.bf16.mxu0 0
    %248 = vmatpush1.bf16.xpose.msra.mxu0 %v245
    %249 = vmatprep.subr.bf16.mxu0 0
    %250 = vmatpush1.bf16.xpose.msra.mxu0 0
    %251 = vmatprep.subr.bf16.mxu0 0
    %252 = vmatpush1.bf16.xpose.msra.mxu0 0
    %253 = vmatprep.subr.bf16.mxu0 0
    %254 = vmatpush1.bf16.xpose.msra.mxu0 0
    %255 = vmatprep.subr.bf16.mxu0 0
    %256 = vmatpush1.bf16.xpose.msra.mxu0 0
    %257 = vmatprep.subr.bf16.mxu0 0
    %258 = vmatpush1.bf16.xpose.msra.mxu0 0
    %259 = vmatprep.subr.bf16.mxu0 0
    %260 = vmatpush1.bf16.xpose.msra.mxu0 0
    %261 = vmatprep.subr.bf16.mxu0 0
    %262 = vmatpush1.bf16.xpose.msra.mxu0 0
    %263 = vmatprep.subr.bf16.mxu0 0
    %264 = vmatpush1.bf16.xpose.msra.mxu0 0
    %265 = vmatprep.subr.bf16.mxu0 0
    %266 = vmatpush1.bf16.xpose.msra.mxu0 0
    %267 = vmatprep.subr.bf16.mxu0 0
    %268 = vmatpush1.bf16.xpose.msra.mxu0 0
    %269 = vmatprep.subr.bf16.mxu0 0
    %270 = vmatpush1.bf16.xpose.msra.mxu0 0
    %271 = vmatprep.subr.bf16.mxu0 0
    %272 = vmatpush1.bf16.xpose.msra.mxu0 0
    %273 = vmatprep.subr.bf16.mxu0 0
    %274 = vmatpush1.bf16.xpose.msra.mxu0 0
    %275 = vmatprep.subr.bf16.mxu0 0
    %276 = vmatpush1.bf16.xpose.msra.mxu0 0
    %277 = vmatprep.subr.bf16.mxu0 0
    %278 = vmatpush1.bf16.xpose.msra.mxu0 0
    %279 = vmatprep.mubr.bf16.mxu0 0
    %280 = vmatmul.mubr.bf16.gmra.mrb[0].mxu0 %v242
    %v281 = vpop.f32.mrb[0].mxu0
    %v282 = vadd.f32 0.0, %v281
    %v283 = vpop.f32.mrb[0].mxu0
    %v284 = vpop.f32.mrb[0].mxu0
    %v285 = vpop.f32.mrb[0].mxu0
    %286 = vdwg.mxu0
    %v288 = vsel %vm62, %v238, 0
    %v291 = vsel %vm62, %v148, 0
    %293 = vmatprep.subr.bf16.mxu0 0
    %294 = vmatpush1.bf16.xpose.msra.mxu0 %v291
    %295 = vmatprep.subr.bf16.mxu0 0
    %296 = vmatpush1.bf16.xpose.msra.mxu0 0
    %297 = vmatprep.subr.bf16.mxu0 0
    %298 = vmatpush1.bf16.xpose.msra.mxu0 0
    %299 = vmatprep.subr.bf16.mxu0 0
    %300 = vmatpush1.bf16.xpose.msra.mxu0 0
    %301 = vmatprep.subr.bf16.mxu0 0
    %302 = vmatpush1.bf16.xpose.msra.mxu0 0
    %303 = vmatprep.subr.bf16.mxu0 0
    %304 = vmatpush1.bf16.xpose.msra.mxu0 0
    %305 = vmatprep.subr.bf16.mxu0 0
    %306 = vmatpush1.bf16.xpose.msra.mxu0 0
    %307 = vmatprep.subr.bf16.mxu0 0
    %308 = vmatpush1.bf16.xpose.msra.mxu0 0
    %309 = vmatprep.subr.bf16.mxu0 0
    %310 = vmatpush1.bf16.xpose.msra.mxu0 0
    %311 = vmatprep.subr.bf16.mxu0 0
    %312 = vmatpush1.bf16.xpose.msra.mxu0 0
    %313 = vmatprep.subr.bf16.mxu0 0
    %314 = vmatpush1.bf16.xpose.msra.mxu0 0
    %315 = vmatprep.subr.bf16.mxu0 0
    %316 = vmatpush1.bf16.xpose.msra.mxu0 0
    %317 = vmatprep.subr.bf16.mxu0 0
    %318 = vmatpush1.bf16.xpose.msra.mxu0 0
    %319 = vmatprep.subr.bf16.mxu0 0
    %320 = vmatpush1.bf16.xpose.msra.mxu0 0
    %321 = vmatprep.subr.bf16.mxu0 0
    %322 = vmatpush1.bf16.xpose.msra.mxu0 0
    %323 = vmatprep.subr.bf16.mxu0 0
    %324 = vmatpush1.bf16.xpose.msra.mxu0 0
    %325 = vmatprep.mubr.bf16.mxu0 0
    %326 = vmatmul.mubr.bf16.gmra.mrb[0].mxu0 %v288
    %v327 = vpop.f32.mrb[0].mxu0
    %v328 = vadd.f32 0.0, %v327
    %v329 = vpop.f32.mrb[0].mxu0
    %v330 = vpop.f32.mrb[0].mxu0
    %v331 = vpop.f32.mrb[0].mxu0
    %332 = vdwg.mxu0
    %v334 = vsel %vm62, %v239, 0
    %v337 = vsel %vm62, %v149, 0
    %339 = vmatprep.subr.bf16.mxu0 0
    %340 = vmatpush1.bf16.xpose.msra.mxu0 %v337
    %341 = vmatprep.subr.bf16.mxu0 0
    %342 = vmatpush1.bf16.xpose.msra.mxu0 0
    %343 = vmatprep.subr.bf16.mxu0 0
    %344 = vmatpush1.bf16.xpose.msra.mxu0 0
    %345 = vmatprep.subr.bf16.mxu0 0
    %346 = vmatpush1.bf16.xpose.msra.mxu0 0
    %347 = vmatprep.subr.bf16.mxu0 0
    %348 = vmatpush1.bf16.xpose.msra.mxu0 0
    %349 = vmatprep.subr.bf16.mxu0 0
    %350 = vmatpush1.bf16.xpose.msra.mxu0 0
    %351 = vmatprep.subr.bf16.mxu0 0
    %352 = vmatpush1.bf16.xpose.msra.mxu0 0
    %353 = vmatprep.subr.bf16.mxu0 0
    %354 = vmatpush1.bf16.xpose.msra.mxu0 0
    %355 = vmatprep.subr.bf16.mxu0 0
    %356 = vmatpush1.bf16.xpose.msra.mxu0 0
    %357 = vmatprep.subr.bf16.mxu0 0
    %358 = vmatpush1.bf16.xpose.msra.mxu0 0
    %359 = vmatprep.subr.bf16.mxu0 0
    %360 = vmatpush1.bf16.xpose.msra.mxu0 0
    %361 = vmatprep.subr.bf16.mxu0 0
    %362 = vmatpush1.bf16.xpose.msra.mxu0 0
    %363 = vmatprep.subr.bf16.mxu0 0
    %364 = vmatpush1.bf16.xpose.msra.mxu0 0
    %365 = vmatprep.subr.bf16.mxu0 0
    %366 = vmatpush1.bf16.xpose.msra.mxu0 0
    %367 = vmatprep.subr.bf16.mxu0 0
    %368 = vmatpush1.bf16.xpose.msra.mxu0 0
    %369 = vmatprep.subr.bf16.mxu0 0
    %370 = vmatpush1.bf16.xpose.msra.mxu0 0
    %371 = vmatprep.mubr.bf16.mxu0 0
    %372 = vmatmul.mubr.bf16.gmra.mrb[0].mxu0 %v334
    %v373 = vpop.f32.mrb[0].mxu0
    %v374 = vadd.f32 0.0, %v373
    %v375 = vpop.f32.mrb[0].mxu0
    %v376 = vpop.f32.mrb[0].mxu0
    %v377 = vpop.f32.mrb[0].mxu0
    %378 = vdwg.mxu0
    %v380 = vsel %vm62, %v240, 0
    %v383 = vsel %vm62, %v150, 0
    %385 = vmatprep.subr.bf16.mxu0 0
    %386 = vmatpush1.bf16.xpose.msra.mxu0 %v383
    %387 = vmatprep.subr.bf16.mxu0 0
    %388 = vmatpush1.bf16.xpose.msra.mxu0 0
    %389 = vmatprep.subr.bf16.mxu0 0
    %390 = vmatpush1.bf16.xpose.msra.mxu0 0
    %391 = vmatprep.subr.bf16.mxu0 0
    %392 = vmatpush1.bf16.xpose.msra.mxu0 0
    %393 = vmatprep.subr.bf16.mxu0 0
    %394 = vmatpush1.bf16.xpose.msra.mxu0 0
    %395 = vmatprep.subr.bf16.mxu0 0
    %396 = vmatpush1.bf16.xpose.msra.mxu0 0
    %397 = vmatprep.subr.bf16.mxu0 0
    %398 = vmatpush1.bf16.xpose.msra.mxu0 0
    %399 = vmatprep.subr.bf16.mxu0 0
    %400 = vmatpush1.bf16.xpose.msra.mxu0 0
    %401 = vmatprep.subr.bf16.mxu0 0
    %402 = vmatpush1.bf16.xpose.msra.mxu0 0
    %403 = vmatprep.subr.bf16.mxu0 0
    %404 = vmatpush1.bf16.xpose.msra.mxu0 0
    %405 = vmatprep.subr.bf16.mxu0 0
    %406 = vmatpush1.bf16.xpose.msra.mxu0 0
    %407 = vmatprep.subr.bf16.mxu0 0
    %408 = vmatpush1.bf16.xpose.msra.mxu0 0
    %409 = vmatprep.subr.bf16.mxu0 0
    %410 = vmatpush1.bf16.xpose.msra.mxu0 0
    %411 = vmatprep.subr.bf16.mxu0 0
    %412 = vmatpush1.bf16.xpose.msra.mxu0 0
    %413 = vmatprep.subr.bf16.mxu0 0
    %414 = vmatpush1.bf16.xpose.msra.mxu0 0
    %415 = vmatprep.subr.bf16.mxu0 0
    %416 = vmatpush1.bf16.xpose.msra.mxu0 0
    %417 = vmatprep.mubr.bf16.mxu0 0
    %418 = vmatmul.mubr.bf16.gmra.mrb[0].mxu0 %v380
    %v419 = vpop.f32.mrb[0].mxu0
    %v420 = vadd.f32 0.0, %v419
    %v421 = vpop.f32.mrb[0].mxu0
    %v422 = vpop.f32.mrb[0].mxu0
    %v423 = vpop.f32.mrb[0].mxu0
    %424 = vdwg.mxu0
    %vm425 = vcmask 64512
    %v426 = vsel %vm425, %v282, -inf
    %427 = vmax.xlane.f32.xlu0 %v426
    %v428 = vpop.xlane.xlu0 %427
    %v429 = vsel %vm425, %v328, -inf
    %430 = vmax.xlane.f32.xlu0 %v429
    %v431 = vpop.xlane.xlu0 %430
    %v432 = vsel %vm425, %v374, -inf
    %433 = vmax.xlane.f32.xlu0 %v432
    %v434 = vpop.xlane.xlu0 %433
    %v435 = vsel %vm425, %v420, -inf
    %436 = vmax.xlane.f32.xlu0 %v435
    %v437 = vpop.xlane.xlu0 %436
    %v438 = vsub.f32 %v282, %v428
    %v439 = vsub.f32 %v328, %v431
    %v440 = vsub.f32 %v374, %v434
    %v441 = vsub.f32 %v420, %v437
    %v442 = vmul.f32 %v438, 1.442695
    %v443 = vpow.pop %v442
    %v444 = vmul.f32 %v439, 1.442695
    %v445 = vpow.pop %v444
    %v446 = vmul.f32 %v440, 1.442695
    %v447 = vpow.pop %v446
    %v448 = vmul.f32 %v441, 1.442695
    %v449 = vpow.pop %v448
    %v450 = vsel %vm425, %v443, 0.0
    %451 = vadd.xlane.f32.xlu0 %v450
    %v452 = vpop.xlane.xlu0 %451
    %v453 = vsel %vm425, %v445, 0.0
    %454 = vadd.xlane.f32.xlu0 %v453
    %v455 = vpop.xlane.xlu0 %454
    %v456 = vsel %vm425, %v447, 0.0
    %457 = vadd.xlane.f32.xlu0 %v456
    %v458 = vpop.xlane.xlu0 %457
    %v459 = vsel %vm425, %v449, 0.0
    %460 = vadd.xlane.f32.xlu0 %v459
    %v461 = vpop.xlane.xlu0 %460
    %v462 = vrcp.pop %v452
    %v463 = vmul.f32 %v443, %v462
    %v464 = vrcp.pop %v455
    %v465 = vmul.f32 %v445, %v464
    %v466 = vrcp.pop %v458
    %v467 = vmul.f32 %v447, %v466
    %v468 = vrcp.pop %v461
    %v469 = vmul.f32 %v449, %v468
    %v470 = vpack.c.bf16 %v463, %v463
    %v471 = vpack.c.bf16 %v465, %v465
    %v472 = vpack.c.bf16 %v467, %v467
    %v473 = vpack.c.bf16 %v469, %v469
    %v475 = vsel %vm425, %v470, 0
    %vm477 = vcmask 1043456
    %v478 = vsel %vm477, %v147, 0
    %480 = vmatprep.subr.bf16.mxu0 0
    %481 = vmatpush1.bf16.msra.mxu0 %v478
    %482 = vmatprep.subr.bf16.mxu0 0
    %483 = vmatpush1.bf16.msra.mxu0 0
    %484 = vmatprep.subr.bf16.mxu0 0
    %485 = vmatpush1.bf16.msra.mxu0 0
    %486 = vmatprep.subr.bf16.mxu0 0
    %487 = vmatpush1.bf16.msra.mxu0 0
    %488 = vmatprep.subr.bf16.mxu0 0
    %489 = vmatpush1.bf16.msra.mxu0 0
    %490 = vmatprep.subr.bf16.mxu0 0
    %491 = vmatpush1.bf16.msra.mxu0 0
    %492 = vmatprep.subr.bf16.mxu0 0
    %493 = vmatpush1.bf16.msra.mxu0 0
    %494 = vmatprep.subr.bf16.mxu0 0
    %495 = vmatpush1.bf16.msra.mxu0 0
    %496 = vmatprep.subr.bf16.mxu0 0
    %497 = vmatpush1.bf16.msra.mxu0 0
    %498 = vmatprep.subr.bf16.mxu0 0
    %499 = vmatpush1.bf16.msra.mxu0 0
    %500 = vmatprep.subr.bf16.mxu0 0
    %501 = vmatpush1.bf16.msra.mxu0 0
    %502 = vmatprep.subr.bf16.mxu0 0
    %503 = vmatpush1.bf16.msra.mxu0 0
    %504 = vmatprep.subr.bf16.mxu0 0
    %505 = vmatpush1.bf16.msra.mxu0 0
    %506 = vmatprep.subr.bf16.mxu0 0
    %507 = vmatpush1.bf16.msra.mxu0 0
    %508 = vmatprep.subr.bf16.mxu0 0
    %509 = vmatpush1.bf16.msra.mxu0 0
    %510 = vmatprep.subr.bf16.mxu0 0
    %511 = vmatpush1.bf16.msra.mxu0 0
    %512 = vmatprep.mubr.bf16.mxu0 0
    %513 = vmatmul.mubr.bf16.gmra.mrb[0].mxu0 %v475
    %v514 = vpop.f32.mrb[0].mxu0
    %v515 = vadd.f32 0.0, %v514
    %v516 = vpop.f32.mrb[0].mxu0
    %v517 = vpop.f32.mrb[0].mxu0
    %v518 = vpop.f32.mrb[0].mxu0
    %519 = vdwg.mxu0
    %v521 = vsel %vm425, %v471, 0
    %v523 = vsel %vm477, %v148, 0
    %525 = vmatprep.subr.bf16.mxu0 0
    %526 = vmatpush1.bf16.msra.mxu0 %v523
    %527 = vmatprep.subr.bf16.mxu0 0
    %528 = vmatpush1.bf16.msra.mxu0 0
    %529 = vmatprep.subr.bf16.mxu0 0
    %530 = vmatpush1.bf16.msra.mxu0 0
    %531 = vmatprep.subr.bf16.mxu0 0
    %532 = vmatpush1.bf16.msra.mxu0 0
    %533 = vmatprep.subr.bf16.mxu0 0
    %534 = vmatpush1.bf16.msra.mxu0 0
    %535 = vmatprep.subr.bf16.mxu0 0
    %536 = vmatpush1.bf16.msra.mxu0 0
    %537 = vmatprep.subr.bf16.mxu0 0
    %538 = vmatpush1.bf16.msra.mxu0 0
    %539 = vmatprep.subr.bf16.mxu0 0
    %540 = vmatpush1.bf16.msra.mxu0 0
    %541 = vmatprep.subr.bf16.mxu0 0
    %542 = vmatpush1.bf16.msra.mxu0 0
    %543 = vmatprep.subr.bf16.mxu0 0
    %544 = vmatpush1.bf16.msra.mxu0 0
    %545 = vmatprep.subr.bf16.mxu0 0
    %546 = vmatpush1.bf16.msra.mxu0 0
    %547 = vmatprep.subr.bf16.mxu0 0
    %548 = vmatpush1.bf16.msra.mxu0 0
    %549 = vmatprep.subr.bf16.mxu0 0
    %550 = vmatpush1.bf16.msra.mxu0 0
    %551 = vmatprep.subr.bf16.mxu0 0
    %552 = vmatpush1.bf16.msra.mxu0 0
    %553 = vmatprep.subr.bf16.mxu0 0
    %554 = vmatpush1.bf16.msra.mxu0 0
    %555 = vmatprep.subr.bf16.mxu0 0
    %556 = vmatpush1.bf16.msra.mxu0 0
    %557 = vmatprep.mubr.bf16.mxu0 0
    %558 = vmatmul.mubr.bf16.gmra.mrb[0].mxu0 %v521
    %v559 = vpop.f32.mrb[0].mxu0
    %v560 = vadd.f32 0.0, %v559
    %v561 = vpop.f32.mrb[0].mxu0
    %v562 = vpop.f32.mrb[0].mxu0
    %v563 = vpop.f32.mrb[0].mxu0
    %564 = vdwg.mxu0
    %v566 = vsel %vm425, %v472, 0
    %v568 = vsel %vm477, %v149, 0
    %570 = vmatprep.subr.bf16.mxu0 0
    %571 = vmatpush1.bf16.msra.mxu0 %v568
    %572 = vmatprep.subr.bf16.mxu0 0
    %573 = vmatpush1.bf16.msra.mxu0 0
    %574 = vmatprep.subr.bf16.mxu0 0
    %575 = vmatpush1.bf16.msra.mxu0 0
    %576 = vmatprep.subr.bf16.mxu0 0
    %577 = vmatpush1.bf16.msra.mxu0 0
    %578 = vmatprep.subr.bf16.mxu0 0
    %579 = vmatpush1.bf16.msra.mxu0 0
    %580 = vmatprep.subr.bf16.mxu0 0
    %581 = vmatpush1.bf16.msra.mxu0 0
    %582 = vmatprep.subr.bf16.mxu0 0
    %583 = vmatpush1.bf16.msra.mxu0 0
    %584 = vmatprep.subr.bf16.mxu0 0
    %585 = vmatpush1.bf16.msra.mxu0 0
    %586 = vmatprep.subr.bf16.mxu0 0
    %587 = vmatpush1.bf16.msra.mxu0 0
    %588 = vmatprep.subr.bf16.mxu0 0
    %589 = vmatpush1.bf16.msra.mxu0 0
    %590 = vmatprep.subr.bf16.mxu0 0
    %591 = vmatpush1.bf16.msra.mxu0 0
    %592 = vmatprep.subr.bf16.mxu0 0
    %593 = vmatpush1.bf16.msra.mxu0 0
    %594 = vmatprep.subr.bf16.mxu0 0
    %595 = vmatpush1.bf16.msra.mxu0 0
    %596 = vmatprep.subr.bf16.mxu0 0
    %597 = vmatpush1.bf16.msra.mxu0 0
    %598 = vmatprep.subr.bf16.mxu0 0
    %599 = vmatpush1.bf16.msra.mxu0 0
    %600 = vmatprep.subr.bf16.mxu0 0
    %601 = vmatpush1.bf16.msra.mxu0 0
    %602 = vmatprep.mubr.bf16.mxu0 0
    %603 = vmatmul.mubr.bf16.gmra.mrb[0].mxu0 %v566
    %v604 = vpop.f32.mrb[0].mxu0
    %v605 = vadd.f32 0.0, %v604
    %v606 = vpop.f32.mrb[0].mxu0
    %v607 = vpop.f32.mrb[0].mxu0
    %v608 = vpop.f32.mrb[0].mxu0
    %609 = vdwg.mxu0
    %v611 = vsel %vm425, %v473, 0
    %v613 = vsel %vm477, %v150, 0
    %615 = vmatprep.subr.bf16.mxu0 0
    %616 = vmatpush1.bf16.msra.mxu0 %v613
    %617 = vmatprep.subr.bf16.mxu0 0
    %618 = vmatpush1.bf16.msra.mxu0 0
    %619 = vmatprep.subr.bf16.mxu0 0
    %620 = vmatpush1.bf16.msra.mxu0 0
    %621 = vmatprep.subr.bf16.mxu0 0
    %622 = vmatpush1.bf16.msra.mxu0 0
    %623 = vmatprep.subr.bf16.mxu0 0
    %624 = vmatpush1.bf16.msra.mxu0 0
    %625 = vmatprep.subr.bf16.mxu0 0
    %626 = vmatpush1.bf16.msra.mxu0 0
    %627 = vmatprep.subr.bf16.mxu0 0
    %628 = vmatpush1.bf16.msra.mxu0 0
    %629 = vmatprep.subr.bf16.mxu0 0
    %630 = vmatpush1.bf16.msra.mxu0 0
    %631 = vmatprep.subr.bf16.mxu0 0
    %632 = vmatpush1.bf16.msra.mxu0 0
    %633 = vmatprep.subr.bf16.mxu0 0
    %634 = vmatpush1.bf16.msra.mxu0 0
    %635 = vmatprep.subr.bf16.mxu0 0
    %636 = vmatpush1.bf16.msra.mxu0 0
    %637 = vmatprep.subr.bf16.mxu0 0
    %638 = vmatpush1.bf16.msra.mxu0 0
    %639 = vmatprep.subr.bf16.mxu0 0
    %640 = vmatpush1.bf16.msra.mxu0 0
    %641 = vmatprep.subr.bf16.mxu0 0
    %642 = vmatpush1.bf16.msra.mxu0 0
    %643 = vmatprep.subr.bf16.mxu0 0
    %644 = vmatpush1.bf16.msra.mxu0 0
    %645 = vmatprep.subr.bf16.mxu0 0
    %646 = vmatpush1.bf16.msra.mxu0 0
    %647 = vmatprep.mubr.bf16.mxu0 0
    %648 = vmatmul.mubr.bf16.gmra.mrb[0].mxu0 %v611
    %v649 = vpop.f32.mrb[0].mxu0
    %v650 = vadd.f32 0.0, %v649
    %v651 = vpop.f32.mrb[0].mxu0
    %v652 = vpop.f32.mrb[0].mxu0
    %v653 = vpop.f32.mrb[0].mxu0
    %654 = vdwg.mxu0
    %659 = vrot.lane.b32.xlu0 %v515, 32
    %v660 = vpop.permute.xlu0 %659
    %661 = vrot.lane.b32.xlu0 %v560, 32
    %v662 = vpop.permute.xlu0 %661
    %663 = vrot.lane.b32.xlu0 %v605, 32
    %v664 = vpop.permute.xlu0 %663
    %665 = vrot.lane.b32.xlu0 %v650, 32
    %v666 = vpop.permute.xlu0 %665
    %v671 = vsel %vm62, %v143, %v660
    %v672 = vsel %vm62, %v144, %v662
    %v673 = vsel %vm62, %v145, %v664
    %v674 = vsel %vm62, %v146, %v666
    %v675 = vpack.c.bf16 %v671, %v671
    %v676 = vpack.c.bf16 %v672, %v672
    %v677 = vpack.c.bf16 %v673, %v673
    %v678 = vpack.c.bf16 %v674, %v674
    %v679 = vld [vmem:[%s3] sm:$0xf]
    %v680 = vld [vmem:[%s3 + $0x4] sm:$0xf]
    %v681 = vld [vmem:[%s3 + $0x8] sm:$0xf]
    %v682 = vld [vmem:[%s3 + $0xc] sm:$0xf]
    %v683 = vld [vmem:[%s3 + $0x10] sm:$0xf]
    %v684 = vld [vmem:[%s3 + $0x14] sm:$0xf]
    %v685 = vld [vmem:[%s3 + $0x18] sm:$0xf]
    %v686 = vld [vmem:[%s3 + $0x1c] sm:$0xf]
    %v687 = vld [vmem:[%s5 + $0x2] sm:$0x1]
    %v688 = vlaneseq
    %v689 = vshrl.u32 %v688, 7
    %v690 = vsub.s32 0, %v689
    %v691 = vrot.slane %v687, %v690
    %v696 = vunpack.c.l.b16 %v675
    %v697 = vunpack.c.l.b16 %v676
    %v698 = vunpack.c.l.b16 %v677
    %v699 = vunpack.c.l.b16 %v678
    %v700 = vpack.c.b16 %v697, %v696
    %v701 = vpack.c.b16 %v699, %v698
    %v710 = vunpack.c.l.b16 %v679
    %v711 = vunpack.c.l.b16 %v680
    %v712 = vunpack.c.l.b16 %v681
    %v713 = vunpack.c.l.b16 %v682
    %v714 = vunpack.c.l.b16 %v683
    %v715 = vunpack.c.l.b16 %v684
    %v716 = vunpack.c.l.b16 %v685
    %v717 = vunpack.c.l.b16 %v686
    %v718 = vpack.c.b16 %v711, %v710
    %v719 = vpack.c.b16 %v713, %v712
    %v720 = vpack.c.b16 %v715, %v714
    %v721 = vpack.c.b16 %v717, %v716
    %vm726 = vcmask 523264
    %v728 = vsel %vm726, %v700, 0
    %v731 = vsel %vm726, %v701, 0
    %733 = vmatprep.subr.bf16.mxu0 0
    %734 = vmatpush1.bf16.msra.mxu0 %v718
    %735 = vmatprep.subr.bf16.mxu0 0
    %736 = vmatpush1.bf16.msra.mxu0 %v719
    %737 = vmatprep.subr.bf16.mxu0 0
    %738 = vmatpush1.bf16.msra.mxu0 %v720
    %739 = vmatprep.subr.bf16.mxu0 0
    %740 = vmatpush1.bf16.msra.mxu0 %v721
    %741 = vmatprep.subr.bf16.mxu0 0
    %742 = vmatpush1.bf16.msra.mxu0 0
    %743 = vmatprep.subr.bf16.mxu0 0
    %744 = vmatpush1.bf16.msra.mxu0 0
    %745 = vmatprep.subr.bf16.mxu0 0
    %746 = vmatpush1.bf16.msra.mxu0 0
    %747 = vmatprep.subr.bf16.mxu0 0
    %748 = vmatpush1.bf16.msra.mxu0 0
    %749 = vmatprep.subr.bf16.mxu0 0
    %750 = vmatpush1.bf16.msra.mxu0 0
    %751 = vmatprep.subr.bf16.mxu0 0
    %752 = vmatpush1.bf16.msra.mxu0 0
    %753 = vmatprep.subr.bf16.mxu0 0
    %754 = vmatpush1.bf16.msra.mxu0 0
    %755 = vmatprep.subr.bf16.mxu0 0
    %756 = vmatpush1.bf16.msra.mxu0 0
    %757 = vmatprep.subr.bf16.mxu0 0
    %758 = vmatpush1.bf16.msra.mxu0 0
    %759 = vmatprep.subr.bf16.mxu0 0
    %760 = vmatpush1.bf16.msra.mxu0 0
    %761 = vmatprep.subr.bf16.mxu0 0
    %762 = vmatpush1.bf16.msra.mxu0 0
    %763 = vmatprep.subr.bf16.mxu0 0
    %764 = vmatpush1.bf16.msra.mxu0 0
    %765 = vmatprep.mubr.bf16.mxu0 0
    %766 = vmatmul.mubr.bf16.gmra.mrb[0].mxu0 %v728
    %v767 = vpop.f32.mrb[0].mxu0
    %v768 = vadd.f32 %v691, %v767
    %v769 = vpop.f32.mrb[0].mxu0
    %v770 = vpop.f32.mrb[0].mxu0
    %v771 = vadd.f32 %v691, %v770
    %v772 = vpop.f32.mrb[0].mxu0
    %773 = vmatprep.mubr.bf16.mxu0 0
    %774 = vmatmul.mubr.bf16.gmra.mrb[0].mxu0 %v731
    %v775 = vpop.f32.mrb[0].mxu0
    %v776 = vadd.f32 %v691, %v775
    %v777 = vpop.f32.mrb[0].mxu0
    %v778 = vpop.f32.mrb[0].mxu0
    %v779 = vadd.f32 %v691, %v778
    %v780 = vpop.f32.mrb[0].mxu0
    %781 = vdwg.mxu0
    %v782 = vmax.f32 %v768, 0.0
    %v783 = vmax.f32 %v771, 0.0
    %v784 = vmax.f32 %v776, 0.0
    %v785 = vmax.f32 %v779, 0.0
    %v786 = vpack.c.bf16 %v782, %v782
    %v787 = vpack.c.bf16 %v783, %v783
    %v788 = vpack.c.bf16 %v784, %v784
    %v789 = vpack.c.bf16 %v785, %v785
    %v790 = vld [vmem:[%s4] sm:$0xf]
    %v791 = vld [vmem:[%s4 + $0x4] sm:$0xf]
    %v792 = vld [vmem:[%s4 + $0x8] sm:$0xf]
    %v793 = vld [vmem:[%s4 + $0xc] sm:$0xf]
    %v794 = vld [vmem:[%s6] sm:$0x1]
    %v796 = vlaneseq
    %v797 = vshrl.u32 %v796, 7
    %v798 = vsub.s32 0, %v797
    %v799 = vrot.slane %v794, %v798
    %v805 = vunpack.c.l.b16 %v786
    %v806 = vunpack.c.l.b16 %v787
    %v807 = vunpack.c.l.b16 %v788
    %v808 = vunpack.c.l.b16 %v789
    %v809 = vpack.c.b16 %v806, %v805
    %v810 = vpack.c.b16 %v808, %v807
    %v815 = vunpack.c.l.b16 %v790
    %v816 = vunpack.c.l.b16 %v791
    %v817 = vunpack.c.l.b16 %v792
    %v818 = vunpack.c.l.b16 %v793
    %v819 = vpack.c.b16 %v816, %v815
    %v820 = vpack.c.b16 %v818, %v817
    %v824 = vsel %vm62, %v809, 0
    %v827 = vsel %vm62, %v810, 0
    %829 = vmatprep.subr.bf16.mxu0 0
    %830 = vmatpush1.bf16.msra.mxu0 %v819
    %831 = vmatprep.subr.bf16.mxu0 0
    %832 = vmatpush1.bf16.msra.mxu0 %v820
    %833 = vmatprep.subr.bf16.mxu0 0
    %834 = vmatpush1.bf16.msra.mxu0 0
    %835 = vmatprep.subr.bf16.mxu0 0
    %836 = vmatpush1.bf16.msra.mxu0 0
    %837 = vmatprep.subr.bf16.mxu0 0
    %838 = vmatpush1.bf16.msra.mxu0 0
    %839 = vmatprep.subr.bf16.mxu0 0
    %840 = vmatpush1.bf16.msra.mxu0 0
    %841 = vmatprep.subr.bf16.mxu0 0
    %842 = vmatpush1.bf16.msra.mxu0 0
    %843 = vmatprep.subr.bf16.mxu0 0
    %844 = vmatpush1.bf16.msra.mxu0 0
    %845 = vmatprep.subr.bf16.mxu0 0
    %846 = vmatpush1.bf16.msra.mxu0 0
    %847 = vmatprep.subr.bf16.mxu0 0
    %848 = vmatpush1.bf16.msra.mxu0 0
    %849 = vmatprep.subr.bf16.mxu0 0
    %850 = vmatpush1.bf16.msra.mxu0 0
    %851 = vmatprep.subr.bf16.mxu0 0
    %852 = vmatpush1.bf16.msra.mxu0 0
    %853 = vmatprep.subr.bf16.mxu0 0
    %854 = vmatpush1.bf16.msra.mxu0 0
    %855 = vmatprep.subr.bf16.mxu0 0
    %856 = vmatpush1.bf16.msra.mxu0 0
    %857 = vmatprep.subr.bf16.mxu0 0
    %858 = vmatpush1.bf16.msra.mxu0 0
    %859 = vmatprep.subr.bf16.mxu0 0
    %860 = vmatpush1.bf16.msra.mxu0 0
    %861 = vmatprep.mubr.bf16.mxu0 0
    %862 = vmatmul.mubr.bf16.gmra.mrb[0].mxu0 %v824
    %v863 = vpop.f32.mrb[0].mxu0
    %v864 = vadd.f32 %v799, %v863
    %v865 = vpop.f32.mrb[0].mxu0
    %v866 = vpop.f32.mrb[0].mxu0
    %v867 = vadd.f32 %v799, %v866
    %v868 = vpop.f32.mrb[0].mxu0
    %869 = vmatprep.mubr.bf16.mxu0 0
    %870 = vmatmul.mubr.bf16.gmra.mrb[0].mxu0 %v827
    %v871 = vpop.f32.mrb[0].mxu0
    %v872 = vadd.f32 %v799, %v871
    %v873 = vpop.f32.mrb[0].mxu0
    %v874 = vpop.f32.mrb[0].mxu0
    %v875 = vadd.f32 %v799, %v874
    %v876 = vpop.f32.mrb[0].mxu0
    %877 = vdwg.mxu0
    %vm878 = vcmask 130048
    %v879 = vsel %vm878, %v864, -inf
    %880 = vmax.xlane.f32.xlu0 %v879
    %v881 = vpop.xlane.xlu0 %880
    %v882 = vsel %vm878, %v867, -inf
    %883 = vmax.xlane.f32.xlu0 %v882
    %v884 = vpop.xlane.xlu0 %883
    %v885 = vsel %vm878, %v872, -inf
    %886 = vmax.xlane.f32.xlu0 %v885
    %v887 = vpop.xlane.xlu0 %886
    %v888 = vsel %vm878, %v875, -inf
    %889 = vmax.xlane.f32.xlu0 %v888
    %v890 = vpop.xlane.xlu0 %889
    %v891 = vsub.f32 %v864, %v881
    %v892 = vsub.f32 %v867, %v884
    %v893 = vsub.f32 %v872, %v887
    %v894 = vsub.f32 %v875, %v890
    %v895 = vmul.f32 %v891, 1.442695
    %v896 = vpow.pop %v895
    %v897 = vmul.f32 %v892, 1.442695
    %v898 = vpow.pop %v897
    %v899 = vmul.f32 %v893, 1.442695
    %v900 = vpow.pop %v899
    %v901 = vmul.f32 %v894, 1.442695
    %v902 = vpow.pop %v901
    %v903 = vsel %vm878, %v896, 0.0
    %904 = vadd.xlane.f32.xlu0 %v903
    %v905 = vpop.xlane.xlu0 %904
    %v906 = vsel %vm878, %v898, 0.0
    %907 = vadd.xlane.f32.xlu0 %v906
    %v908 = vpop.xlane.xlu0 %907
    %v909 = vsel %vm878, %v900, 0.0
    %910 = vadd.xlane.f32.xlu0 %v909
    %v911 = vpop.xlane.xlu0 %910
    %v912 = vsel %vm878, %v902, 0.0
    %913 = vadd.xlane.f32.xlu0 %v912
    %v914 = vpop.xlane.xlu0 %913
    %v915 = vlog2.pop %v905
    %v916 = vmul.f32 %v915, 0.6931472
    %v917 = vlog2.pop %v908
    %v918 = vmul.f32 %v917, 0.6931472
    %v919 = vlog2.pop %v911
    %v920 = vmul.f32 %v919, 0.6931472
    %v921 = vlog2.pop %v914
    %v922 = vmul.f32 %v921, 0.6931472
    %v923 = vadd.f32 %v881, %v916
    %v924 = vadd.f32 %v884, %v918
    %v925 = vadd.f32 %v887, %v920
    %v926 = vadd.f32 %v890, %v922
    %v927 = vsub.f32 %v864, %v923
    %v928 = vsub.f32 %v867, %v924
    %v929 = vsub.f32 %v872, %v925
    %v930 = vsub.f32 %v875, %v926
    %931 = vst.msk [vmem:[#allocation2] sm:$0xff] %vm878, %v927
    %932 = vst.msk [vmem:[#allocation2 + $0x8] sm:$0xff] %vm878, %v928
    %933 = vst.msk [vmem:[#allocation2 + $0x10] sm:$0xff] %vm878, %v929
    %934 = vst.msk [vmem:[#allocation2 + $0x18] sm:$0xff] %vm878, %v930
    // Predicated region
    $region30: #{forward.3} parent=1 // pred_check
      _
    $region31: #{forward.3} parent=1 // pred_check_branch
      %936 = sbr.rel (0) target = $region33
    $region32: #{forward.3} parent=1 // pred_region
      %s938 = ssub.s32 512, 512
      %939 = vsyncadd [#allocation3], %s938
      %s940 = sshll.u32 [#allocation2], 4
      %s941 = int_to_ptr.vmem [resolvable:$true] %s940
      %946 = dma.vmem_to_hbm [thread:$0]  %s941, 512, %s7, [#allocation3], 128, 128, 8
    $region33: #{forward.3} parent=1 // pred_fallthru
      _
    // Predicated region
    $region34: #{forward.3} parent=1 // pred_check
      _
    $region35: #{forward.3} parent=1 // pred_check_branch
      %948 = sbr.rel (0) target = $region37
    $region36: #{forward.3} parent=1 // pred_region
      %949 = dma.done [#allocation3], 512
    $region37: #{forward.3} parent=1 // pred_fallthru
      _
    %950 = vsyncpa [#allocation3], 1

// kernel: forward.2
$region0: #{forward.2}
  #allocation0 [shape = 'u32[]', space=smem, size = 0x4, offset = 0x4, fixed_abs, tag = 'smem constant byte address 0x4 - core index']
  #allocation1 [shape = 'u32[144,128]{1,0:T(1,128)}', space=vmem, size = 0x12000, scoped, tag = 'internal scratch']
  #allocation2 [shape = 'f32[8,4,32]{2,1,0:T(4,128)}', space=vmem, size = 0x4000, scoped, tag = 'scratch operand']
  #allocation3 [shape = 'f32[8,4,96]{2,1,0:T(4,128)}', space=vmem, size = 0x4000, scoped, tag = 'scratch operand']
  %s0 = inlined_call_operand.vmem [shape: f32[8,4,32], index: 0, kind: input, shape index: {}]
  %s1 = inlined_call_operand.vmem [shape: bf16[32,96], index: 1, kind: input, shape index: {}]
  %s2 = inlined_call_operand.vmem [shape: f32[32,96], index: 2, kind: input, shape index: {}]
  %s3 = inlined_call_operand.vmem [shape: f32[2,96], index: 3, kind: input, shape index: {}]
  %s4 = inlined_call_operand.vmem [shape: bf16[32,96], index: 4, kind: input, shape index: {}]
  %s5 = inlined_call_operand.vmem [shape: f32[32,96], index: 5, kind: input, shape index: {}]
  %s6 = inlined_call_operand.vmem [shape: f32[2,96], index: 6, kind: input, shape index: {}]
  %s7 = inlined_call_operand.vmem [shape: f32[8,4,32], index: 7, kind: output, shape index: {}]
  %s8 = sld [smem:[#allocation0]]
  $region38: #{forward.2} parent=0
    _
  %s10 = ssub.s32 1, %s8
  %s11 = scalar_select 0, %s10, %s8
  // Predicated region
  $region2: #{forward.2} parent=0 // pred_check
    _
  $region3: #{forward.2} parent=0 // pred_check_branch
    %13 = sbr.rel (0) target = $region5
  $region4: #{forward.2} parent=0 // pred_region
    _
  $region5: #{forward.2} parent=0 // pred_fallthru
    _
  // Predicated region
  $region6: #{forward.2} parent=0 // pred_check
    _
  $region7: #{forward.2} parent=0 // pred_check_branch
    %15 = sbr.rel (0) target = $region9
  $region8: #{forward.2} parent=0 // pred_region
    _
  $region9: #{forward.2} parent=0 // pred_fallthru
    _
  // Predicated region
  $region10: #{forward.2} parent=0 // pred_check
    _
  $region11: #{forward.2} parent=0 // pred_check_branch
    %17 = sbr.rel (0) target = $region13
  $region12: #{forward.2} parent=0 // pred_region
    _
  $region13: #{forward.2} parent=0 // pred_fallthru
    _
  // Predicated region
  $region14: #{forward.2} parent=0 // pred_check
    _
  $region15: #{forward.2} parent=0 // pred_check_branch
    %19 = sbr.rel (0) target = $region17
  $region16: #{forward.2} parent=0 // pred_region
    _
  $region17: #{forward.2} parent=0 // pred_fallthru
    _
  // Predicated region
  $region18: #{forward.2} parent=0 // pred_check
    _
  $region19: #{forward.2} parent=0 // pred_check_branch
    %21 = sbr.rel (0) target = $region21
  $region20: #{forward.2} parent=0 // pred_region
    _
  $region21: #{forward.2} parent=0 // pred_fallthru
    _
  // Predicated region
  $region22: #{forward.2} parent=0 // pred_check
    _
  $region23: #{forward.2} parent=0 // pred_check_branch
    %23 = sbr.rel (0) target = $region25
  $region24: #{forward.2} parent=0 // pred_region
    _
  $region25: #{forward.2} parent=0 // pred_fallthru
    _
  // Predicated region
  $region26: #{forward.2} parent=0 // pred_check
    _
  $region27: #{forward.2} parent=0 // pred_check_branch
    %25 = sbr.rel (0) target = $region29
  $region28: #{forward.2} parent=0 // pred_region
    _
  $region29: #{forward.2} parent=0 // pred_fallthru
    _
  %v27 = vld [vmem:[%s0] sm:$0xf]
  %v28 = vld [vmem:[%s0 + $0x4] sm:$0xf]
  %v29 = vld [vmem:[%s0 + $0x8] sm:$0xf]
  %v30 = vld [vmem:[%s0 + $0xc] sm:$0xf]
  %v31 = vld [vmem:[%s0 + $0x10] sm:$0xf]
  %v32 = vld [vmem:[%s0 + $0x14] sm:$0xf]
  %v33 = vld [vmem:[%s0 + $0x18] sm:$0xf]
  %v34 = vld [vmem:[%s0 + $0x1c] sm:$0xf]
  %v35 = vpack.c.bf16 %v27, %v27
  %v36 = vpack.c.bf16 %v28, %v28
  %v37 = vpack.c.bf16 %v29, %v29
  %v38 = vpack.c.bf16 %v30, %v30
  %v39 = vpack.c.bf16 %v31, %v31
  %v40 = vpack.c.bf16 %v32, %v32
  %v41 = vpack.c.bf16 %v33, %v33
  %v42 = vpack.c.bf16 %v34, %v34
  %v43 = vld [vmem:[%s1] sm:$0xf]
  %v44 = vld [vmem:[%s1 + $0x4] sm:$0xf]
  %v45 = vld [vmem:[%s1 + $0x8] sm:$0xf]
  %v46 = vld [vmem:[%s1 + $0xc] sm:$0xf]
  %v47 = vld [vmem:[%s3] sm:$0x1]
  %v48 = vlaneseq
  %v49 = vshrl.u32 %v48, 7
  %v50 = vsub.s32 0, %v49
  %v51 = vrot.slane %v47, %v50
  %v60 = vcombine.low %v35, %v36
  %v61 = vcombine.low %v37, %v38
  %v63 = vunpack.c.l.s4 1983009808
  %v64 = vunpack.c.0.s8 %v63
  %v65 = vlaneseq
  %v66 = vshrl.u32 %v65, 7
  %v67 = vsub.s32 %v64, %v66
  %v68 = vrot.slane %v60, %v67
  %v70 = vunpack.c.l.s4 1983009808
  %v71 = vunpack.c.0.s8 %v70
  %v72 = vlaneseq
  %v73 = vshrl.u32 %v72, 7
  %v74 = vsub.s32 %v71, %v73
  %v75 = vrot.slane %v61, %v74
  %v76 = vcombine.low %v68, %v75
  %v77 = vcombine.low %v39, %v40
  %v78 = vcombine.low %v41, %v42
  %v80 = vunpack.c.l.s4 1983009808
  %v81 = vunpack.c.0.s8 %v80
  %v82 = vlaneseq
  %v83 = vshrl.u32 %v82, 7
  %v84 = vsub.s32 %v81, %v83
  %v85 = vrot.slane %v77, %v84
  %v87 = vunpack.c.l.s4 1983009808
  %v88 = vunpack.c.0.s8 %v87
  %v89 = vlaneseq
  %v90 = vshrl.u32 %v89, 7
  %v91 = vsub.s32 %v88, %v90
  %v92 = vrot.slane %v78, %v91
  %v93 = vcombine.low %v85, %v92
  %v98 = vunpack.c.l.b16 %v43
  %v99 = vunpack.c.l.b16 %v44
  %v100 = vunpack.c.l.b16 %v45
  %v101 = vunpack.c.l.b16 %v46
  %v102 = vpack.c.b16 %v99, %v98
  %v103 = vpack.c.b16 %v101, %v100
  %v107 = vcombine.low %v51, %v51
  %vm109 = vcmask 261120
  %v111 = vsel %vm109, %v76, 0
  %v114 = vsel %vm109, %v93, 0
  %116 = vmatprep.subr.bf16.mxu0 0
  %117 = vmatpush1.bf16.msra.mxu0 %v102
  %118 = vmatprep.subr.bf16.mxu0 0
  %119 = vmatpush1.bf16.msra.mxu0 %v103
  %120 = vmatprep.subr.bf16.mxu0 0
  %121 = vmatpush1.bf16.msra.mxu0 0
  %122 = vmatprep.subr.bf16.mxu0 0
  %123 = vmatpush1.bf16.msra.mxu0 0
  %124 = vmatprep.subr.bf16.mxu0 0
  %125 = vmatpush1.bf16.msra.mxu0 0
  %126 = vmatprep.subr.bf16.mxu0 0
  %127 = vmatpush1.bf16.msra.mxu0 0
  %128 = vmatprep.subr.bf16.mxu0 0
  %129 = vmatpush1.bf16.msra.mxu0 0
  %130 = vmatprep.subr.bf16.mxu0 0
  %131 = vmatpush1.bf16.msra.mxu0 0
  %132 = vmatprep.subr.bf16.mxu0 0
  %133 = vmatpush1.bf16.msra.mxu0 0
  %134 = vmatprep.subr.bf16.mxu0 0
  %135 = vmatpush1.bf16.msra.mxu0 0
  %136 = vmatprep.subr.bf16.mxu0 0
  %137 = vmatpush1.bf16.msra.mxu0 0
  %138 = vmatprep.subr.bf16.mxu0 0
  %139 = vmatpush1.bf16.msra.mxu0 0
  %140 = vmatprep.subr.bf16.mxu0 0
  %141 = vmatpush1.bf16.msra.mxu0 0
  %142 = vmatprep.subr.bf16.mxu0 0
  %143 = vmatpush1.bf16.msra.mxu0 0
  %144 = vmatprep.subr.bf16.mxu0 0
  %145 = vmatpush1.bf16.msra.mxu0 0
  %146 = vmatprep.subr.bf16.mxu0 0
  %147 = vmatpush1.bf16.msra.mxu0 0
  %148 = vmatprep.mubr.bf16.mxu0 0
  %149 = vmatmul.mubr.bf16.gmra.mrb[0].mxu0 %v111
  %v150 = vpop.f32.mrb[0].mxu0
  %v151 = vadd.f32 %v107, %v150
  %v152 = vpop.f32.mrb[0].mxu0
  %v153 = vpop.f32.mrb[0].mxu0
  %v154 = vadd.f32 %v107, %v153
  %v155 = vpop.f32.mrb[0].mxu0
  %156 = vmatprep.mubr.bf16.mxu0 0
  %157 = vmatmul.mubr.bf16.gmra.mrb[0].mxu0 %v114
  %v158 = vpop.f32.mrb[0].mxu0
  %v159 = vadd.f32 %v107, %v158
  %v160 = vpop.f32.mrb[0].mxu0
  %v161 = vpop.f32.mrb[0].mxu0
  %v162 = vadd.f32 %v107, %v161
  %v163 = vpop.f32.mrb[0].mxu0
  %164 = vdwg.mxu0
  %v169 = vcombine.high %v151, %v151
  %v170 = vcombine.high %v154, %v154
  %v171 = vcombine.high %v159, %v159
  %v172 = vcombine.high %v162, %v162
  %vm177 = vcmask 781312
  %178 = vst.msk [vmem:[#allocation3] sm:$0xf] %vm177, %v151
  %179 = vst.msk [vmem:[#allocation3 + $0x4] sm:$0xf] %vm177, %v169
  %180 = vst.msk [vmem:[#allocation3 + $0x8] sm:$0xf] %vm177, %v154
  %181 = vst.msk [vmem:[#allocation3 + $0xc] sm:$0xf] %vm177, %v170
  %182 = vst.msk [vmem:[#allocation3 + $0x10] sm:$0xf] %vm177, %v159
  %183 = vst.msk [vmem:[#allocation3 + $0x14] sm:$0xf] %vm177, %v171
  %184 = vst.msk [vmem:[#allocation3 + $0x18] sm:$0xf] %vm177, %v162
  %185 = vst.msk [vmem:[#allocation3 + $0x1c] sm:$0xf] %vm177, %v172
  %v186 = vld [vmem:[%s2] sm:$0xff]
  %v187 = vld [vmem:[%s2 + $0x8] sm:$0xff]
  %v188 = vld [vmem:[%s2 + $0x10] sm:$0xff]
  %v189 = vld [vmem:[%s2 + $0x18] sm:$0xff]
  %v190 = vld [vmem:[%s3 + $0x1] sm:$0x1]
  %v191 = vlaneseq
  %v192 = vshrl.u32 %v191, 7
  %v193 = vsub.s32 0, %v192
  %v194 = vrot.slane %v190, %v193
  %v196 = vsel %vm109, 0.0, 0
  %198 = vmatprep.subr.mxu0 0.0
  %199 = vmatpush1.msra.mxu0 %v186
  %200 = vmatprep.subr.mxu0 0.0
  %201 = vmatpush1.msra.mxu0 %v187
  %202 = vmatprep.subr.mxu0 0.0
  %203 = vmatpush1.msra.mxu0 %v188
  %204 = vmatprep.subr.mxu0 0.0
  %205 = vmatpush1.msra.mxu0 %v189
  %206 = vmatprep.subr.mxu0 0.0
  %207 = vmatpush1.msra.mxu0 0.0
  %208 = vmatprep.subr.mxu0 0.0
  %209 = vmatpush1.msra.mxu0 0.0
  %210 = vmatprep.subr.mxu0 0.0
  %211 = vmatpush1.msra.mxu0 0.0
  %212 = vmatprep.subr.mxu0 0.0
  %213 = vmatpush1.msra.mxu0 0.0
  %214 = vmatprep.subr.mxu0 0.0
  %215 = vmatpush1.msra.mxu0 0.0
  %216 = vmatprep.subr.mxu0 0.0
  %217 = vmatpush1.msra.mxu0 0.0
  %218 = vmatprep.subr.mxu0 0.0
  %219 = vmatpush1.msra.mxu0 0.0
  %220 = vmatprep.subr.mxu0 0.0
  %221 = vmatpush1.msra.mxu0 0.0
  %222 = vmatprep.subr.mxu0 0.0
  %223 = vmatpush1.msra.mxu0 0.0
  %224 = vmatprep.subr.mxu0 0.0
  %225 = vmatpush1.msra.mxu0 0.0
  %226 = vmatprep.subr.mxu0 0.0
  %227 = vmatpush1.msra.mxu0 0.0
  %228 = vmatprep.subr.mxu0 0.0
  %229 = vmatpush1.msra.mxu0 0.0
  %230 = vmatprep.subr.mxu0 0.0
  %231 = vmatpush1.msra.mxu0 0.0
  %232 = vmatprep.subr.mxu0 0.0
  %233 = vmatpush1.msra.mxu0 0.0
  %234 = vmatprep.subr.mxu0 0.0
  %235 = vmatpush1.msra.mxu0 0.0
  %236 = vmatprep.subr.mxu0 0.0
  %237 = vmatpush1.msra.mxu0 0.0
  %238 = vmatprep.subr.mxu0 0.0
  %239 = vmatpush1.msra.mxu0 0.0
  %240 = vmatprep.subr.mxu0 0.0
  %241 = vmatpush1.msra.mxu0 0.0
  %242 = vmatprep.subr.mxu0 0.0
  %243 = vmatpush1.msra.mxu0 0.0
  %244 = vmatprep.subr.mxu0 0.0
  %245 = vmatpush1.msra.mxu0 0.0
  %246 = vmatprep.subr.mxu0 0.0
  %247 = vmatpush1.msra.mxu0 0.0
  %248 = vmatprep.subr.mxu0 0.0
  %249 = vmatpush1.msra.mxu0 0.0
  %250 = vmatprep.subr.mxu0 0.0
  %251 = vmatpush1.msra.mxu0 0.0
  %252 = vmatprep.subr.mxu0 0.0
  %253 = vmatpush1.msra.mxu0 0.0
  %254 = vmatprep.subr.mxu0 0.0
  %255 = vmatpush1.msra.mxu0 0.0
  %256 = vmatprep.subr.mxu0 0.0
  %257 = vmatpush1.msra.mxu0 0.0
  %258 = vmatprep.subr.mxu0 0.0
  %259 = vmatpush1.msra.mxu0 0.0
  %260 = vmatprep.subr.mxu0 0.0
  %261 = vmatpush1.msra.mxu0 0.0
  %262 = vmatprep.mubr.f32.mxu0 0.0
  %263 = vmatmul.mubr.f32.gmra.mrb[0].mxu0 %v196
  %v264 = vpop.f32.mrb[0].mxu0
  %v265 = vadd.f32 %v194, %v264
  %v266 = vpop.f32.mrb[0].mxu0
  %267 = vdwg.mxu0
  %v268 = vld [vmem:[#allocation3] sm:$0xf]
  %v269 = vadd.f32 %v268, %v265
  %v270 = vxor.u32 %v269, 2147483648
  %v271 = vmul.f32 %v270, 1.442695
  %v272 = vpow.pop %v271
  %v273 = vadd.f32 %v272, 1.0
  %v274 = vrcp.pop %v273
  %v275 = vmul.f32 1.0, %v274
  %277 = vrot.lane.b32.xlu0 %v265, 64
  %v278 = vpop.permute.xlu0 %277
  %v280 = vmul.f32 %v275, %v278
  %282 = vrot.lane.b32.xlu0 %v280, 64
  %v283 = vpop.permute.xlu0 %282
  %v285 = vadd.f32 %v268, %v283
  %v286 = vtanh.pop %v285
  %v287 = vsub.f32 1.0, %v275
  %289 = vrot.lane.b32.xlu0 %v286, 96
  %v290 = vpop.permute.xlu0 %289
  %v292 = vmul.f32 %v287, %v290
  %v293 = vmul.f32 %v275, 0.0
  %v294 = vadd.f32 %v292, %v293
  %296 = vrot.lane.b32.xlu0 %v294, 96
  %v297 = vpop.permute.xlu0 %296
  %vm299 = vcmask 257024
  %300 = vst.msk [vmem:[#allocation2] sm:$0xf] %vm299, %v297
  %v301 = vsel %vm109, %v297, 0
  %303 = vmatprep.subr.mxu0 0.0
  %304 = vmatpush1.msra.mxu0 %v186
  %305 = vmatprep.subr.mxu0 0.0
  %306 = vmatpush1.msra.mxu0 %v187
  %307 = vmatprep.subr.mxu0 0.0
  %308 = vmatpush1.msra.mxu0 %v188
  %309 = vmatprep.subr.mxu0 0.0
  %310 = vmatpush1.msra.mxu0 %v189
  %311 = vmatprep.subr.mxu0 0.0
  %312 = vmatpush1.msra.mxu0 0.0
  %313 = vmatprep.subr.mxu0 0.0
  %314 = vmatpush1.msra.mxu0 0.0
  %315 = vmatprep.subr.mxu0 0.0
  %316 = vmatpush1.msra.mxu0 0.0
  %317 = vmatprep.subr.mxu0 0.0
  %318 = vmatpush1.msra.mxu0 0.0
  %319 = vmatprep.subr.mxu0 0.0
  %320 = vmatpush1.msra.mxu0 0.0
  %321 = vmatprep.subr.mxu0 0.0
  %322 = vmatpush1.msra.mxu0 0.0
  %323 = vmatprep.subr.mxu0 0.0
  %324 = vmatpush1.msra.mxu0 0.0
  %325 = vmatprep.subr.mxu0 0.0
  %326 = vmatpush1.msra.mxu0 0.0
  %327 = vmatprep.subr.mxu0 0.0
  %328 = vmatpush1.msra.mxu0 0.0
  %329 = vmatprep.subr.mxu0 0.0
  %330 = vmatpush1.msra.mxu0 0.0
  %331 = vmatprep.subr.mxu0 0.0
  %332 = vmatpush1.msra.mxu0 0.0
  %333 = vmatprep.subr.mxu0 0.0
  %334 = vmatpush1.msra.mxu0 0.0
  %335 = vmatprep.subr.mxu0 0.0
  %336 = vmatpush1.msra.mxu0 0.0
  %337 = vmatprep.subr.mxu0 0.0
  %338 = vmatpush1.msra.mxu0 0.0
  %339 = vmatprep.subr.mxu0 0.0
  %340 = vmatpush1.msra.mxu0 0.0
  %341 = vmatprep.subr.mxu0 0.0
  %342 = vmatpush1.msra.mxu0 0.0
  %343 = vmatprep.subr.mxu0 0.0
  %344 = vmatpush1.msra.mxu0 0.0
  %345 = vmatprep.subr.mxu0 0.0
  %346 = vmatpush1.msra.mxu0 0.0
  %347 = vmatprep.subr.mxu0 0.0
  %348 = vmatpush1.msra.mxu0 0.0
  %349 = vmatprep.subr.mxu0 0.0
  %350 = vmatpush1.msra.mxu0 0.0
  %351 = vmatprep.subr.mxu0 0.0
  %352 = vmatpush1.msra.mxu0 0.0
  %353 = vmatprep.subr.mxu0 0.0
  %354 = vmatpush1.msra.mxu0 0.0
  %355 = vmatprep.subr.mxu0 0.0
  %356 = vmatpush1.msra.mxu0 0.0
  %357 = vmatprep.subr.mxu0 0.0
  %358 = vmatpush1.msra.mxu0 0.0
  %359 = vmatprep.subr.mxu0 0.0
  %360 = vmatpush1.msra.mxu0 0.0
  %361 = vmatprep.subr.mxu0 0.0
  %362 = vmatpush1.msra.mxu0 0.0
  %363 = vmatprep.subr.mxu0 0.0
  %364 = vmatpush1.msra.mxu0 0.0
  %365 = vmatprep.subr.mxu0 0.0
  %366 = vmatpush1.msra.mxu0 0.0
  %367 = vmatprep.mubr.f32.mxu0 0.0
  %368 = vmatmul.mubr.f32.gmra.mrb[0].mxu0 %v301
  %v369 = vpop.f32.mrb[0].mxu0
  %v370 = vadd.f32 %v194, %v369
  %v371 = vpop.f32.mrb[0].mxu0
  %372 = vdwg.mxu0
  %s373 = scalar_lea.vmem [#allocation3], 4
  %v374 = vld [vmem:[%s373] sm:$0xf]
  %v375 = vadd.f32 %v374, %v370
  %v376 = vxor.u32 %v375, 2147483648
  %v377 = vmul.f32 %v376, 1.442695
  %v378 = vpow.pop %v377
  %v379 = vadd.f32 %v378, 1.0
  %v380 = vrcp.pop %v379
  %v381 = vmul.f32 1.0, %v380
  %383 = vrot.lane.b32.xlu0 %v370, 64
  %v384 = vpop.permute.xlu0 %383
  %v386 = vmul.f32 %v381, %v384
  %388 = vrot.lane.b32.xlu0 %v386, 64
  %v389 = vpop.permute.xlu0 %388
  %v391 = vadd.f32 %v374, %v389
  %v392 = vtanh.pop %v391
  %v393 = vsub.f32 1.0, %v381
  %395 = vrot.lane.b32.xlu0 %v392, 96
  %v396 = vpop.permute.xlu0 %395
  %v398 = vmul.f32 %v393, %v396
  %v399 = vmul.f32 %v381, %v294
  %v400 = vadd.f32 %v398, %v399
  %402 = vrot.lane.b32.xlu0 %v400, 96
  %v403 = vpop.permute.xlu0 %402
  %s405 = scalar_lea.vmem [#allocation2], 4
  %406 = vst.msk [vmem:[%s405] sm:$0xf] %vm299, %v403
  %v407 = vsel %vm109, %v403, 0
  %409 = vmatprep.subr.mxu0 0.0
  %410 = vmatpush1.msra.mxu0 %v186
  %411 = vmatprep.subr.mxu0 0.0
  %412 = vmatpush1.msra.mxu0 %v187
  %413 = vmatprep.subr.mxu0 0.0
  %414 = vmatpush1.msra.mxu0 %v188
  %415 = vmatprep.subr.mxu0 0.0
  %416 = vmatpush1.msra.mxu0 %v189
  %417 = vmatprep.subr.mxu0 0.0
  %418 = vmatpush1.msra.mxu0 0.0
  %419 = vmatprep.subr.mxu0 0.0
  %420 = vmatpush1.msra.mxu0 0.0
  %421 = vmatprep.subr.mxu0 0.0
  %422 = vmatpush1.msra.mxu0 0.0
  %423 = vmatprep.subr.mxu0 0.0
  %424 = vmatpush1.msra.mxu0 0.0
  %425 = vmatprep.subr.mxu0 0.0
  %426 = vmatpush1.msra.mxu0 0.0
  %427 = vmatprep.subr.mxu0 0.0
  %428 = vmatpush1.msra.mxu0 0.0
  %429 = vmatprep.subr.mxu0 0.0
  %430 = vmatpush1.msra.mxu0 0.0
  %431 = vmatprep.subr.mxu0 0.0
  %432 = vmatpush1.msra.mxu0 0.0
  %433 = vmatprep.subr.mxu0 0.0
  %434 = vmatpush1.msra.mxu0 0.0
  %435 = vmatprep.subr.mxu0 0.0
  %436 = vmatpush1.msra.mxu0 0.0
  %437 = vmatprep.subr.mxu0 0.0
  %438 = vmatpush1.msra.mxu0 0.0
  %439 = vmatprep.subr.mxu0 0.0
  %440 = vmatpush1.msra.mxu0 0.0
  %441 = vmatprep.subr.mxu0 0.0
  %442 = vmatpush1.msra.mxu0 0.0
  %443 = vmatprep.subr.mxu0 0.0
  %444 = vmatpush1.msra.mxu0 0.0
  %445 = vmatprep.subr.mxu0 0.0
  %446 = vmatpush1.msra.mxu0 0.0
  %447 = vmatprep.subr.mxu0 0.0
  %448 = vmatpush1.msra.mxu0 0.0
  %449 = vmatprep.subr.mxu0 0.0
  %450 = vmatpush1.msra.mxu0 0.0
  %451 = vmatprep.subr.mxu0 0.0
  %452 = vmatpush1.msra.mxu0 0.0
  %453 = vmatprep.subr.mxu0 0.0
  %454 = vmatpush1.msra.mxu0 0.0
  %455 = vmatprep.subr.mxu0 0.0
  %456 = vmatpush1.msra.mxu0 0.0
  %457 = vmatprep.subr.mxu0 0.0
  %458 = vmatpush1.msra.mxu0 0.0
  %459 = vmatprep.subr.mxu0 0.0
  %460 = vmatpush1.msra.mxu0 0.0
  %461 = vmatprep.subr.mxu0 0.0
  %462 = vmatpush1.msra.mxu0 0.0
  %463 = vmatprep.subr.mxu0 0.0
  %464 = vmatpush1.msra.mxu0 0.0
  %465 = vmatprep.subr.mxu0 0.0
  %466 = vmatpush1.msra.mxu0 0.0
  %467 = vmatprep.subr.mxu0 0.0
  %468 = vmatpush1.msra.mxu0 0.0
  %469 = vmatprep.subr.mxu0 0.0
  %470 = vmatpush1.msra.mxu0 0.0
  %471 = vmatprep.subr.mxu0 0.0
  %472 = vmatpush1.msra.mxu0 0.0
  %473 = vmatprep.mubr.f32.mxu0 0.0
  %474 = vmatmul.mubr.f32.gmra.mrb[0].mxu0 %v407
  %v475 = vpop.f32.mrb[0].mxu0
  %v476 = vadd.f32 %v194, %v475
  %v477 = vpop.f32.mrb[0].mxu0
  %478 = vdwg.mxu0
  %s479 = scalar_lea.vmem [#allocation3], 8
  %v480 = vld [vmem:[%s479] sm:$0xf]
  %v481 = vadd.f32 %v480, %v476
  %v482 = vxor.u32 %v481, 2147483648
  %v483 = vmul.f32 %v482, 1.442695
  %v484 = vpow.pop %v483
  %v485 = vadd.f32 %v484, 1.0
  %v486 = vrcp.pop %v485
  %v487 = vmul.f32 1.0, %v486
  %489 = vrot.lane.b32.xlu0 %v476, 64
  %v490 = vpop.permute.xlu0 %489
  %v492 = vmul.f32 %v487, %v490
  %494 = vrot.lane.b32.xlu0 %v492, 64
  %v495 = vpop.permute.xlu0 %494
  %v497 = vadd.f32 %v480, %v495
  %v498 = vtanh.pop %v497
  %v499 = vsub.f32 1.0, %v487
  %501 = vrot.lane.b32.xlu0 %v498, 96
  %v502 = vpop.permute.xlu0 %501
  %v504 = vmul.f32 %v499, %v502
  %v505 = vmul.f32 %v487, %v400
  %v506 = vadd.f32 %v504, %v505
  %508 = vrot.lane.b32.xlu0 %v506, 96
  %v509 = vpop.permute.xlu0 %508
  %s511 = scalar_lea.vmem [#allocation2], 8
  %512 = vst.msk [vmem:[%s511] sm:$0xf] %vm299, %v509
  %v513 = vsel %vm109, %v509, 0
  %515 = vmatprep.subr.mxu0 0.0
  %516 = vmatpush1.msra.mxu0 %v186
  %517 = vmatprep.subr.mxu0 0.0
  %518 = vmatpush1.msra.mxu0 %v187
  %519 = vmatprep.subr.mxu0 0.0
  %520 = vmatpush1.msra.mxu0 %v188
  %521 = vmatprep.subr.mxu0 0.0
  %522 = vmatpush1.msra.mxu0 %v189
  %523 = vmatprep.subr.mxu0 0.0
  %524 = vmatpush1.msra.mxu0 0.0
  %525 = vmatprep.subr.mxu0 0.0
  %526 = vmatpush1.msra.mxu0 0.0
  %527 = vmatprep.subr.mxu0 0.0
  %528 = vmatpush1.msra.mxu0 0.0
  %529 = vmatprep.subr.mxu0 0.0
  %530 = vmatpush1.msra.mxu0 0.0
  %531 = vmatprep.subr.mxu0 0.0
  %532 = vmatpush1.msra.mxu0 0.0
  %533 = vmatprep.subr.mxu0 0.0
  %534 = vmatpush1.msra.mxu0 0.0
  %535 = vmatprep.subr.mxu0 0.0
  %536 = vmatpush1.msra.mxu0 0.0
  %537 = vmatprep.subr.mxu0 0.0
  %538 = vmatpush1.msra.mxu0 0.0
  %539 = vmatprep.subr.mxu0 0.0
  %540 = vmatpush1.msra.mxu0 0.0
  %541 = vmatprep.subr.mxu0 0.0
  %542 = vmatpush1.msra.mxu0 0.0
  %543 = vmatprep.subr.mxu0 0.0
  %544 = vmatpush1.msra.mxu0 0.0
  %545 = vmatprep.subr.mxu0 0.0
  %546 = vmatpush1.msra.mxu0 0.0
  %547 = vmatprep.subr.mxu0 0.0
  %548 = vmatpush1.msra.mxu0 0.0
  %549 = vmatprep.subr.mxu0 0.0
  %550 = vmatpush1.msra.mxu0 0.0
  %551 = vmatprep.subr.mxu0 0.0
  %552 = vmatpush1.msra.mxu0 0.0
  %553 = vmatprep.subr.mxu0 0.0
  %554 = vmatpush1.msra.mxu0 0.0
  %555 = vmatprep.subr.mxu0 0.0
  %556 = vmatpush1.msra.mxu0 0.0
  %557 = vmatprep.subr.mxu0 0.0
  %558 = vmatpush1.msra.mxu0 0.0
  %559 = vmatprep.subr.mxu0 0.0
  %560 = vmatpush1.msra.mxu0 0.0
  %561 = vmatprep.subr.mxu0 0.0
  %562 = vmatpush1.msra.mxu0 0.0
  %563 = vmatprep.subr.mxu0 0.0
  %564 = vmatpush1.msra.mxu0 0.0
  %565 = vmatprep.subr.mxu0 0.0
  %566 = vmatpush1.msra.mxu0 0.0
  %567 = vmatprep.subr.mxu0 0.0
  %568 = vmatpush1.msra.mxu0 0.0
  %569 = vmatprep.subr.mxu0 0.0
  %570 = vmatpush1.msra.mxu0 0.0
  %571 = vmatprep.subr.mxu0 0.0
  %572 = vmatpush1.msra.mxu0 0.0
  %573 = vmatprep.subr.mxu0 0.0
  %574 = vmatpush1.msra.mxu0 0.0
  %575 = vmatprep.subr.mxu0 0.0
  %576 = vmatpush1.msra.mxu0 0.0
  %577 = vmatprep.subr.mxu0 0.0
  %578 = vmatpush1.msra.mxu0 0.0
  %579 = vmatprep.mubr.f32.mxu0 0.0
  %580 = vmatmul.mubr.f32.gmra.mrb[0].mxu0 %v513
  %v581 = vpop.f32.mrb[0].mxu0
  %v582 = vadd.f32 %v194, %v581
  %v583 = vpop.f32.mrb[0].mxu0
  %584 = vdwg.mxu0
  %s585 = scalar_lea.vmem [#allocation3], 12
  %v586 = vld [vmem:[%s585] sm:$0xf]
  %v587 = vadd.f32 %v586, %v582
  %v588 = vxor.u32 %v587, 2147483648
  %v589 = vmul.f32 %v588, 1.442695
  %v590 = vpow.pop %v589
  %v591 = vadd.f32 %v590, 1.0
  %v592 = vrcp.pop %v591
  %v593 = vmul.f32 1.0, %v592
  %595 = vrot.lane.b32.xlu0 %v582, 64
  %v596 = vpop.permute.xlu0 %595
  %v598 = vmul.f32 %v593, %v596
  %600 = vrot.lane.b32.xlu0 %v598, 64
  %v601 = vpop.permute.xlu0 %600
  %v603 = vadd.f32 %v586, %v601
  %v604 = vtanh.pop %v603
  %v605 = vsub.f32 1.0, %v593
  %607 = vrot.lane.b32.xlu0 %v604, 96
  %v608 = vpop.permute.xlu0 %607
  %v610 = vmul.f32 %v605, %v608
  %v611 = vmul.f32 %v593, %v506
  %v612 = vadd.f32 %v610, %v611
  %614 = vrot.lane.b32.xlu0 %v612, 96
  %v615 = vpop.permute.xlu0 %614
  %s617 = scalar_lea.vmem [#allocation2], 12
  %618 = vst.msk [vmem:[%s617] sm:$0xf] %vm299, %v615
  %v619 = vsel %vm109, %v615, 0
  %621 = vmatprep.subr.mxu0 0.0
  %622 = vmatpush1.msra.mxu0 %v186
  %623 = vmatprep.subr.mxu0 0.0
  %624 = vmatpush1.msra.mxu0 %v187
  %625 = vmatprep.subr.mxu0 0.0
  %626 = vmatpush1.msra.mxu0 %v188
  %627 = vmatprep.subr.mxu0 0.0
  %628 = vmatpush1.msra.mxu0 %v189
  %629 = vmatprep.subr.mxu0 0.0
  %630 = vmatpush1.msra.mxu0 0.0
  %631 = vmatprep.subr.mxu0 0.0
  %632 = vmatpush1.msra.mxu0 0.0
  %633 = vmatprep.subr.mxu0 0.0
  %634 = vmatpush1.msra.mxu0 0.0
  %635 = vmatprep.subr.mxu0 0.0
  %636 = vmatpush1.msra.mxu0 0.0
  %637 = vmatprep.subr.mxu0 0.0
  %638 = vmatpush1.msra.mxu0 0.0
  %639 = vmatprep.subr.mxu0 0.0
  %640 = vmatpush1.msra.mxu0 0.0
  %641 = vmatprep.subr.mxu0 0.0
  %642 = vmatpush1.msra.mxu0 0.0
  %643 = vmatprep.subr.mxu0 0.0
  %644 = vmatpush1.msra.mxu0 0.0
  %645 = vmatprep.subr.mxu0 0.0
  %646 = vmatpush1.msra.mxu0 0.0
  %647 = vmatprep.subr.mxu0 0.0
  %648 = vmatpush1.msra.mxu0 0.0
  %649 = vmatprep.subr.mxu0 0.0
  %650 = vmatpush1.msra.mxu0 0.0
  %651 = vmatprep.subr.mxu0 0.0
  %652 = vmatpush1.msra.mxu0 0.0
  %653 = vmatprep.subr.mxu0 0.0
  %654 = vmatpush1.msra.mxu0 0.0
  %655 = vmatprep.subr.mxu0 0.0
  %656 = vmatpush1.msra.mxu0 0.0
  %657 = vmatprep.subr.mxu0 0.0
  %658 = vmatpush1.msra.mxu0 0.0
  %659 = vmatprep.subr.mxu0 0.0
  %660 = vmatpush1.msra.mxu0 0.0
  %661 = vmatprep.subr.mxu0 0.0
  %662 = vmatpush1.msra.mxu0 0.0
  %663 = vmatprep.subr.mxu0 0.0
  %664 = vmatpush1.msra.mxu0 0.0
  %665 = vmatprep.subr.mxu0 0.0
  %666 = vmatpush1.msra.mxu0 0.0
  %667 = vmatprep.subr.mxu0 0.0
  %668 = vmatpush1.msra.mxu0 0.0
  %669 = vmatprep.subr.mxu0 0.0
  %670 = vmatpush1.msra.mxu0 0.0
  %671 = vmatprep.subr.mxu0 0.0
  %672 = vmatpush1.msra.mxu0 0.0
  %673 = vmatprep.subr.mxu0 0.0
  %674 = vmatpush1.msra.mxu0 0.0
  %675 = vmatprep.subr.mxu0 0.0
  %676 = vmatpush1.msra.mxu0 0.0
  %677 = vmatprep.subr.mxu0 0.0
  %678 = vmatpush1.msra.mxu0 0.0
  %679 = vmatprep.subr.mxu0 0.0
  %680 = vmatpush1.msra.mxu0 0.0
  %681 = vmatprep.subr.mxu0 0.0
  %682 = vmatpush1.msra.mxu0 0.0
  %683 = vmatprep.subr.mxu0 0.0
  %684 = vmatpush1.msra.mxu0 0.0
  %685 = vmatprep.mubr.f32.mxu0 0.0
  %686 = vmatmul.mubr.f32.gmra.mrb[0].mxu0 %v619
  %v687 = vpop.f32.mrb[0].mxu0
  %v688 = vadd.f32 %v194, %v687
  %v689 = vpop.f32.mrb[0].mxu0
  %690 = vdwg.mxu0
  %s691 = scalar_lea.vmem [#allocation3], 16
  %v692 = vld [vmem:[%s691] sm:$0xf]
  %v693 = vadd.f32 %v692, %v688
  %v694 = vxor.u32 %v693, 2147483648
  %v695 = vmul.f32 %v694, 1.442695
  %v696 = vpow.pop %v695
  %v697 = vadd.f32 %v696, 1.0
  %v698 = vrcp.pop %v697
  %v699 = vmul.f32 1.0, %v698
  %701 = vrot.lane.b32.xlu0 %v688, 64
  %v702 = vpop.permute.xlu0 %701
  %v704 = vmul.f32 %v699, %v702
  %706 = vrot.lane.b32.xlu0 %v704, 64
  %v707 = vpop.permute.xlu0 %706
  %v709 = vadd.f32 %v692, %v707
  %v710 = vtanh.pop %v709
  %v711 = vsub.f32 1.0, %v699
  %713 = vrot.lane.b32.xlu0 %v710, 96
  %v714 = vpop.permute.xlu0 %713
  %v716 = vmul.f32 %v711, %v714
  %v717 = vmul.f32 %v699, %v612
  %v718 = vadd.f32 %v716, %v717
  %720 = vrot.lane.b32.xlu0 %v718, 96
  %v721 = vpop.permute.xlu0 %720
  %s723 = scalar_lea.vmem [#allocation2], 16
  %724 = vst.msk [vmem:[%s723] sm:$0xf] %vm299, %v721
  %v725 = vsel %vm109, %v721, 0
  %727 = vmatprep.subr.mxu0 0.0
  %728 = vmatpush1.msra.mxu0 %v186
  %729 = vmatprep.subr.mxu0 0.0
  %730 = vmatpush1.msra.mxu0 %v187
  %731 = vmatprep.subr.mxu0 0.0
  %732 = vmatpush1.msra.mxu0 %v188
  %733 = vmatprep.subr.mxu0 0.0
  %734 = vmatpush1.msra.mxu0 %v189
  %735 = vmatprep.subr.mxu0 0.0
  %736 = vmatpush1.msra.mxu0 0.0
  %737 = vmatprep.subr.mxu0 0.0
  %738 = vmatpush1.msra.mxu0 0.0
  %739 = vmatprep.subr.mxu0 0.0
  %740 = vmatpush1.msra.mxu0 0.0
  %741 = vmatprep.subr.mxu0 0.0
  %742 = vmatpush1.msra.mxu0 0.0
  %743 = vmatprep.subr.mxu0 0.0
  %744 = vmatpush1.msra.mxu0 0.0
  %745 = vmatprep.subr.mxu0 0.0
  %746 = vmatpush1.msra.mxu0 0.0
  %747 = vmatprep.subr.mxu0 0.0
  %748 = vmatpush1.msra.mxu0 0.0
  %749 = vmatprep.subr.mxu0 0.0
  %750 = vmatpush1.msra.mxu0 0.0
  %751 = vmatprep.subr.mxu0 0.0
  %752 = vmatpush1.msra.mxu0 0.0
  %753 = vmatprep.subr.mxu0 0.0
  %754 = vmatpush1.msra.mxu0 0.0
  %755 = vmatprep.subr.mxu0 0.0
  %756 = vmatpush1.msra.mxu0 0.0
  %757 = vmatprep.subr.mxu0 0.0
  %758 = vmatpush1.msra.mxu0 0.0
  %759 = vmatprep.subr.mxu0 0.0
  %760 = vmatpush1.msra.mxu0 0.0
  %761 = vmatprep.subr.mxu0 0.0
  %762 = vmatpush1.msra.mxu0 0.0
  %763 = vmatprep.subr.mxu0 0.0
  %764 = vmatpush1.msra.mxu0 0.0
  %765 = vmatprep.subr.mxu0 0.0
  %766 = vmatpush1.msra.mxu0 0.0
  %767 = vmatprep.subr.mxu0 0.0
  %768 = vmatpush1.msra.mxu0 0.0
  %769 = vmatprep.subr.mxu0 0.0
  %770 = vmatpush1.msra.mxu0 0.0
  %771 = vmatprep.subr.mxu0 0.0
  %772 = vmatpush1.msra.mxu0 0.0
  %773 = vmatprep.subr.mxu0 0.0
  %774 = vmatpush1.msra.mxu0 0.0
  %775 = vmatprep.subr.mxu0 0.0
  %776 = vmatpush1.msra.mxu0 0.0
  %777 = vmatprep.subr.mxu0 0.0
  %778 = vmatpush1.msra.mxu0 0.0
  %779 = vmatprep.subr.mxu0 0.0
  %780 = vmatpush1.msra.mxu0 0.0
  %781 = vmatprep.subr.mxu0 0.0
  %782 = vmatpush1.msra.mxu0 0.0
  %783 = vmatprep.subr.mxu0 0.0
  %784 = vmatpush1.msra.mxu0 0.0
  %785 = vmatprep.subr.mxu0 0.0
  %786 = vmatpush1.msra.mxu0 0.0
  %787 = vmatprep.subr.mxu0 0.0
  %788 = vmatpush1.msra.mxu0 0.0
  %789 = vmatprep.subr.mxu0 0.0
  %790 = vmatpush1.msra.mxu0 0.0
  %791 = vmatprep.mubr.f32.mxu0 0.0
  %792 = vmatmul.mubr.f32.gmra.mrb[0].mxu0 %v725
  %v793 = vpop.f32.mrb[0].mxu0
  %v794 = vadd.f32 %v194, %v793
  %v795 = vpop.f32.mrb[0].mxu0
  %796 = vdwg.mxu0
  %s797 = scalar_lea.vmem [#allocation3], 20
  %v798 = vld [vmem:[%s797] sm:$0xf]
  %v799 = vadd.f32 %v798, %v794
  %v800 = vxor.u32 %v799, 2147483648
  %v801 = vmul.f32 %v800, 1.442695
  %v802 = vpow.pop %v801
  %v803 = vadd.f32 %v802, 1.0
  %v804 = vrcp.pop %v803
  %v805 = vmul.f32 1.0, %v804
  %807 = vrot.lane.b32.xlu0 %v794, 64
  %v808 = vpop.permute.xlu0 %807
  %v810 = vmul.f32 %v805, %v808
  %812 = vrot.lane.b32.xlu0 %v810, 64
  %v813 = vpop.permute.xlu0 %812
  %v815 = vadd.f32 %v798, %v813
  %v816 = vtanh.pop %v815
  %v817 = vsub.f32 1.0, %v805
  %819 = vrot.lane.b32.xlu0 %v816, 96
  %v820 = vpop.permute.xlu0 %819
  %v822 = vmul.f32 %v817, %v820
  %v823 = vmul.f32 %v805, %v718
  %v824 = vadd.f32 %v822, %v823
  %826 = vrot.lane.b32.xlu0 %v824, 96
  %v827 = vpop.permute.xlu0 %826
  %s829 = scalar_lea.vmem [#allocation2], 20
  %830 = vst.msk [vmem:[%s829] sm:$0xf] %vm299, %v827
  %v831 = vsel %vm109, %v827, 0
  %833 = vmatprep.subr.mxu0 0.0
  %834 = vmatpush1.msra.mxu0 %v186
  %835 = vmatprep.subr.mxu0 0.0
  %836 = vmatpush1.msra.mxu0 %v187
  %837 = vmatprep.subr.mxu0 0.0
  %838 = vmatpush1.msra.mxu0 %v188
  %839 = vmatprep.subr.mxu0 0.0
  %840 = vmatpush1.msra.mxu0 %v189
  %841 = vmatprep.subr.mxu0 0.0
  %842 = vmatpush1.msra.mxu0 0.0
  %843 = vmatprep.subr.mxu0 0.0
  %844 = vmatpush1.msra.mxu0 0.0
  %845 = vmatprep.subr.mxu0 0.0
  %846 = vmatpush1.msra.mxu0 0.0
  %847 = vmatprep.subr.mxu0 0.0
  %848 = vmatpush1.msra.mxu0 0.0
  %849 = vmatprep.subr.mxu0 0.0
  %850 = vmatpush1.msra.mxu0 0.0
  %851 = vmatprep.subr.mxu0 0.0
  %852 = vmatpush1.msra.mxu0 0.0
  %853 = vmatprep.subr.mxu0 0.0
  %854 = vmatpush1.msra.mxu0 0.0
  %855 = vmatprep.subr.mxu0 0.0
  %856 = vmatpush1.msra.mxu0 0.0
  %857 = vmatprep.subr.mxu0 0.0
  %858 = vmatpush1.msra.mxu0 0.0
  %859 = vmatprep.subr.mxu0 0.0
  %860 = vmatpush1.msra.mxu0 0.0
  %861 = vmatprep.subr.mxu0 0.0
  %862 = vmatpush1.msra.mxu0 0.0
  %863 = vmatprep.subr.mxu0 0.0
  %864 = vmatpush1.msra.mxu0 0.0
  %865 = vmatprep.subr.mxu0 0.0
  %866 = vmatpush1.msra.mxu0 0.0
  %867 = vmatprep.subr.mxu0 0.0
  %868 = vmatpush1.msra.mxu0 0.0
  %869 = vmatprep.subr.mxu0 0.0
  %870 = vmatpush1.msra.mxu0 0.0
  %871 = vmatprep.subr.mxu0 0.0
  %872 = vmatpush1.msra.mxu0 0.0
  %873 = vmatprep.subr.mxu0 0.0
  %874 = vmatpush1.msra.mxu0 0.0
  %875 = vmatprep.subr.mxu0 0.0
  %876 = vmatpush1.msra.mxu0 0.0
  %877 = vmatprep.subr.mxu0 0.0
  %878 = vmatpush1.msra.mxu0 0.0
  %879 = vmatprep.subr.mxu0 0.0
  %880 = vmatpush1.msra.mxu0 0.0
  %881 = vmatprep.subr.mxu0 0.0
  %882 = vmatpush1.msra.mxu0 0.0
  %883 = vmatprep.subr.mxu0 0.0
  %884 = vmatpush1.msra.mxu0 0.0
  %885 = vmatprep.subr.mxu0 0.0
  %886 = vmatpush1.msra.mxu0 0.0
  %887 = vmatprep.subr.mxu0 0.0
  %888 = vmatpush1.msra.mxu0 0.0
  %889 = vmatprep.subr.mxu0 0.0
  %890 = vmatpush1.msra.mxu0 0.0
  %891 = vmatprep.subr.mxu0 0.0
  %892 = vmatpush1.msra.mxu0 0.0
  %893 = vmatprep.subr.mxu0 0.0
  %894 = vmatpush1.msra.mxu0 0.0
  %895 = vmatprep.subr.mxu0 0.0
  %896 = vmatpush1.msra.mxu0 0.0
  %897 = vmatprep.mubr.f32.mxu0 0.0
  %898 = vmatmul.mubr.f32.gmra.mrb[0].mxu0 %v831
  %v899 = vpop.f32.mrb[0].mxu0
  %v900 = vadd.f32 %v194, %v899
  %v901 = vpop.f32.mrb[0].mxu0
  %902 = vdwg.mxu0
  %s903 = scalar_lea.vmem [#allocation3], 24
  %v904 = vld [vmem:[%s903] sm:$0xf]
  %v905 = vadd.f32 %v904, %v900
  %v906 = vxor.u32 %v905, 2147483648
  %v907 = vmul.f32 %v906, 1.442695
  %v908 = vpow.pop %v907
  %v909 = vadd.f32 %v908, 1.0
  %v910 = vrcp.pop %v909
  %v911 = vmul.f32 1.0, %v910
  %913 = vrot.lane.b32.xlu0 %v900, 64
  %v914 = vpop.permute.xlu0 %913
  %v916 = vmul.f32 %v911, %v914
  %918 = vrot.lane.b32.xlu0 %v916, 64
  %v919 = vpop.permute.xlu0 %918
  %v921 = vadd.f32 %v904, %v919
  %v922 = vtanh.pop %v921
  %v923 = vsub.f32 1.0, %v911
  %925 = vrot.lane.b32.xlu0 %v922, 96
  %v926 = vpop.permute.xlu0 %925
  %v928 = vmul.f32 %v923, %v926
  %v929 = vmul.f32 %v911, %v824
  %v930 = vadd.f32 %v928, %v929
  %932 = vrot.lane.b32.xlu0 %v930, 96
  %v933 = vpop.permute.xlu0 %932
  %s935 = scalar_lea.vmem [#allocation2], 24
  %936 = vst.msk [vmem:[%s935] sm:$0xf] %vm299, %v933
  %v937 = vsel %vm109, %v933, 0
  %939 = vmatprep.subr.mxu0 0.0
  %940 = vmatpush1.msra.mxu0 %v186
  %941 = vmatprep.subr.mxu0 0.0
  %942 = vmatpush1.msra.mxu0 %v187
  %943 = vmatprep.subr.mxu0 0.0
  %944 = vmatpush1.msra.mxu0 %v188
  %945 = vmatprep.subr.mxu0 0.0
  %946 = vmatpush1.msra.mxu0 %v189
  %947 = vmatprep.subr.mxu0 0.0
  %948 = vmatpush1.msra.mxu0 0.0
  %949 = vmatprep.subr.mxu0 0.0
  %950 = vmatpush1.msra.mxu0 0.0
  %951 = vmatprep.subr.mxu0 0.0
  %952 = vmatpush1.msra.mxu0 0.0
  %953 = vmatprep.subr.mxu0 0.0
  %954 = vmatpush1.msra.mxu0 0.0
  %955 = vmatprep.subr.mxu0 0.0
  %956 = vmatpush1.msra.mxu0 0.0
  %957 = vmatprep.subr.mxu0 0.0
  %958 = vmatpush1.msra.mxu0 0.0
  %959 = vmatprep.subr.mxu0 0.0
  %960 = vmatpush1.msra.mxu0 0.0
  %961 = vmatprep.subr.mxu0 0.0
  %962 = vmatpush1.msra.mxu0 0.0
  %963 = vmatprep.subr.mxu0 0.0
  %964 = vmatpush1.msra.mxu0 0.0
  %965 = vmatprep.subr.mxu0 0.0
  %966 = vmatpush1.msra.mxu0 0.0
  %967 = vmatprep.subr.mxu0 0.0
  %968 = vmatpush1.msra.mxu0 0.0
  %969 = vmatprep.subr.mxu0 0.0
  %970 = vmatpush1.msra.mxu0 0.0
  %971 = vmatprep.subr.mxu0 0.0
  %972 = vmatpush1.msra.mxu0 0.0
  %973 = vmatprep.subr.mxu0 0.0
  %974 = vmatpush1.msra.mxu0 0.0
  %975 = vmatprep.subr.mxu0 0.0
  %976 = vmatpush1.msra.mxu0 0.0
  %977 = vmatprep.subr.mxu0 0.0
  %978 = vmatpush1.msra.mxu0 0.0
  %979 = vmatprep.subr.mxu0 0.0
  %980 = vmatpush1.msra.mxu0 0.0
  %981 = vmatprep.subr.mxu0 0.0
  %982 = vmatpush1.msra.mxu0 0.0
  %983 = vmatprep.subr.mxu0 0.0
  %984 = vmatpush1.msra.mxu0 0.0
  %985 = vmatprep.subr.mxu0 0.0
  %986 = vmatpush1.msra.mxu0 0.0
  %987 = vmatprep.subr.mxu0 0.0
  %988 = vmatpush1.msra.mxu0 0.0
  %989 = vmatprep.subr.mxu0 0.0
  %990 = vmatpush1.msra.mxu0 0.0
  %991 = vmatprep.subr.mxu0 0.0
  %992 = vmatpush1.msra.mxu0 0.0
  %993 = vmatprep.subr.mxu0 0.0
  %994 = vmatpush1.msra.mxu0 0.0
  %995 = vmatprep.subr.mxu0 0.0
  %996 = vmatpush1.msra.mxu0 0.0
  %997 = vmatprep.subr.mxu0 0.0
  %998 = vmatpush1.msra.mxu0 0.0
  %999 = vmatprep.subr.mxu0 0.0
  %1000 = vmatpush1.msra.mxu0 0.0
  %1001 = vmatprep.subr.mxu0 0.0
  %1002 = vmatpush1.msra.mxu0 0.0
  %1003 = vmatprep.mubr.f32.mxu0 0.0
  %1004 = vmatmul.mubr.f32.gmra.mrb[0].mxu0 %v937
  %v1005 = vpop.f32.mrb[0].mxu0
  %v1006 = vadd.f32 %v194, %v1005
  %v1007 = vpop.f32.mrb[0].mxu0
  %1008 = vdwg.mxu0
  %s1009 = scalar_lea.vmem [#allocation3], 28
  %v1010 = vld [vmem:[%s1009] sm:$0xf]
  %v1011 = vadd.f32 %v1010, %v1006
  %v1012 = vxor.u32 %v1011, 2147483648
  %v1013 = vmul.f32 %v1012, 1.442695
  %v1014 = vpow.pop %v1013
  %v1015 = vadd.f32 %v1014, 1.0
  %v1016 = vrcp.pop %v1015
  %v1017 = vmul.f32 1.0, %v1016
  %1019 = vrot.lane.b32.xlu0 %v1006, 64
  %v1020 = vpop.permute.xlu0 %1019
  %v1022 = vmul.f32 %v1017, %v1020
  %1024 = vrot.lane.b32.xlu0 %v1022, 64
  %v1025 = vpop.permute.xlu0 %1024
  %v1027 = vadd.f32 %v1010, %v1025
  %v1028 = vtanh.pop %v1027
  %v1029 = vsub.f32 1.0, %v1017
  %1031 = vrot.lane.b32.xlu0 %v1028, 96
  %v1032 = vpop.permute.xlu0 %1031
  %v1034 = vmul.f32 %v1029, %v1032
  %v1035 = vmul.f32 %v1017, %v930
  %v1036 = vadd.f32 %v1034, %v1035
  %1038 = vrot.lane.b32.xlu0 %v1036, 96
  %v1039 = vpop.permute.xlu0 %1038
  %s1041 = scalar_lea.vmem [#allocation2], 28
  %1042 = vst.msk [vmem:[%s1041] sm:$0xf] %vm299, %v1039
  %v1043 = vld [vmem:[#allocation2] sm:$0xf]
  %v1044 = vld [vmem:[#allocation2 + $0x4] sm:$0xf]
  %v1045 = vld [vmem:[#allocation2 + $0x8] sm:$0xf]
  %v1046 = vld [vmem:[#allocation2 + $0xc] sm:$0xf]
  %v1047 = vld [vmem:[#allocation2 + $0x10] sm:$0xf]
  %v1048 = vld [vmem:[#allocation2 + $0x14] sm:$0xf]
  %v1049 = vld [vmem:[#allocation2 + $0x18] sm:$0xf]
  %v1050 = vld [vmem:[#allocation2 + $0x1c] sm:$0xf]
  %v1051 = vpack.c.bf16 %v1043, %v1043
  %v1052 = vpack.c.bf16 %v1044, %v1044
  %v1053 = vpack.c.bf16 %v1045, %v1045
  %v1054 = vpack.c.bf16 %v1046, %v1046
  %v1055 = vpack.c.bf16 %v1047, %v1047
  %v1056 = vpack.c.bf16 %v1048, %v1048
  %v1057 = vpack.c.bf16 %v1049, %v1049
  %v1058 = vpack.c.bf16 %v1050, %v1050
  %v1059 = vld [vmem:[%s4] sm:$0xf]
  %v1060 = vld [vmem:[%s4 + $0x4] sm:$0xf]
  %v1061 = vld [vmem:[%s4 + $0x8] sm:$0xf]
  %v1062 = vld [vmem:[%s4 + $0xc] sm:$0xf]
  %v1063 = vld [vmem:[%s6] sm:$0x1]
  %v1064 = vlaneseq
  %v1065 = vshrl.u32 %v1064, 7
  %v1066 = vsub.s32 0, %v1065
  %v1067 = vrot.slane %v1063, %v1066
  %v1076 = vcombine.low %v1051, %v1052
  %v1077 = vcombine.low %v1053, %v1054
  %v1079 = vunpack.c.l.s4 1983009808
  %v1080 = vunpack.c.0.s8 %v1079
  %v1081 = vlaneseq
  %v1082 = vshrl.u32 %v1081, 7
  %v1083 = vsub.s32 %v1080, %v1082
  %v1084 = vrot.slane %v1076, %v1083
  %v1086 = vunpack.c.l.s4 1983009808
  %v1087 = vunpack.c.0.s8 %v1086
  %v1088 = vlaneseq
  %v1089 = vshrl.u32 %v1088, 7
  %v1090 = vsub.s32 %v1087, %v1089
  %v1091 = vrot.slane %v1077, %v1090
  %v1092 = vcombine.low %v1084, %v1091
  %v1093 = vcombine.low %v1055, %v1056
  %v1094 = vcombine.low %v1057, %v1058
  %v1096 = vunpack.c.l.s4 1983009808
  %v1097 = vunpack.c.0.s8 %v1096
  %v1098 = vlaneseq
  %v1099 = vshrl.u32 %v1098, 7
  %v1100 = vsub.s32 %v1097, %v1099
  %v1101 = vrot.slane %v1093, %v1100
  %v1103 = vunpack.c.l.s4 1983009808
  %v1104 = vunpack.c.0.s8 %v1103
  %v1105 = vlaneseq
  %v1106 = vshrl.u32 %v1105, 7
  %v1107 = vsub.s32 %v1104, %v1106
  %v1108 = vrot.slane %v1094, %v1107
  %v1109 = vcombine.low %v1101, %v1108
  %v1114 = vunpack.c.l.b16 %v1059
  %v1115 = vunpack.c.l.b16 %v1060
  %v1116 = vunpack.c.l.b16 %v1061
  %v1117 = vunpack.c.l.b16 %v1062
  %v1118 = vpack.c.b16 %v1115, %v1114
  %v1119 = vpack.c.b16 %v1117, %v1116
  %v1123 = vcombine.low %v1067, %v1067
  %v1126 = vsel %vm109, %v1092, 0
  %v1129 = vsel %vm109, %v1109, 0
  %1131 = vmatprep.subr.bf16.mxu0 0
  %1132 = vmatpush1.bf16.msra.mxu0 %v1118
  %1133 = vmatprep.subr.bf16.mxu0 0
  %1134 = vmatpush1.bf16.msra.mxu0 %v1119
  %1135 = vmatprep.subr.bf16.mxu0 0
  %1136 = vmatpush1.bf16.msra.mxu0 0
  %1137 = vmatprep.subr.bf16.mxu0 0
  %1138 = vmatpush1.bf16.msra.mxu0 0
  %1139 = vmatprep.subr.bf16.mxu0 0
  %1140 = vmatpush1.bf16.msra.mxu0 0
  %1141 = vmatprep.subr.bf16.mxu0 0
  %1142 = vmatpush1.bf16.msra.mxu0 0
  %1143 = vmatprep.subr.bf16.mxu0 0
  %1144 = vmatpush1.bf16.msra.mxu0 0
  %1145 = vmatprep.subr.bf16.mxu0 0
  %1146 = vmatpush1.bf16.msra.mxu0 0
  %1147 = vmatprep.subr.bf16.mxu0 0
  %1148 = vmatpush1.bf16.msra.mxu0 0
  %1149 = vmatprep.subr.bf16.mxu0 0
  %1150 = vmatpush1.bf16.msra.mxu0 0
  %1151 = vmatprep.subr.bf16.mxu0 0
  %1152 = vmatpush1.bf16.msra.mxu0 0
  %1153 = vmatprep.subr.bf16.mxu0 0
  %1154 = vmatpush1.bf16.msra.mxu0 0
  %1155 = vmatprep.subr.bf16.mxu0 0
  %1156 = vmatpush1.bf16.msra.mxu0 0
  %1157 = vmatprep.subr.bf16.mxu0 0
  %1158 = vmatpush1.bf16.msra.mxu0 0
  %1159 = vmatprep.subr.bf16.mxu0 0
  %1160 = vmatpush1.bf16.msra.mxu0 0
  %1161 = vmatprep.subr.bf16.mxu0 0
  %1162 = vmatpush1.bf16.msra.mxu0 0
  %1163 = vmatprep.mubr.bf16.mxu0 0
  %1164 = vmatmul.mubr.bf16.gmra.mrb[0].mxu0 %v1126
  %v1165 = vpop.f32.mrb[0].mxu0
  %v1166 = vadd.f32 %v1123, %v1165
  %v1167 = vpop.f32.mrb[0].mxu0
  %v1168 = vpop.f32.mrb[0].mxu0
  %v1169 = vadd.f32 %v1123, %v1168
  %v1170 = vpop.f32.mrb[0].mxu0
  %1171 = vmatprep.mubr.bf16.mxu0 0
  %1172 = vmatmul.mubr.bf16.gmra.mrb[0].mxu0 %v1129
  %v1173 = vpop.f32.mrb[0].mxu0
  %v1174 = vadd.f32 %v1123, %v1173
  %v1175 = vpop.f32.mrb[0].mxu0
  %v1176 = vpop.f32.mrb[0].mxu0
  %v1177 = vadd.f32 %v1123, %v1176
  %v1178 = vpop.f32.mrb[0].mxu0
  %1179 = vdwg.mxu0
  %v1184 = vcombine.high %v1166, %v1166
  %v1185 = vcombine.high %v1169, %v1169
  %v1186 = vcombine.high %v1174, %v1174
  %v1187 = vcombine.high %v1177, %v1177
  %1192 = vst.msk [vmem:[#allocation3] sm:$0xf] %vm177, %v1166
  %1193 = vst.msk [vmem:[#allocation3 + $0x4] sm:$0xf] %vm177, %v1184
  %1194 = vst.msk [vmem:[#allocation3 + $0x8] sm:$0xf] %vm177, %v1169
  %1195 = vst.msk [vmem:[#allocation3 + $0xc] sm:$0xf] %vm177, %v1185
  %1196 = vst.msk [vmem:[#allocation3 + $0x10] sm:$0xf] %vm177, %v1174
  %1197 = vst.msk [vmem:[#allocation3 + $0x14] sm:$0xf] %vm177, %v1186
  %1198 = vst.msk [vmem:[#allocation3 + $0x18] sm:$0xf] %vm177, %v1177
  %1199 = vst.msk [vmem:[#allocation3 + $0x1c] sm:$0xf] %vm177, %v1187
  %v1200 = vld [vmem:[%s5] sm:$0xff]
  %v1201 = vld [vmem:[%s5 + $0x8] sm:$0xff]
  %v1202 = vld [vmem:[%s5 + $0x10] sm:$0xff]
  %v1203 = vld [vmem:[%s5 + $0x18] sm:$0xff]
  %v1204 = vld [vmem:[%s6 + $0x1] sm:$0x1]
  %v1205 = vlaneseq
  %v1206 = vshrl.u32 %v1205, 7
  %v1207 = vsub.s32 0, %v1206
  %v1208 = vrot.slane %v1204, %v1207
  %1209 = vmatprep.subr.mxu0 0.0
  %1210 = vmatpush1.msra.mxu0 %v1200
  %1211 = vmatprep.subr.mxu0 0.0
  %1212 = vmatpush1.msra.mxu0 %v1201
  %1213 = vmatprep.subr.mxu0 0.0
  %1214 = vmatpush1.msra.mxu0 %v1202
  %1215 = vmatprep.subr.mxu0 0.0
  %1216 = vmatpush1.msra.mxu0 %v1203
  %1217 = vmatprep.subr.mxu0 0.0
  %1218 = vmatpush1.msra.mxu0 0.0
  %1219 = vmatprep.subr.mxu0 0.0
  %1220 = vmatpush1.msra.mxu0 0.0
  %1221 = vmatprep.subr.mxu0 0.0
  %1222 = vmatpush1.msra.mxu0 0.0
  %1223 = vmatprep.subr.mxu0 0.0
  %1224 = vmatpush1.msra.mxu0 0.0
  %1225 = vmatprep.subr.mxu0 0.0
  %1226 = vmatpush1.msra.mxu0 0.0
  %1227 = vmatprep.subr.mxu0 0.0
  %1228 = vmatpush1.msra.mxu0 0.0
  %1229 = vmatprep.subr.mxu0 0.0
  %1230 = vmatpush1.msra.mxu0 0.0
  %1231 = vmatprep.subr.mxu0 0.0
  %1232 = vmatpush1.msra.mxu0 0.0
  %1233 = vmatprep.subr.mxu0 0.0
  %1234 = vmatpush1.msra.mxu0 0.0
  %1235 = vmatprep.subr.mxu0 0.0
  %1236 = vmatpush1.msra.mxu0 0.0
  %1237 = vmatprep.subr.mxu0 0.0
  %1238 = vmatpush1.msra.mxu0 0.0
  %1239 = vmatprep.subr.mxu0 0.0
  %1240 = vmatpush1.msra.mxu0 0.0
  %1241 = vmatprep.subr.mxu0 0.0
  %1242 = vmatpush1.msra.mxu0 0.0
  %1243 = vmatprep.subr.mxu0 0.0
  %1244 = vmatpush1.msra.mxu0 0.0
  %1245 = vmatprep.subr.mxu0 0.0
  %1246 = vmatpush1.msra.mxu0 0.0
  %1247 = vmatprep.subr.mxu0 0.0
  %1248 = vmatpush1.msra.mxu0 0.0
  %1249 = vmatprep.subr.mxu0 0.0
  %1250 = vmatpush1.msra.mxu0 0.0
  %1251 = vmatprep.subr.mxu0 0.0
  %1252 = vmatpush1.msra.mxu0 0.0
  %1253 = vmatprep.subr.mxu0 0.0
  %1254 = vmatpush1.msra.mxu0 0.0
  %1255 = vmatprep.subr.mxu0 0.0
  %1256 = vmatpush1.msra.mxu0 0.0
  %1257 = vmatprep.subr.mxu0 0.0
  %1258 = vmatpush1.msra.mxu0 0.0
  %1259 = vmatprep.subr.mxu0 0.0
  %1260 = vmatpush1.msra.mxu0 0.0
  %1261 = vmatprep.subr.mxu0 0.0
  %1262 = vmatpush1.msra.mxu0 0.0
  %1263 = vmatprep.subr.mxu0 0.0
  %1264 = vmatpush1.msra.mxu0 0.0
  %1265 = vmatprep.subr.mxu0 0.0
  %1266 = vmatpush1.msra.mxu0 0.0
  %1267 = vmatprep.subr.mxu0 0.0
  %1268 = vmatpush1.msra.mxu0 0.0
  %1269 = vmatprep.subr.mxu0 0.0
  %1270 = vmatpush1.msra.mxu0 0.0
  %1271 = vmatprep.subr.mxu0 0.0
  %1272 = vmatpush1.msra.mxu0 0.0
  %1273 = vmatprep.mubr.f32.mxu0 0.0
  %1274 = vmatmul.mubr.f32.gmra.mrb[0].mxu0 %v196
  %v1275 = vpop.f32.mrb[0].mxu0
  %v1276 = vadd.f32 %v1208, %v1275
  %v1277 = vpop.f32.mrb[0].mxu0
  %1278 = vdwg.mxu0
  %v1279 = vld [vmem:[%s1009] sm:$0xf]
  %v1280 = vadd.f32 %v1279, %v1276
  %v1281 = vxor.u32 %v1280, 2147483648
  %v1282 = vmul.f32 %v1281, 1.442695
  %v1283 = vpow.pop %v1282
  %v1284 = vadd.f32 %v1283, 1.0
  %v1285 = vrcp.pop %v1284
  %v1286 = vmul.f32 1.0, %v1285
  %1288 = vrot.lane.b32.xlu0 %v1276, 64
  %v1289 = vpop.permute.xlu0 %1288
  %v1291 = vmul.f32 %v1286, %v1289
  %1293 = vrot.lane.b32.xlu0 %v1291, 64
  %v1294 = vpop.permute.xlu0 %1293
  %v1296 = vadd.f32 %v1279, %v1294
  %v1297 = vtanh.pop %v1296
  %v1298 = vsub.f32 1.0, %v1286
  %1300 = vrot.lane.b32.xlu0 %v1297, 96
  %v1301 = vpop.permute.xlu0 %1300
  %v1303 = vmul.f32 %v1298, %v1301
  %v1304 = vmul.f32 %v1286, 0.0
  %v1305 = vadd.f32 %v1303, %v1304
  %v1306 = vld [vmem:[%s1041] sm:$0xf]
  %1308 = vrot.lane.b32.xlu0 %v1305, 96
  %v1309 = vpop.permute.xlu0 %1308
  %v1311 = vadd.f32 %v1306, %v1309
  %s1312 = scalar_lea.vmem %s7, 28
  %1313 = vst.msk [vmem:[%s1312] sm:$0xf] %vm299, %v1311
  %v1314 = vsel %vm109, %v1309, 0
  %1316 = vmatprep.subr.mxu0 0.0
  %1317 = vmatpush1.msra.mxu0 %v1200
  %1318 = vmatprep.subr.mxu0 0.0
  %1319 = vmatpush1.msra.mxu0 %v1201
  %1320 = vmatprep.subr.mxu0 0.0
  %1321 = vmatpush1.msra.mxu0 %v1202
  %1322 = vmatprep.subr.mxu0 0.0
  %1323 = vmatpush1.msra.mxu0 %v1203
  %1324 = vmatprep.subr.mxu0 0.0
  %1325 = vmatpush1.msra.mxu0 0.0
  %1326 = vmatprep.subr.mxu0 0.0
  %1327 = vmatpush1.msra.mxu0 0.0
  %1328 = vmatprep.subr.mxu0 0.0
  %1329 = vmatpush1.msra.mxu0 0.0
  %1330 = vmatprep.subr.mxu0 0.0
  %1331 = vmatpush1.msra.mxu0 0.0
  %1332 = vmatprep.subr.mxu0 0.0
  %1333 = vmatpush1.msra.mxu0 0.0
  %1334 = vmatprep.subr.mxu0 0.0
  %1335 = vmatpush1.msra.mxu0 0.0
  %1336 = vmatprep.subr.mxu0 0.0
  %1337 = vmatpush1.msra.mxu0 0.0
  %1338 = vmatprep.subr.mxu0 0.0
  %1339 = vmatpush1.msra.mxu0 0.0
  %1340 = vmatprep.subr.mxu0 0.0
  %1341 = vmatpush1.msra.mxu0 0.0
  %1342 = vmatprep.subr.mxu0 0.0
  %1343 = vmatpush1.msra.mxu0 0.0
  %1344 = vmatprep.subr.mxu0 0.0
  %1345 = vmatpush1.msra.mxu0 0.0
  %1346 = vmatprep.subr.mxu0 0.0
  %1347 = vmatpush1.msra.mxu0 0.0
  %1348 = vmatprep.subr.mxu0 0.0
  %1349 = vmatpush1.msra.mxu0 0.0
  %1350 = vmatprep.subr.mxu0 0.0
  %1351 = vmatpush1.msra.mxu0 0.0
  %1352 = vmatprep.subr.mxu0 0.0
  %1353 = vmatpush1.msra.mxu0 0.0
  %1354 = vmatprep.subr.mxu0 0.0
  %1355 = vmatpush1.msra.mxu0 0.0
  %1356 = vmatprep.subr.mxu0 0.0
  %1357 = vmatpush1.msra.mxu0 0.0
  %1358 = vmatprep.subr.mxu0 0.0
  %1359 = vmatpush1.msra.mxu0 0.0
  %1360 = vmatprep.subr.mxu0 0.0
  %1361 = vmatpush1.msra.mxu0 0.0
  %1362 = vmatprep.subr.mxu0 0.0
  %1363 = vmatpush1.msra.mxu0 0.0
  %1364 = vmatprep.subr.mxu0 0.0
  %1365 = vmatpush1.msra.mxu0 0.0
  %1366 = vmatprep.subr.mxu0 0.0
  %1367 = vmatpush1.msra.mxu0 0.0
  %1368 = vmatprep.subr.mxu0 0.0
  %1369 = vmatpush1.msra.mxu0 0.0
  %1370 = vmatprep.subr.mxu0 0.0
  %1371 = vmatpush1.msra.mxu0 0.0
  %1372 = vmatprep.subr.mxu0 0.0
  %1373 = vmatpush1.msra.mxu0 0.0
  %1374 = vmatprep.subr.mxu0 0.0
  %1375 = vmatpush1.msra.mxu0 0.0
  %1376 = vmatprep.subr.mxu0 0.0
  %1377 = vmatpush1.msra.mxu0 0.0
  %1378 = vmatprep.subr.mxu0 0.0
  %1379 = vmatpush1.msra.mxu0 0.0
  %1380 = vmatprep.mubr.f32.mxu0 0.0
  %1381 = vmatmul.mubr.f32.gmra.mrb[0].mxu0 %v1314
  %v1382 = vpop.f32.mrb[0].mxu0
  %v1383 = vadd.f32 %v1208, %v1382
  %v1384 = vpop.f32.mrb[0].mxu0
  %1385 = vdwg.mxu0
  %v1386 = vld [vmem:[%s903] sm:$0xf]
  %v1387 = vadd.f32 %v1386, %v1383
  %v1388 = vxor.u32 %v1387, 2147483648
  %v1389 = vmul.f32 %v1388, 1.442695
  %v1390 = vpow.pop %v1389
  %v1391 = vadd.f32 %v1390, 1.0
  %v1392 = vrcp.pop %v1391
  %v1393 = vmul.f32 1.0, %v1392
  %1395 = vrot.lane.b32.xlu0 %v1383, 64
  %v1396 = vpop.permute.xlu0 %1395
  %v1398 = vmul.f32 %v1393, %v1396
  %1400 = vrot.lane.b32.xlu0 %v1398, 64
  %v1401 = vpop.permute.xlu0 %1400
  %v1403 = vadd.f32 %v1386, %v1401
  %v1404 = vtanh.pop %v1403
  %v1405 = vsub.f32 1.0, %v1393
  %1407 = vrot.lane.b32.xlu0 %v1404, 96
  %v1408 = vpop.permute.xlu0 %1407
  %v1410 = vmul.f32 %v1405, %v1408
  %v1411 = vmul.f32 %v1393, %v1305
  %v1412 = vadd.f32 %v1410, %v1411
  %v1413 = vld [vmem:[%s935] sm:$0xf]
  %1415 = vrot.lane.b32.xlu0 %v1412, 96
  %v1416 = vpop.permute.xlu0 %1415
  %v1418 = vadd.f32 %v1413, %v1416
  %s1419 = scalar_lea.vmem %s7, 24
  %1420 = vst.msk [vmem:[%s1419] sm:$0xf] %vm299, %v1418
  %v1421 = vsel %vm109, %v1416, 0
  %1423 = vmatprep.subr.mxu0 0.0
  %1424 = vmatpush1.msra.mxu0 %v1200
  %1425 = vmatprep.subr.mxu0 0.0
  %1426 = vmatpush1.msra.mxu0 %v1201
  %1427 = vmatprep.subr.mxu0 0.0
  %1428 = vmatpush1.msra.mxu0 %v1202
  %1429 = vmatprep.subr.mxu0 0.0
  %1430 = vmatpush1.msra.mxu0 %v1203
  %1431 = vmatprep.subr.mxu0 0.0
  %1432 = vmatpush1.msra.mxu0 0.0
  %1433 = vmatprep.subr.mxu0 0.0
  %1434 = vmatpush1.msra.mxu0 0.0
  %1435 = vmatprep.subr.mxu0 0.0
  %1436 = vmatpush1.msra.mxu0 0.0
  %1437 = vmatprep.subr.mxu0 0.0
  %1438 = vmatpush1.msra.mxu0 0.0
  %1439 = vmatprep.subr.mxu0 0.0
  %1440 = vmatpush1.msra.mxu0 0.0
  %1441 = vmatprep.subr.mxu0 0.0
  %1442 = vmatpush1.msra.mxu0 0.0
  %1443 = vmatprep.subr.mxu0 0.0
  %1444 = vmatpush1.msra.mxu0 0.0
  %1445 = vmatprep.subr.mxu0 0.0
  %1446 = vmatpush1.msra.mxu0 0.0
  %1447 = vmatprep.subr.mxu0 0.0
  %1448 = vmatpush1.msra.mxu0 0.0
  %1449 = vmatprep.subr.mxu0 0.0
  %1450 = vmatpush1.msra.mxu0 0.0
  %1451 = vmatprep.subr.mxu0 0.0
  %1452 = vmatpush1.msra.mxu0 0.0
  %1453 = vmatprep.subr.mxu0 0.0
  %1454 = vmatpush1.msra.mxu0 0.0
  %1455 = vmatprep.subr.mxu0 0.0
  %1456 = vmatpush1.msra.mxu0 0.0
  %1457 = vmatprep.subr.mxu0 0.0
  %1458 = vmatpush1.msra.mxu0 0.0
  %1459 = vmatprep.subr.mxu0 0.0
  %1460 = vmatpush1.msra.mxu0 0.0
  %1461 = vmatprep.subr.mxu0 0.0
  %1462 = vmatpush1.msra.mxu0 0.0
  %1463 = vmatprep.subr.mxu0 0.0
  %1464 = vmatpush1.msra.mxu0 0.0
  %1465 = vmatprep.subr.mxu0 0.0
  %1466 = vmatpush1.msra.mxu0 0.0
  %1467 = vmatprep.subr.mxu0 0.0
  %1468 = vmatpush1.msra.mxu0 0.0
  %1469 = vmatprep.subr.mxu0 0.0
  %1470 = vmatpush1.msra.mxu0 0.0
  %1471 = vmatprep.subr.mxu0 0.0
  %1472 = vmatpush1.msra.mxu0 0.0
  %1473 = vmatprep.subr.mxu0 0.0
  %1474 = vmatpush1.msra.mxu0 0.0
  %1475 = vmatprep.subr.mxu0 0.0
  %1476 = vmatpush1.msra.mxu0 0.0
  %1477 = vmatprep.subr.mxu0 0.0
  %1478 = vmatpush1.msra.mxu0 0.0
  %1479 = vmatprep.subr.mxu0 0.0
  %1480 = vmatpush1.msra.mxu0 0.0
  %1481 = vmatprep.subr.mxu0 0.0
  %1482 = vmatpush1.msra.mxu0 0.0
  %1483 = vmatprep.subr.mxu0 0.0
  %1484 = vmatpush1.msra.mxu0 0.0
  %1485 = vmatprep.subr.mxu0 0.0
  %1486 = vmatpush1.msra.mxu0 0.0
  %1487 = vmatprep.mubr.f32.mxu0 0.0
  %1488 = vmatmul.mubr.f32.gmra.mrb[0].mxu0 %v1421
  %v1489 = vpop.f32.mrb[0].mxu0
  %v1490 = vadd.f32 %v1208, %v1489
  %v1491 = vpop.f32.mrb[0].mxu0
  %1492 = vdwg.mxu0
  %v1493 = vld [vmem:[%s797] sm:$0xf]
  %v1494 = vadd.f32 %v1493, %v1490
  %v1495 = vxor.u32 %v1494, 2147483648
  %v1496 = vmul.f32 %v1495, 1.442695
  %v1497 = vpow.pop %v1496
  %v1498 = vadd.f32 %v1497, 1.0
  %v1499 = vrcp.pop %v1498
  %v1500 = vmul.f32 1.0, %v1499
  %1502 = vrot.lane.b32.xlu0 %v1490, 64
  %v1503 = vpop.permute.xlu0 %1502
  %v1505 = vmul.f32 %v1500, %v1503
  %1507 = vrot.lane.b32.xlu0 %v1505, 64
  %v1508 = vpop.permute.xlu0 %1507
  %v1510 = vadd.f32 %v1493, %v1508
  %v1511 = vtanh.pop %v1510
  %v1512 = vsub.f32 1.0, %v1500
  %1514 = vrot.lane.b32.xlu0 %v1511, 96
  %v1515 = vpop.permute.xlu0 %1514
  %v1517 = vmul.f32 %v1512, %v1515
  %v1518 = vmul.f32 %v1500, %v1412
  %v1519 = vadd.f32 %v1517, %v1518
  %v1520 = vld [vmem:[%s829] sm:$0xf]
  %1522 = vrot.lane.b32.xlu0 %v1519, 96
  %v1523 = vpop.permute.xlu0 %1522
  %v1525 = vadd.f32 %v1520, %v1523
  %s1526 = scalar_lea.vmem %s7, 20
  %1527 = vst.msk [vmem:[%s1526] sm:$0xf] %vm299, %v1525
  %v1528 = vsel %vm109, %v1523, 0
  %1530 = vmatprep.subr.mxu0 0.0
  %1531 = vmatpush1.msra.mxu0 %v1200
  %1532 = vmatprep.subr.mxu0 0.0
  %1533 = vmatpush1.msra.mxu0 %v1201
  %1534 = vmatprep.subr.mxu0 0.0
  %1535 = vmatpush1.msra.mxu0 %v1202
  %1536 = vmatprep.subr.mxu0 0.0
  %1537 = vmatpush1.msra.mxu0 %v1203
  %1538 = vmatprep.subr.mxu0 0.0
  %1539 = vmatpush1.msra.mxu0 0.0
  %1540 = vmatprep.subr.mxu0 0.0
  %1541 = vmatpush1.msra.mxu0 0.0
  %1542 = vmatprep.subr.mxu0 0.0
  %1543 = vmatpush1.msra.mxu0 0.0
  %1544 = vmatprep.subr.mxu0 0.0
  %1545 = vmatpush1.msra.mxu0 0.0
  %1546 = vmatprep.subr.mxu0 0.0
  %1547 = vmatpush1.msra.mxu0 0.0
  %1548 = vmatprep.subr.mxu0 0.0
  %1549 = vmatpush1.msra.mxu0 0.0
  %1550 = vmatprep.subr.mxu0 0.0
  %1551 = vmatpush1.msra.mxu0 0.0
  %1552 = vmatprep.subr.mxu0 0.0
  %1553 = vmatpush1.msra.mxu0 0.0
  %1554 = vmatprep.subr.mxu0 0.0
  %1555 = vmatpush1.msra.mxu0 0.0
  %1556 = vmatprep.subr.mxu0 0.0
  %1557 = vmatpush1.msra.mxu0 0.0
  %1558 = vmatprep.subr.mxu0 0.0
  %1559 = vmatpush1.msra.mxu0 0.0
  %1560 = vmatprep.subr.mxu0 0.0
  %1561 = vmatpush1.msra.mxu0 0.0
  %1562 = vmatprep.subr.mxu0 0.0
  %1563 = vmatpush1.msra.mxu0 0.0
  %1564 = vmatprep.subr.mxu0 0.0
  %1565 = vmatpush1.msra.mxu0 0.0
  %1566 = vmatprep.subr.mxu0 0.0
  %1567 = vmatpush1.msra.mxu0 0.0
  %1568 = vmatprep.subr.mxu0 0.0
  %1569 = vmatpush1.msra.mxu0 0.0
  %1570 = vmatprep.subr.mxu0 0.0
  %1571 = vmatpush1.msra.mxu0 0.0
  %1572 = vmatprep.subr.mxu0 0.0
  %1573 = vmatpush1.msra.mxu0 0.0
  %1574 = vmatprep.subr.mxu0 0.0
  %1575 = vmatpush1.msra.mxu0 0.0
  %1576 = vmatprep.subr.mxu0 0.0
  %1577 = vmatpush1.msra.mxu0 0.0
  %1578 = vmatprep.subr.mxu0 0.0
  %1579 = vmatpush1.msra.mxu0 0.0
  %1580 = vmatprep.subr.mxu0 0.0
  %1581 = vmatpush1.msra.mxu0 0.0
  %1582 = vmatprep.subr.mxu0 0.0
  %1583 = vmatpush1.msra.mxu0 0.0
  %1584 = vmatprep.subr.mxu0 0.0
  %1585 = vmatpush1.msra.mxu0 0.0
  %1586 = vmatprep.subr.mxu0 0.0
  %1587 = vmatpush1.msra.mxu0 0.0
  %1588 = vmatprep.subr.mxu0 0.0
  %1589 = vmatpush1.msra.mxu0 0.0
  %1590 = vmatprep.subr.mxu0 0.0
  %1591 = vmatpush1.msra.mxu0 0.0
  %1592 = vmatprep.subr.mxu0 0.0
  %1593 = vmatpush1.msra.mxu0 0.0
  %1594 = vmatprep.mubr.f32.mxu0 0.0
  %1595 = vmatmul.mubr.f32.gmra.mrb[0].mxu0 %v1528
  %v1596 = vpop.f32.mrb[0].mxu0
  %v1597 = vadd.f32 %v1208, %v1596
  %v1598 = vpop.f32.mrb[0].mxu0
  %1599 = vdwg.mxu0
  %v1600 = vld [vmem:[%s691] sm:$0xf]
  %v1601 = vadd.f32 %v1600, %v1597
  %v1602 = vxor.u32 %v1601, 2147483648
  %v1603 = vmul.f32 %v1602, 1.442695
  %v1604 = vpow.pop %v1603
  %v1605 = vadd.f32 %v1604, 1.0
  %v1606 = vrcp.pop %v1605
  %v1607 = vmul.f32 1.0, %v1606
  %1609 = vrot.lane.b32.xlu0 %v1597, 64
  %v1610 = vpop.permute.xlu0 %1609
  %v1612 = vmul.f32 %v1607, %v1610
  %1614 = vrot.lane.b32.xlu0 %v1612, 64
  %v1615 = vpop.permute.xlu0 %1614
  %v1617 = vadd.f32 %v1600, %v1615
  %v1618 = vtanh.pop %v1617
  %v1619 = vsub.f32 1.0, %v1607
  %1621 = vrot.lane.b32.xlu0 %v1618, 96
  %v1622 = vpop.permute.xlu0 %1621
  %v1624 = vmul.f32 %v1619, %v1622
  %v1625 = vmul.f32 %v1607, %v1519
  %v1626 = vadd.f32 %v1624, %v1625
  %v1627 = vld [vmem:[%s723] sm:$0xf]
  %1629 = vrot.lane.b32.xlu0 %v1626, 96
  %v1630 = vpop.permute.xlu0 %1629
  %v1632 = vadd.f32 %v1627, %v1630
  %s1633 = scalar_lea.vmem %s7, 16
  %1634 = vst.msk [vmem:[%s1633] sm:$0xf] %vm299, %v1632
  %v1635 = vsel %vm109, %v1630, 0
  %1637 = vmatprep.subr.mxu0 0.0
  %1638 = vmatpush1.msra.mxu0 %v1200
  %1639 = vmatprep.subr.mxu0 0.0
  %1640 = vmatpush1.msra.mxu0 %v1201
  %1641 = vmatprep.subr.mxu0 0.0
  %1642 = vmatpush1.msra.mxu0 %v1202
  %1643 = vmatprep.subr.mxu0 0.0
  %1644 = vmatpush1.msra.mxu0 %v1203
  %1645 = vmatprep.subr.mxu0 0.0
  %1646 = vmatpush1.msra.mxu0 0.0
  %1647 = vmatprep.subr.mxu0 0.0
  %1648 = vmatpush1.msra.mxu0 0.0
  %1649 = vmatprep.subr.mxu0 0.0
  %1650 = vmatpush1.msra.mxu0 0.0
  %1651 = vmatprep.subr.mxu0 0.0
  %1652 = vmatpush1.msra.mxu0 0.0
  %1653 = vmatprep.subr.mxu0 0.0
  %1654 = vmatpush1.msra.mxu0 0.0
  %1655 = vmatprep.subr.mxu0 0.0
  %1656 = vmatpush1.msra.mxu0 0.0
  %1657 = vmatprep.subr.mxu0 0.0
  %1658 = vmatpush1.msra.mxu0 0.0
  %1659 = vmatprep.subr.mxu0 0.0
  %1660 = vmatpush1.msra.mxu0 0.0
  %1661 = vmatprep.subr.mxu0 0.0
  %1662 = vmatpush1.msra.mxu0 0.0
  %1663 = vmatprep.subr.mxu0 0.0
  %1664 = vmatpush1.msra.mxu0 0.0
  %1665 = vmatprep.subr.mxu0 0.0
  %1666 = vmatpush1.msra.mxu0 0.0
  %1667 = vmatprep.subr.mxu0 0.0
  %1668 = vmatpush1.msra.mxu0 0.0
  %1669 = vmatprep.subr.mxu0 0.0
  %1670 = vmatpush1.msra.mxu0 0.0
  %1671 = vmatprep.subr.mxu0 0.0
  %1672 = vmatpush1.msra.mxu0 0.0
  %1673 = vmatprep.subr.mxu0 0.0
  %1674 = vmatpush1.msra.mxu0 0.0
  %1675 = vmatprep.subr.mxu0 0.0
  %1676 = vmatpush1.msra.mxu0 0.0
  %1677 = vmatprep.subr.mxu0 0.0
  %1678 = vmatpush1.msra.mxu0 0.0
  %1679 = vmatprep.subr.mxu0 0.0
  %1680 = vmatpush1.msra.mxu0 0.0
  %1681 = vmatprep.subr.mxu0 0.0
  %1682 = vmatpush1.msra.mxu0 0.0
  %1683 = vmatprep.subr.mxu0 0.0
  %1684 = vmatpush1.msra.mxu0 0.0
  %1685 = vmatprep.subr.mxu0 0.0
  %1686 = vmatpush1.msra.mxu0 0.0
  %1687 = vmatprep.subr.mxu0 0.0
  %1688 = vmatpush1.msra.mxu0 0.0
  %1689 = vmatprep.subr.mxu0 0.0
  %1690 = vmatpush1.msra.mxu0 0.0
  %1691 = vmatprep.subr.mxu0 0.0
  %1692 = vmatpush1.msra.mxu0 0.0
  %1693 = vmatprep.subr.mxu0 0.0
  %1694 = vmatpush1.msra.mxu0 0.0
  %1695 = vmatprep.subr.mxu0 0.0
  %1696 = vmatpush1.msra.mxu0 0.0
  %1697 = vmatprep.subr.mxu0 0.0
  %1698 = vmatpush1.msra.mxu0 0.0
  %1699 = vmatprep.subr.mxu0 0.0
  %1700 = vmatpush1.msra.mxu0 0.0
  %1701 = vmatprep.mubr.f32.mxu0 0.0
  %1702 = vmatmul.mubr.f32.gmra.mrb[0].mxu0 %v1635
  %v1703 = vpop.f32.mrb[0].mxu0
  %v1704 = vadd.f32 %v1208, %v1703
  %v1705 = vpop.f32.mrb[0].mxu0
  %1706 = vdwg.mxu0
  %v1707 = vld [vmem:[%s585] sm:$0xf]
  %v1708 = vadd.f32 %v1707, %v1704
  %v1709 = vxor.u32 %v1708, 2147483648
  %v1710 = vmul.f32 %v1709, 1.442695
  %v1711 = vpow.pop %v1710
  %v1712 = vadd.f32 %v1711, 1.0
  %v1713 = vrcp.pop %v1712
  %v1714 = vmul.f32 1.0, %v1713
  %1716 = vrot.lane.b32.xlu0 %v1704, 64
  %v1717 = vpop.permute.xlu0 %1716
  %v1719 = vmul.f32 %v1714, %v1717
  %1721 = vrot.lane.b32.xlu0 %v1719, 64
  %v1722 = vpop.permute.xlu0 %1721
  %v1724 = vadd.f32 %v1707, %v1722
  %v1725 = vtanh.pop %v1724
  %v1726 = vsub.f32 1.0, %v1714
  %1728 = vrot.lane.b32.xlu0 %v1725, 96
  %v1729 = vpop.permute.xlu0 %1728
  %v1731 = vmul.f32 %v1726, %v1729
  %v1732 = vmul.f32 %v1714, %v1626
  %v1733 = vadd.f32 %v1731, %v1732
  %v1734 = vld [vmem:[%s617] sm:$0xf]
  %1736 = vrot.lane.b32.xlu0 %v1733, 96
  %v1737 = vpop.permute.xlu0 %1736
  %v1739 = vadd.f32 %v1734, %v1737
  %s1740 = scalar_lea.vmem %s7, 12
  %1741 = vst.msk [vmem:[%s1740] sm:$0xf] %vm299, %v1739
  %v1742 = vsel %vm109, %v1737, 0
  %1744 = vmatprep.subr.mxu0 0.0
  %1745 = vmatpush1.msra.mxu0 %v1200
  %1746 = vmatprep.subr.mxu0 0.0
  %1747 = vmatpush1.msra.mxu0 %v1201
  %1748 = vmatprep.subr.mxu0 0.0
  %1749 = vmatpush1.msra.mxu0 %v1202
  %1750 = vmatprep.subr.mxu0 0.0
  %1751 = vmatpush1.msra.mxu0 %v1203
  %1752 = vmatprep.subr.mxu0 0.0
  %1753 = vmatpush1.msra.mxu0 0.0
  %1754 = vmatprep.subr.mxu0 0.0
  %1755 = vmatpush1.msra.mxu0 0.0
  %1756 = vmatprep.subr.mxu0 0.0
  %1757 = vmatpush1.msra.mxu0 0.0
  %1758 = vmatprep.subr.mxu0 0.0
  %1759 = vmatpush1.msra.mxu0 0.0
  %1760 = vmatprep.subr.mxu0 0.0
  %1761 = vmatpush1.msra.mxu0 0.0
  %1762 = vmatprep.subr.mxu0 0.0
  %1763 = vmatpush1.msra.mxu0 0.0
  %1764 = vmatprep.subr.mxu0 0.0
  %1765 = vmatpush1.msra.mxu0 0.0
  %1766 = vmatprep.subr.mxu0 0.0
  %1767 = vmatpush1.msra.mxu0 0.0
  %1768 = vmatprep.subr.mxu0 0.0
  %1769 = vmatpush1.msra.mxu0 0.0
  %1770 = vmatprep.subr.mxu0 0.0
  %1771 = vmatpush1.msra.mxu0 0.0
  %1772 = vmatprep.subr.mxu0 0.0
  %1773 = vmatpush1.msra.mxu0 0.0
  %1774 = vmatprep.subr.mxu0 0.0
  %1775 = vmatpush1.msra.mxu0 0.0
  %1776 = vmatprep.subr.mxu0 0.0
  %1777 = vmatpush1.msra.mxu0 0.0
  %1778 = vmatprep.subr.mxu0 0.0
  %1779 = vmatpush1.msra.mxu0 0.0
  %1780 = vmatprep.subr.mxu0 0.0
  %1781 = vmatpush1.msra.mxu0 0.0
  %1782 = vmatprep.subr.mxu0 0.0
  %1783 = vmatpush1.msra.mxu0 0.0
  %1784 = vmatprep.subr.mxu0 0.0
  %1785 = vmatpush1.msra.mxu0 0.0
  %1786 = vmatprep.subr.mxu0 0.0
  %1787 = vmatpush1.msra.mxu0 0.0
  %1788 = vmatprep.subr.mxu0 0.0
  %1789 = vmatpush1.msra.mxu0 0.0
  %1790 = vmatprep.subr.mxu0 0.0
  %1791 = vmatpush1.msra.mxu0 0.0
  %1792 = vmatprep.subr.mxu0 0.0
  %1793 = vmatpush1.msra.mxu0 0.0
  %1794 = vmatprep.subr.mxu0 0.0
  %1795 = vmatpush1.msra.mxu0 0.0
  %1796 = vmatprep.subr.mxu0 0.0
  %1797 = vmatpush1.msra.mxu0 0.0
  %1798 = vmatprep.subr.mxu0 0.0
  %1799 = vmatpush1.msra.mxu0 0.0
  %1800 = vmatprep.subr.mxu0 0.0
  %1801 = vmatpush1.msra.mxu0 0.0
  %1802 = vmatprep.subr.mxu0 0.0
  %1803 = vmatpush1.msra.mxu0 0.0
  %1804 = vmatprep.subr.mxu0 0.0
  %1805 = vmatpush1.msra.mxu0 0.0
  %1806 = vmatprep.subr.mxu0 0.0
  %1807 = vmatpush1.msra.mxu0 0.0
  %1808 = vmatprep.mubr.f32.mxu0 0.0
  %1809 = vmatmul.mubr.f32.gmra.mrb[0].mxu0 %v1742
  %v1810 = vpop.f32.mrb[0].mxu0
  %v1811 = vadd.f32 %v1208, %v1810
  %v1812 = vpop.f32.mrb[0].mxu0
  %1813 = vdwg.mxu0
  %v1814 = vld [vmem:[%s479] sm:$0xf]
  %v1815 = vadd.f32 %v1814, %v1811
  %v1816 = vxor.u32 %v1815, 2147483648
  %v1817 = vmul.f32 %v1816, 1.442695
  %v1818 = vpow.pop %v1817
  %v1819 = vadd.f32 %v1818, 1.0
  %v1820 = vrcp.pop %v1819
  %v1821 = vmul.f32 1.0, %v1820
  %1823 = vrot.lane.b32.xlu0 %v1811, 64
  %v1824 = vpop.permute.xlu0 %1823
  %v1826 = vmul.f32 %v1821, %v1824
  %1828 = vrot.lane.b32.xlu0 %v1826, 64
  %v1829 = vpop.permute.xlu0 %1828
  %v1831 = vadd.f32 %v1814, %v1829
  %v1832 = vtanh.pop %v1831
  %v1833 = vsub.f32 1.0, %v1821
  %1835 = vrot.lane.b32.xlu0 %v1832, 96
  %v1836 = vpop.permute.xlu0 %1835
  %v1838 = vmul.f32 %v1833, %v1836
  %v1839 = vmul.f32 %v1821, %v1733
  %v1840 = vadd.f32 %v1838, %v1839
  %v1841 = vld [vmem:[%s511] sm:$0xf]
  %1843 = vrot.lane.b32.xlu0 %v1840, 96
  %v1844 = vpop.permute.xlu0 %1843
  %v1846 = vadd.f32 %v1841, %v1844
  %s1847 = scalar_lea.vmem %s7, 8
  %1848 = vst.msk [vmem:[%s1847] sm:$0xf] %vm299, %v1846
  %v1849 = vsel %vm109, %v1844, 0
  %1851 = vmatprep.subr.mxu0 0.0
  %1852 = vmatpush1.msra.mxu0 %v1200
  %1853 = vmatprep.subr.mxu0 0.0
  %1854 = vmatpush1.msra.mxu0 %v1201
  %1855 = vmatprep.subr.mxu0 0.0
  %1856 = vmatpush1.msra.mxu0 %v1202
  %1857 = vmatprep.subr.mxu0 0.0
  %1858 = vmatpush1.msra.mxu0 %v1203
  %1859 = vmatprep.subr.mxu0 0.0
  %1860 = vmatpush1.msra.mxu0 0.0
  %1861 = vmatprep.subr.mxu0 0.0
  %1862 = vmatpush1.msra.mxu0 0.0
  %1863 = vmatprep.subr.mxu0 0.0
  %1864 = vmatpush1.msra.mxu0 0.0
  %1865 = vmatprep.subr.mxu0 0.0
  %1866 = vmatpush1.msra.mxu0 0.0
  %1867 = vmatprep.subr.mxu0 0.0
  %1868 = vmatpush1.msra.mxu0 0.0
  %1869 = vmatprep.subr.mxu0 0.0
  %1870 = vmatpush1.msra.mxu0 0.0
  %1871 = vmatprep.subr.mxu0 0.0
  %1872 = vmatpush1.msra.mxu0 0.0
  %1873 = vmatprep.subr.mxu0 0.0
  %1874 = vmatpush1.msra.mxu0 0.0
  %1875 = vmatprep.subr.mxu0 0.0
  %1876 = vmatpush1.msra.mxu0 0.0
  %1877 = vmatprep.subr.mxu0 0.0
  %1878 = vmatpush1.msra.mxu0 0.0
  %1879 = vmatprep.subr.mxu0 0.0
  %1880 = vmatpush1.msra.mxu0 0.0
  %1881 = vmatprep.subr.mxu0 0.0
  %1882 = vmatpush1.msra.mxu0 0.0
  %1883 = vmatprep.subr.mxu0 0.0
  %1884 = vmatpush1.msra.mxu0 0.0
  %1885 = vmatprep.subr.mxu0 0.0
  %1886 = vmatpush1.msra.mxu0 0.0
  %1887 = vmatprep.subr.mxu0 0.0
  %1888 = vmatpush1.msra.mxu0 0.0
  %1889 = vmatprep.subr.mxu0 0.0
  %1890 = vmatpush1.msra.mxu0 0.0
  %1891 = vmatprep.subr.mxu0 0.0
  %1892 = vmatpush1.msra.mxu0 0.0
  %1893 = vmatprep.subr.mxu0 0.0
  %1894 = vmatpush1.msra.mxu0 0.0
  %1895 = vmatprep.subr.mxu0 0.0
  %1896 = vmatpush1.msra.mxu0 0.0
  %1897 = vmatprep.subr.mxu0 0.0
  %1898 = vmatpush1.msra.mxu0 0.0
  %1899 = vmatprep.subr.mxu0 0.0
  %1900 = vmatpush1.msra.mxu0 0.0
  %1901 = vmatprep.subr.mxu0 0.0
  %1902 = vmatpush1.msra.mxu0 0.0
  %1903 = vmatprep.subr.mxu0 0.0
  %1904 = vmatpush1.msra.mxu0 0.0
  %1905 = vmatprep.subr.mxu0 0.0
  %1906 = vmatpush1.msra.mxu0 0.0
  %1907 = vmatprep.subr.mxu0 0.0
  %1908 = vmatpush1.msra.mxu0 0.0
  %1909 = vmatprep.subr.mxu0 0.0
  %1910 = vmatpush1.msra.mxu0 0.0
  %1911 = vmatprep.subr.mxu0 0.0
  %1912 = vmatpush1.msra.mxu0 0.0
  %1913 = vmatprep.subr.mxu0 0.0
  %1914 = vmatpush1.msra.mxu0 0.0
  %1915 = vmatprep.mubr.f32.mxu0 0.0
  %1916 = vmatmul.mubr.f32.gmra.mrb[0].mxu0 %v1849
  %v1917 = vpop.f32.mrb[0].mxu0
  %v1918 = vadd.f32 %v1208, %v1917
  %v1919 = vpop.f32.mrb[0].mxu0
  %1920 = vdwg.mxu0
  %v1921 = vld [vmem:[%s373] sm:$0xf]
  %v1922 = vadd.f32 %v1921, %v1918
  %v1923 = vxor.u32 %v1922, 2147483648
  %v1924 = vmul.f32 %v1923, 1.442695
  %v1925 = vpow.pop %v1924
  %v1926 = vadd.f32 %v1925, 1.0
  %v1927 = vrcp.pop %v1926
  %v1928 = vmul.f32 1.0, %v1927
  %1930 = vrot.lane.b32.xlu0 %v1918, 64
  %v1931 = vpop.permute.xlu0 %1930
  %v1933 = vmul.f32 %v1928, %v1931
  %1935 = vrot.lane.b32.xlu0 %v1933, 64
  %v1936 = vpop.permute.xlu0 %1935
  %v1938 = vadd.f32 %v1921, %v1936
  %v1939 = vtanh.pop %v1938
  %v1940 = vsub.f32 1.0, %v1928
  %1942 = vrot.lane.b32.xlu0 %v1939, 96
  %v1943 = vpop.permute.xlu0 %1942
  %v1945 = vmul.f32 %v1940, %v1943
  %v1946 = vmul.f32 %v1928, %v1840
  %v1947 = vadd.f32 %v1945, %v1946
  %v1948 = vld [vmem:[%s405] sm:$0xf]
  %1950 = vrot.lane.b32.xlu0 %v1947, 96
  %v1951 = vpop.permute.xlu0 %1950
  %v1953 = vadd.f32 %v1948, %v1951
  %s1954 = scalar_lea.vmem %s7, 4
  %1955 = vst.msk [vmem:[%s1954] sm:$0xf] %vm299, %v1953
  %v1956 = vsel %vm109, %v1951, 0
  %1958 = vmatprep.subr.mxu0 0.0
  %1959 = vmatpush1.msra.mxu0 %v1200
  %1960 = vmatprep.subr.mxu0 0.0
  %1961 = vmatpush1.msra.mxu0 %v1201
  %1962 = vmatprep.subr.mxu0 0.0
  %1963 = vmatpush1.msra.mxu0 %v1202
  %1964 = vmatprep.subr.mxu0 0.0
  %1965 = vmatpush1.msra.mxu0 %v1203
  %1966 = vmatprep.subr.mxu0 0.0
  %1967 = vmatpush1.msra.mxu0 0.0
  %1968 = vmatprep.subr.mxu0 0.0
  %1969 = vmatpush1.msra.mxu0 0.0
  %1970 = vmatprep.subr.mxu0 0.0
  %1971 = vmatpush1.msra.mxu0 0.0
  %1972 = vmatprep.subr.mxu0 0.0
  %1973 = vmatpush1.msra.mxu0 0.0
  %1974 = vmatprep.subr.mxu0 0.0
  %1975 = vmatpush1.msra.mxu0 0.0
  %1976 = vmatprep.subr.mxu0 0.0
  %1977 = vmatpush1.msra.mxu0 0.0
  %1978 = vmatprep.subr.mxu0 0.0
  %1979 = vmatpush1.msra.mxu0 0.0
  %1980 = vmatprep.subr.mxu0 0.0
  %1981 = vmatpush1.msra.mxu0 0.0
  %1982 = vmatprep.subr.mxu0 0.0
  %1983 = vmatpush1.msra.mxu0 0.0
  %1984 = vmatprep.subr.mxu0 0.0
  %1985 = vmatpush1.msra.mxu0 0.0
  %1986 = vmatprep.subr.mxu0 0.0
  %1987 = vmatpush1.msra.mxu0 0.0
  %1988 = vmatprep.subr.mxu0 0.0
  %1989 = vmatpush1.msra.mxu0 0.0
  %1990 = vmatprep.subr.mxu0 0.0
  %1991 = vmatpush1.msra.mxu0 0.0
  %1992 = vmatprep.subr.mxu0 0.0
  %1993 = vmatpush1.msra.mxu0 0.0
  %1994 = vmatprep.subr.mxu0 0.0
  %1995 = vmatpush1.msra.mxu0 0.0
  %1996 = vmatprep.subr.mxu0 0.0
  %1997 = vmatpush1.msra.mxu0 0.0
  %1998 = vmatprep.subr.mxu0 0.0
  %1999 = vmatpush1.msra.mxu0 0.0
  %2000 = vmatprep.subr.mxu0 0.0
  %2001 = vmatpush1.msra.mxu0 0.0
  %2002 = vmatprep.subr.mxu0 0.0
  %2003 = vmatpush1.msra.mxu0 0.0
  %2004 = vmatprep.subr.mxu0 0.0
  %2005 = vmatpush1.msra.mxu0 0.0
  %2006 = vmatprep.subr.mxu0 0.0
  %2007 = vmatpush1.msra.mxu0 0.0
  %2008 = vmatprep.subr.mxu0 0.0
  %2009 = vmatpush1.msra.mxu0 0.0
  %2010 = vmatprep.subr.mxu0 0.0
  %2011 = vmatpush1.msra.mxu0 0.0
  %2012 = vmatprep.subr.mxu0 0.0
  %2013 = vmatpush1.msra.mxu0 0.0
  %2014 = vmatprep.subr.mxu0 0.0
  %2015 = vmatpush1.msra.mxu0 0.0
  %2016 = vmatprep.subr.mxu0 0.0
  %2017 = vmatpush1.msra.mxu0 0.0
  %2018 = vmatprep.subr.mxu0 0.0
  %2019 = vmatpush1.msra.mxu0 0.0
  %2020 = vmatprep.subr.mxu0 0.0
  %2021 = vmatpush1.msra.mxu0 0.0
  %2022 = vmatprep.mubr.f32.mxu0 0.0
  %2023 = vmatmul.mubr.f32.gmra.mrb[0].mxu0 %v1956
  %v2024 = vpop.f32.mrb[0].mxu0
  %v2025 = vadd.f32 %v1208, %v2024
  %v2026 = vpop.f32.mrb[0].mxu0
  %2027 = vdwg.mxu0
  %v2028 = vld [vmem:[#allocation3] sm:$0xf]
  %v2029 = vadd.f32 %v2028, %v2025
  %v2030 = vxor.u32 %v2029, 2147483648
  %v2031 = vmul.f32 %v2030, 1.442695
  %v2032 = vpow.pop %v2031
  %v2033 = vadd.f32 %v2032, 1.0
  %v2034 = vrcp.pop %v2033
  %v2035 = vmul.f32 1.0, %v2034
  %2037 = vrot.lane.b32.xlu0 %v2025, 64
  %v2038 = vpop.permute.xlu0 %2037
  %v2040 = vmul.f32 %v2035, %v2038
  %2042 = vrot.lane.b32.xlu0 %v2040, 64
  %v2043 = vpop.permute.xlu0 %2042
  %v2045 = vadd.f32 %v2028, %v2043
  %v2046 = vtanh.pop %v2045
  %v2047 = vsub.f32 1.0, %v2035
  %2049 = vrot.lane.b32.xlu0 %v2046, 96
  %v2050 = vpop.permute.xlu0 %2049
  %v2052 = vmul.f32 %v2047, %v2050
  %v2053 = vmul.f32 %v2035, %v1947
  %v2054 = vadd.f32 %v2052, %v2053
  %v2055 = vld [vmem:[#allocation2] sm:$0xf]
  %2057 = vrot.lane.b32.xlu0 %v2054, 96
  %v2058 = vpop.permute.xlu0 %2057
  %v2060 = vadd.f32 %v2055, %v2058
  %2061 = vst.msk [vmem:[%s7] sm:$0xf] %vm299, %v2060
  // Predicated region
  $region30: #{forward.2} parent=0 // pred_check
    _
  $region31: #{forward.2} parent=0 // pred_check_branch
    %2063 = sbr.rel (0) target = $region33
  $region32: #{forward.2} parent=0 // pred_region
    _
  $region33: #{forward.2} parent=0 // pred_fallthru
    _
  // Predicated region
  $region34: #{forward.2} parent=0 // pred_check
    _
  $region35: #{forward.2} parent=0 // pred_check_branch
    %2065 = sbr.rel (0) target = $region37
  $region36: #{forward.2} parent=0 // pred_region
    _
  $region37: #{forward.2} parent=0 // pred_fallthru
    _

</llo_original>
